<compile_context>
chip_gen: v5e
topology: v5e:2x2
jax: 0.10.0
libtpu: 0.0.40
codegen_flags: <defaults>
</compile_context>

<pallas_src>
import numpy as np
import jax
import jax.numpy as jnp
from jax.experimental import pallas as pl
from jax.experimental.pallas import tpu as pltpu

# ----------------------- config (scaled-down, deterministic) -----------------------
IN_CH        = 4                  # input channels (small synthetic shapes)
NUM_CLASSES  = 20                 # as in the PyTorch module default
NUM_FEATURES = 128                # stand-in for EfficientNetV2-S's 1280-d feature
HIDDEN_DIMS  = [64, 32]           # stand-in for FastKAN hidden_dims [512, 256]
NUM_GRIDS    = 8
GRID_MIN, GRID_MAX = -2.0, 2.0
RBF_DENOM    = (GRID_MAX - GRID_MIN) / (NUM_GRIDS - 1)
LN_EPS       = 1e-5               # nn.LayerNorm default
STEM_CH      = 24                 # EfficientNetV2-S stem width (actual)

CPAD         = 128                # padded stem output channels (24 -> 128)
WIDTH        = 128                # fixed lane width of every FastKAN layer (lane-dense)
BPAD         = 8                  # batch rows padded to one sublane tile
SPATIAL_TILE = 64                 # spatial rows per reduction step -> M = B*ts = 128


# ----------------------------- fused Pallas kernel ----------------------------------
def make_fused_kernel(hw_valid, need_mask, head_dims_in):
    """One kernel: stem matmul + SiLU -> 1x1 proj + SiLU -> GAP (scratch accumulator
       over the spatial grid) -> FastKAN head in the finalize step of the last grid
       iteration.  head_dims_in = true (unpadded) fan-in of each FastKAN layer."""
    inv_hw = 1.0 / float(hw_valid)
    inv_den = 1.0 / RBF_DENOM

    def kernel(p_ref, sw_ref, sb_ref, pw_ref, pb_ref, *rest):
        o_ref, acc_ref = rest[-2], rest[-1]
        head_refs = rest[:-2]                                  # 5 refs per FastKAN layer

        s = pl.program_id(0)
        n_s = pl.num_programs(0)

        @pl.when(s == 0)
        def _():
            acc_ref[...] = jnp.zeros_like(acc_ref)

        # ---------------- backbone stand-in: stem conv + 1x1 proj + GAP --------------
        b, ts, kin = p_ref.shape                               # static
        p = p_ref[...].reshape(b * ts, kin)                    # bf16 patches, K = 36
        h1 = jnp.dot(p, sw_ref[...], preferred_element_type=jnp.float32) + sb_ref[...]
        h1 = h1 * jax.nn.sigmoid(h1)                           # SiLU (f32)
        h2 = jnp.dot(h1.astype(jnp.bfloat16), pw_ref[...],
                     preferred_element_type=jnp.float32) + pb_ref[...]
        h2 = h2 * jax.nn.sigmoid(h2)
        h2 = h2.reshape(b, ts, WIDTH)
        if need_mask:                                          # padded spatial rows -> 0
            row = jax.lax.broadcasted_iota(jnp.int32, (1, ts, 1), 1) + s * ts
            h2 = jnp.where(row < hw_valid, h2, 0.0)
        acc_ref[0:b, :] = acc_ref[0:b, :] + jnp.sum(h2, axis=1)   # GAP partial sums

        # ---------------- finalize: GAP mean + full FastKAN head ---------------------
        @pl.when(s == n_s - 1)
        def _():
            y = acc_ref[...] * inv_hw                          # (BPAD, 128) f32, GAP
            for li, din in enumerate(head_dims_in):
                gam, bet, wb, bb, ws = head_refs[5 * li:5 * li + 5]
                x = y                                          # padded cols are exactly 0
                # fused LayerNorm stats (one pass; divisor = true din)
                s1 = jnp.sum(x, axis=-1, keepdims=True)
                s2 = jnp.sum(x * x, axis=-1, keepdims=True)
                mean = s1 * (1.0 / din)
                var = s2 * (1.0 / din) - mean * mean
                z = (x - mean) * jax.lax.rsqrt(var + LN_EPS) * gam[...] + bet[...]
                # RBF basis: one broadcast exp over (BPAD, G, 128), lane-aligned flatten
                g_idx = jax.lax.broadcasted_iota(
                    jnp.int32, (BPAD, NUM_GRIDS, WIDTH), 1).astype(jnp.float32)
                grid_v = GRID_MIN + g_idx * RBF_DENOM
                phi = jnp.exp(-jnp.square((z[:, None, :] - grid_v) * inv_den))
                phi = phi.reshape(BPAD, NUM_GRIDS * WIDTH)     # g-major, matches ws slab
                base = x * jax.nn.sigmoid(x)                   # SiLU base path
                acc = jnp.dot(base.astype(jnp.bfloat16), wb[...],
                              preferred_element_type=jnp.float32) + bb[...]
                acc = acc + jnp.dot(phi.astype(jnp.bfloat16), ws[...],
                                    preferred_element_type=jnp.float32)
                y = acc                                        # (BPAD, 128), padded cols 0
            o_ref[...] = y.astype(o_ref.dtype)
    return kernel


# ----------------------------- helpers ----------------------------------------------
def _const_spec(a):
    nd = a.ndim
    return pl.BlockSpec(a.shape, lambda s, _n=nd: (0,) * _n)


def im2col_nhwc(x, kh, kw, stride, pad):
    xp = jnp.pad(x, ((0, 0), (pad, pad), (pad, pad), (0, 0)))
    B, H, W, C = xp.shape
    Ho = (H - kh) // stride + 1
    Wo = (W - kw) // stride + 1
    cols = [xp[:, i:i + stride * Ho:stride, j:j + stride * Wo:stride, :]
            for i in range(kh) for j in range(kw)]
    patches = jnp.concatenate(cols, axis=-1)                   # (B, Ho, Wo, kh*kw*C)
    return patches.reshape(B, Ho * Wo, kh * kw * C), Ho, Wo


# ----------------------------- params ------------------------------------------------
def init_params(key):
    ks = jax.random.split(key, 3)
    fan_in = 3 * 3 * IN_CH                                     # 36
    stem_w = jax.random.normal(ks[0], (fan_in, STEM_CH), jnp.float32) / np.sqrt(fan_in)
    stem_w_p = jnp.zeros((fan_in, CPAD), jnp.float32).at[:, :STEM_CH].set(stem_w)
    stem_b_p = jnp.zeros((1, CPAD), jnp.float32)
    proj_w = jax.random.normal(ks[1], (STEM_CH, NUM_FEATURES), jnp.float32) / np.sqrt(STEM_CH)
    proj_w_p = jnp.zeros((CPAD, NUM_FEATURES), jnp.float32).at[:STEM_CH, :].set(proj_w)
    proj_b_p = jnp.zeros((1, NUM_FEATURES), jnp.float32)

    dims = [NUM_FEATURES] + HIDDEN_DIMS + [NUM_CLASSES]
    layers = []
    lkeys = jax.random.split(ks[2], len(dims) - 1)
    for (din, dout), lk in zip(zip(dims[:-1], dims[1:]), lkeys):
        kk = jax.random.split(lk, 3)
        # spline_linear (bias=False), trunc_normal(std=0.1); stored g-major and
        # zero-padded to a fixed (G*WIDTH, WIDTH) slab:
        #   ws_slab[g*WIDTH + i, o] == W_spline[o, i*NUM_GRIDS + g]   (i < din, o < dout)
        ws = jax.random.normal(kk[0], (NUM_GRIDS, din, dout), jnp.float32) * 0.1
        ws_p = jnp.zeros((NUM_GRIDS, WIDTH, WIDTH), jnp.float32)
        ws_p = ws_p.at[:, :din, :dout].set(ws).reshape(NUM_GRIDS * WIDTH, WIDTH)
        wb = jax.random.normal(kk[1], (din, dout), jnp.float32) / np.sqrt(din)
        wb_p = jnp.zeros((WIDTH, WIDTH), jnp.float32).at[:din, :dout].set(wb)
        bb = jax.random.normal(kk[2], (1, dout), jnp.float32) * 0.01
        bb_p = jnp.zeros((1, WIDTH), jnp.float32).at[:, :dout].set(bb)
        gam = jnp.zeros((1, WIDTH), jnp.float32).at[:, :din].set(1.0)   # LN weight
        layers.append(dict(gamma=gam, beta=jnp.zeros((1, WIDTH), jnp.float32),
                           wb=wb_p.astype(jnp.bfloat16), bb=bb_p,
                           ws=ws_p.astype(jnp.bfloat16)))
    return dict(stem_w=stem_w_p.astype(jnp.bfloat16), stem_b=stem_b_p,
                proj_w=proj_w_p.astype(jnp.bfloat16), proj_b=proj_b_p,
                fastkan=layers)


# ----------------------------- forward ------------------------------------------------
def forward(params, x_nchw):
    x = jnp.transpose(x_nchw, (0, 2, 3, 1))                    # NCHW -> NHWC
    # TODO(synk): the pretrained torchvision EfficientNetV2-S MBConv stack (and its
    # BatchNorm running statistics) is not reimplemented; the backbone here is a
    # scaled-down stem-conv + 1x1-projection + global-average-pool stand-in.
    patches, Ho, Wo = im2col_nhwc(x, 3, 3, stride=2, pad=1)    # (B, HW, 36) — no K pad
    B, HW, fan_in = patches.shape
    ts = min(SPATIAL_TILE, HW)
    n_tiles = (HW + ts - 1) // ts
    hw_pad = n_tiles * ts
    if hw_pad != HW:
        patches = jnp.pad(patches, ((0, 0), (0, hw_pad - HW), (0, 0)))
    patches = patches.astype(jnp.bfloat16)

    head_dims_in = tuple([NUM_FEATURES] + HIDDEN_DIMS)
    args = [patches, params["stem_w"], params["stem_b"],
            params["proj_w"], params["proj_b"]]
    for lp in params["fastkan"]:
        args += [lp["gamma"], lp["beta"], lp["wb"], lp["bb"], lp["ws"]]

    in_specs = [pl.BlockSpec((B, ts, fan_in), lambda s: (0, s, 0))]   # spatial tile
    in_specs += [_const_spec(a) for a in args[1:]]             # weights: fetched once

    # advisory cost estimate so XLA schedules the surrounding im2col / slice ops
    m_rows = B * hw_pad
    flops = (2 * m_rows * fan_in * CPAD + 2 * m_rows * CPAD * NUM_FEATURES
             + len(head_dims_in) * (2 * BPAD * WIDTH * WIDTH
                                    + 2 * BPAD * NUM_GRIDS * WIDTH * WIDTH))
    transc = (m_rows * (CPAD + NUM_FEATURES)
              + len(head_dims_in) * BPAD * (WIDTH + NUM_GRIDS * WIDTH))
    bytes_accessed = (sum(int(np.prod(a.shape)) * a.dtype.itemsize for a in args)
                      + BPAD * WIDTH * 4)

    out = pl.pallas_call(
        make_fused_kernel(HW, hw_pad != HW, head_dims_in),
        out_shape=jax.ShapeDtypeStruct((BPAD, WIDTH), jnp.float32),
        grid=(n_tiles,),
        in_specs=in_specs,
        out_specs=pl.BlockSpec((BPAD, WIDTH), lambda s: (0, 0)),
        scratch_shapes=[pltpu.VMEM((BPAD, NUM_FEATURES), jnp.float32)],   # GAP accum
        compiler_params=pltpu.CompilerParams(
            dimension_semantics=("arbitrary",)),               # spatial axis = reduction
        cost_estimate=pl.CostEstimate(flops=int(flops), transcendentals=int(transc),
                                      bytes_accessed=int(bytes_accessed)),
    )(*args)

    return out[:B, :NUM_CLASSES]


if __name__ == "__main__":
    key = jax.random.PRNGKey(0)
    pkey, xkey = jax.random.split(key)
    params = init_params(pkey)
    x = jax.random.normal(xkey, (2, IN_CH, 16, 16), jnp.float32)   # NCHW like PyTorch
    out = jax.jit(forward)(params, x)
    out = jax.block_until_ready(out)
    assert out.shape == (2, NUM_CLASSES) and out.dtype == jnp.float32
    assert bool(jnp.all(jnp.isfinite(out)))
    print("KERNEL_OK")
</pallas_src>

<mosaic_0001>
module attributes {stable_mosaic.version = 11 : i64} {
  func.func @kernel(%arg0: i32, %arg1: memref<2x64x36xbf16, #tpu.memory_space<vmem>>, %arg2: memref<36x128xbf16, #tpu.memory_space<vmem>>, %arg3: memref<1x128xf32, #tpu.memory_space<vmem>>, %arg4: memref<128x128xbf16, #tpu.memory_space<vmem>>, %arg5: memref<1x128xf32, #tpu.memory_space<vmem>>, %arg6: memref<1x128xf32, #tpu.memory_space<vmem>>, %arg7: memref<1x128xf32, #tpu.memory_space<vmem>>, %arg8: memref<128x128xbf16, #tpu.memory_space<vmem>>, %arg9: memref<1x128xf32, #tpu.memory_space<vmem>>, %arg10: memref<1024x128xbf16, #tpu.memory_space<vmem>>, %arg11: memref<1x128xf32, #tpu.memory_space<vmem>>, %arg12: memref<1x128xf32, #tpu.memory_space<vmem>>, %arg13: memref<128x128xbf16, #tpu.memory_space<vmem>>, %arg14: memref<1x128xf32, #tpu.memory_space<vmem>>, %arg15: memref<1024x128xbf16, #tpu.memory_space<vmem>>, %arg16: memref<1x128xf32, #tpu.memory_space<vmem>>, %arg17: memref<1x128xf32, #tpu.memory_space<vmem>>, %arg18: memref<128x128xbf16, #tpu.memory_space<vmem>>, %arg19: memref<1x128xf32, #tpu.memory_space<vmem>>, %arg20: memref<1024x128xbf16, #tpu.memory_space<vmem>>, %arg21: memref<8x128xf32, #tpu.memory_space<vmem>>, %arg22: memref<8x128xf32, #tpu.memory_space<vmem>>) attributes {dimension_semantics = [#tpu.dimension_semantics<arbitrary>], iteration_bounds = array<i64: 1>, scalar_prefetch = 0 : i64, scratch_operands = 1 : i64, tpu.core_type = #tpu.core_type<tc>, window_params = [{transform_indices = @transform_0, window_bounds = array<i64: 2, 64, 36>}, {pipeline_mode = #tpu.pipeline_mode<synchronous>, transform_indices = @transform_1, window_bounds = array<i64: 36, 128>}, {pipeline_mode = #tpu.pipeline_mode<synchronous>, transform_indices = @transform_2, window_bounds = array<i64: 1, 128>}, {pipeline_mode = #tpu.pipeline_mode<synchronous>, transform_indices = @transform_3, window_bounds = array<i64: 128, 128>}, {pipeline_mode = #tpu.pipeline_mode<synchronous>, transform_indices = @transform_4, window_bounds = array<i64: 1, 128>}, {pipeline_mode = #tpu.pipeline_mode<synchronous>, transform_indices = @transform_5, window_bounds = array<i64: 1, 128>}, {pipeline_mode = #tpu.pipeline_mode<synchronous>, transform_indices = @transform_6, window_bounds = array<i64: 1, 128>}, {pipeline_mode = #tpu.pipeline_mode<synchronous>, transform_indices = @transform_7, window_bounds = array<i64: 128, 128>}, {pipeline_mode = #tpu.pipeline_mode<synchronous>, transform_indices = @transform_8, window_bounds = array<i64: 1, 128>}, {pipeline_mode = #tpu.pipeline_mode<synchronous>, transform_indices = @transform_9, window_bounds = array<i64: 1024, 128>}, {pipeline_mode = #tpu.pipeline_mode<synchronous>, transform_indices = @transform_10, window_bounds = array<i64: 1, 128>}, {pipeline_mode = #tpu.pipeline_mode<synchronous>, transform_indices = @transform_11, window_bounds = array<i64: 1, 128>}, {pipeline_mode = #tpu.pipeline_mode<synchronous>, transform_indices = @transform_12, window_bounds = array<i64: 128, 128>}, {pipeline_mode = #tpu.pipeline_mode<synchronous>, transform_indices = @transform_13, window_bounds = array<i64: 1, 128>}, {pipeline_mode = #tpu.pipeline_mode<synchronous>, transform_indices = @transform_14, window_bounds = array<i64: 1024, 128>}, {pipeline_mode = #tpu.pipeline_mode<synchronous>, transform_indices = @transform_15, window_bounds = array<i64: 1, 128>}, {pipeline_mode = #tpu.pipeline_mode<synchronous>, transform_indices = @transform_16, window_bounds = array<i64: 1, 128>}, {pipeline_mode = #tpu.pipeline_mode<synchronous>, transform_indices = @transform_17, window_bounds = array<i64: 128, 128>}, {pipeline_mode = #tpu.pipeline_mode<synchronous>, transform_indices = @transform_18, window_bounds = array<i64: 1, 128>}, {pipeline_mode = #tpu.pipeline_mode<synchronous>, transform_indices = @transform_19, window_bounds = array<i64: 1024, 128>}, {pipeline_mode = #tpu.pipeline_mode<synchronous>, transform_indices = @transform_20, window_bounds = array<i64: 8, 128>}]} {
    %c0_i32 = arith.constant 0 : i32
    %0 = arith.cmpi eq, %arg0, %c0_i32 : i32
    %1 = arith.extui %0 : i1 to i32
    %c0_i32_0 = arith.constant 0 : i32
    %2 = arith.cmpi ne, %1, %c0_i32_0 : i32
    scf.if %2 {
      %cst_21 = arith.constant 0.000000e+00 : f32
      %36 = vector.broadcast %cst_21 : f32 to vector<8x128xf32>
      %c0_22 = arith.constant 0 : index
      %c0_23 = arith.constant 0 : index
      %37 = vector.load %arg22[%c0_22, %c0_23] : memref<8x128xf32, #tpu.memory_space<vmem>>, vector<8x128xf32>
      tpu.vector_store %arg22[%c0_22, %c0_23], %36 {strides = array<i32>} : memref<8x128xf32, #tpu.memory_space<vmem>>, vector<8x128xf32>,
    } else {
    }
    %c0 = arith.constant 0 : index
    %c0_1 = arith.constant 0 : index
    %c0_2 = arith.constant 0 : index
    %3 = vector.load %arg1[%c0, %c0_1, %c0_2] : memref<2x64x36xbf16, #tpu.memory_space<vmem>>, vector<2x64x36xbf16>
    %4 = vector.shape_cast %3 : vector<2x64x36xbf16> to vector<128x36xbf16>
    %c0_3 = arith.constant 0 : index
    %c0_4 = arith.constant 0 : index
    %5 = vector.load %arg2[%c0_3, %c0_4] : memref<36x128xbf16, #tpu.memory_space<vmem>>, vector<36x128xbf16>
    %cst = arith.constant dense<0.000000e+00> : vector<128x128xf32>
    %6 = tpu.matmul %4, %5, %cst {dimension_numbers = #tpu.dot_dimension_numbers<[1], [0], [0], [1], [0, 0, 1, 1], [], []>} : vector<128x36xbf16>, vector<36x128xbf16>, vector<128x128xf32> -> vector<128x128xf32>
    %c0_5 = arith.constant 0 : index
    %c0_6 = arith.constant 0 : index
    %7 = vector.load %arg3[%c0_5, %c0_6] : memref<1x128xf32, #tpu.memory_space<vmem>>, vector<1x128xf32>
    %8 = vector.broadcast %7 : vector<1x128xf32> to vector<128x128xf32>
    %9 = arith.addf %6, %8 : vector<128x128xf32>
    %10 = arith.negf %9 : vector<128x128xf32>
    %11 = math.exp %10 : vector<128x128xf32>
    %cst_7 = arith.constant 1.000000e+00 : f32
    %12 = vector.broadcast %cst_7 : f32 to vector<128x128xf32>
    %13 = arith.addf %12, %11 : vector<128x128xf32>
    %14 = arith.divf %12, %13 : vector<128x128xf32>
    %15 = arith.mulf %9, %14 : vector<128x128xf32>
    %16 = arith.truncf %15 : vector<128x128xf32> to vector<128x128xbf16>
    %c0_8 = arith.constant 0 : index
    %c0_9 = arith.constant 0 : index
    %17 = vector.load %arg4[%c0_8, %c0_9] : memref<128x128xbf16, #tpu.memory_space<vmem>>, vector<128x128xbf16>
    %cst_10 = arith.constant dense<0.000000e+00> : vector<128x128xf32>
    %18 = tpu.matmul %16, %17, %cst_10 {dimension_numbers = #tpu.dot_dimension_numbers<[1], [0], [0], [1], [0, 0, 1, 1], [], []>} : vector<128x128xbf16>, vector<128x128xbf16>, vector<128x128xf32> -> vector<128x128xf32>
    %c0_11 = arith.constant 0 : index
    %c0_12 = arith.constant 0 : index
    %19 = vector.load %arg5[%c0_11, %c0_12] : memref<1x128xf32, #tpu.memory_space<vmem>>, vector<1x128xf32>
    %20 = vector.broadcast %19 : vector<1x128xf32> to vector<128x128xf32>
    %21 = arith.addf %18, %20 : vector<128x128xf32>
    %22 = arith.negf %21 : vector<128x128xf32>
    %23 = math.exp %22 : vector<128x128xf32>
    %cst_13 = arith.constant 1.000000e+00 : f32
    %24 = vector.broadcast %cst_13 : f32 to vector<128x128xf32>
    %25 = arith.addf %24, %23 : vector<128x128xf32>
    %26 = arith.divf %24, %25 : vector<128x128xf32>
    %27 = arith.mulf %21, %26 : vector<128x128xf32>
    %28 = vector.shape_cast %27 : vector<128x128xf32> to vector<2x64x128xf32>
    %c0_14 = arith.constant 0 : index
    %c0_15 = arith.constant 0 : index
    %29 = vector.load %arg22[%c0_14, %c0_15] : memref<8x128xf32, #tpu.memory_space<vmem>>, vector<2x128xf32>
    %cst_16 = arith.constant dense<0.000000e+00> : vector<2x128xf32>
    %30 = vector.multi_reduction <add>, %28, %cst_16 [1] : vector<2x64x128xf32> to vector<2x128xf32>
    %31 = arith.addf %29, %30 : vector<2x128xf32>
    %c0_17 = arith.constant 0 : index
    %c0_18 = arith.constant 0 : index
    %32 = vector.load %arg22[%c0_17, %c0_18] : memref<8x128xf32, #tpu.memory_space<vmem>>, vector<2x128xf32>
    tpu.vector_store %arg22[%c0_17, %c0_18], %31 {strides = array<i32>} : memref<8x128xf32, #tpu.memory_space<vmem>>, vector<2x128xf32>,
    %c0_i32_19 = arith.constant 0 : i32
    %33 = arith.cmpi eq, %arg0, %c0_i32_19 : i32
    %34 = arith.extui %33 : i1 to i32
    %c0_i32_20 = arith.constant 0 : i32
    %35 = arith.cmpi ne, %34, %c0_i32_20 : i32
    scf.if %35 {
      %c0_21 = arith.constant 0 : index
      %c0_22 = arith.constant 0 : index
      %36 = vector.load %arg22[%c0_21, %c0_22] : memref<8x128xf32, #tpu.memory_space<vmem>>, vector<8x128xf32>
      %cst_23 = arith.constant 1.562500e-02 : f32
      %37 = vector.broadcast %cst_23 : f32 to vector<8x128xf32>
      %38 = arith.mulf %36, %37 : vector<8x128xf32>
      %cst_24 = arith.constant dense<0.000000e+00> : vector<8xf32>
      %39 = vector.multi_reduction <add>, %38, %cst_24 [1] : vector<8x128xf32> to vector<8xf32>
      %40 = vector.shape_cast %39 : vector<8xf32> to vector<8x1xf32>
      %41 = arith.mulf %38, %38 : vector<8x128xf32>
      %cst_25 = arith.constant dense<0.000000e+00> : vector<8xf32>
      %42 = vector.multi_reduction <add>, %41, %cst_25 [1] : vector<8x128xf32> to vector<8xf32>
      %43 = vector.shape_cast %42 : vector<8xf32> to vector<8x1xf32>
      %cst_26 = arith.constant 7.812500e-03 : f32
      %44 = vector.broadcast %cst_26 : f32 to vector<8x1xf32>
      %45 = arith.mulf %40, %44 : vector<8x1xf32>
      %cst_27 = arith.constant 7.812500e-03 : f32
      %46 = vector.broadcast %cst_27 : f32 to vector<8x1xf32>
      %47 = arith.mulf %43, %46 : vector<8x1xf32>
      %48 = arith.mulf %45, %45 : vector<8x1xf32>
      %49 = arith.subf %47, %48 : vector<8x1xf32>
      %50 = vector.broadcast %45 : vector<8x1xf32> to vector<8x128xf32>
      %51 = arith.subf %38, %50 : vector<8x128xf32>
      %cst_28 = arith.constant 9.99999974E-6 : f32
      %52 = vector.broadcast %cst_28 : f32 to vector<8x1xf32>
      %53 = arith.addf %49, %52 : vector<8x1xf32>
      %54 = math.rsqrt %53 : vector<8x1xf32>
      %55 = vector.broadcast %54 : vector<8x1xf32> to vector<8x128xf32>
      %56 = arith.mulf %51, %55 : vector<8x128xf32>
      %c0_29 = arith.constant 0 : index
      %c0_30 = arith.constant 0 : index
      %57 = vector.load %arg6[%c0_29, %c0_30] : memref<1x128xf32, #tpu.memory_space<vmem>>, vector<1x128xf32>
      %58 = vector.broadcast %57 : vector<1x128xf32> to vector<8x128xf32>
      %59 = arith.mulf %56, %58 : vector<8x128xf32>
      %c0_31 = arith.constant 0 : index
      %c0_32 = arith.constant 0 : index
      %60 = vector.load %arg7[%c0_31, %c0_32] : memref<1x128xf32, #tpu.memory_space<vmem>>, vector<1x128xf32>
      %61 = vector.broadcast %60 : vector<1x128xf32> to vector<8x128xf32>
      %62 = arith.addf %59, %61 : vector<8x128xf32>
      %63 = tpu.iota {dimensions = array<i32: 1>} : vector<8x8x128xi32>
      %64 = arith.sitofp %63 : vector<8x8x128xi32> to vector<8x8x128xf32>
      %cst_33 = arith.constant 0.571428597 : f32
      %65 = vector.broadcast %cst_33 : f32 to vector<8x8x128xf32>
      %66 = arith.mulf %64, %65 : vector<8x8x128xf32>
      %cst_34 = arith.constant -2.000000e+00 : f32
      %67 = vector.broadcast %cst_34 : f32 to vector<8x8x128xf32>
      %68 = arith.addf %67, %66 : vector<8x8x128xf32>
      %69 = vector.shape_cast %62 : vector<8x128xf32> to vector<8x1x128xf32>
      %70 = vector.broadcast %69 : vector<8x1x128xf32> to vector<8x8x128xf32>
      %71 = arith.subf %70, %68 : vector<8x8x128xf32>
      %cst_35 = arith.constant 1.750000e+00 : f32
      %72 = vector.broadcast %cst_35 : f32 to vector<8x8x128xf32>
      %73 = arith.mulf %71, %72 : vector<8x8x128xf32>
      %74 = arith.mulf %73, %73 : vector<8x8x128xf32>
      %cst_36 = arith.constant 0.000000e+00 : f32
      %75 = vector.broadcast %cst_36 : f32 to vector<8x8x128xf32>
      %76 = arith.subf %75, %74 : vector<8x8x128xf32>
      %77 = math.exp %76 : vector<8x8x128xf32>
      %78 = vector.shape_cast %77 : vector<8x8x128xf32> to vector<8x1024xf32>
      %79 = arith.negf %38 : vector<8x128xf32>
      %80 = math.exp %79 : vector<8x128xf32>
      %cst_37 = arith.constant 1.000000e+00 : f32
      %81 = vector.broadcast %cst_37 : f32 to vector<8x128xf32>
      %82 = arith.addf %81, %80 : vector<8x128xf32>
      %83 = arith.divf %81, %82 : vector<8x128xf32>
      %84 = arith.mulf %38, %83 : vector<8x128xf32>
      %85 = arith.truncf %84 : vector<8x128xf32> to vector<8x128xbf16>
      %c0_38 = arith.constant 0 : index
      %c0_39 = arith.constant 0 : index
      %86 = vector.load %arg8[%c0_38, %c0_39] : memref<128x128xbf16, #tpu.memory_space<vmem>>, vector<128x128xbf16>
      %cst_40 = arith.constant dense<0.000000e+00> : vector<8x128xf32>
      %87 = tpu.matmul %85, %86, %cst_40 {dimension_numbers = #tpu.dot_dimension_numbers<[1], [0], [0], [1], [0, 0, 1, 1], [], []>} : vector<8x128xbf16>, vector<128x128xbf16>, vector<8x128xf32> -> vector<8x128xf32>
      %c0_41 = arith.constant 0 : index
      %c0_42 = arith.constant 0 : index
      %88 = vector.load %arg9[%c0_41, %c0_42] : memref<1x128xf32, #tpu.memory_space<vmem>>, vector<1x128xf32>
      %89 = vector.broadcast %88 : vector<1x128xf32> to vector<8x128xf32>
      %90 = arith.addf %87, %89 : vector<8x128xf32>
      %91 = arith.truncf %78 : vector<8x1024xf32> to vector<8x1024xbf16>
      %c0_43 = arith.constant 0 : index
      %c0_44 = arith.constant 0 : index
      %92 = vector.load %arg10[%c0_43, %c0_44] : memref<1024x128xbf16, #tpu.memory_space<vmem>>, vector<1024x128xbf16>
      %cst_45 = arith.constant dense<0.000000e+00> : vector<8x128xf32>
      %93 = tpu.matmul %91, %92, %cst_45 {dimension_numbers = #tpu.dot_dimension_numbers<[1], [0], [0], [1], [0, 0, 1, 1], [], []>} : vector<8x1024xbf16>, vector<1024x128xbf16>, vector<8x128xf32> -> vector<8x128xf32>
      %94 = arith.addf %90, %93 : vector<8x128xf32>
      %cst_46 = arith.constant dense<0.000000e+00> : vector<8xf32>
      %95 = vector.multi_reduction <add>, %94, %cst_46 [1] : vector<8x128xf32> to vector<8xf32>
      %96 = vector.shape_cast %95 : vector<8xf32> to vector<8x1xf32>
      %97 = arith.mulf %94, %94 : vector<8x128xf32>
      %cst_47 = arith.constant dense<0.000000e+00> : vector<8xf32>
      %98 = vector.multi_reduction <add>, %97, %cst_47 [1] : vector<8x128xf32> to vector<8xf32>
      %99 = vector.shape_cast %98 : vector<8xf32> to vector<8x1xf32>
      %cst_48 = arith.constant 1.562500e-02 : f32
      %100 = vector.broadcast %cst_48 : f32 to vector<8x1xf32>
      %101 = arith.mulf %96, %100 : vector<8x1xf32>
      %cst_49 = arith.constant 1.562500e-02 : f32
      %102 = vector.broadcast %cst_49 : f32 to vector<8x1xf32>
      %103 = arith.mulf %99, %102 : vector<8x1xf32>
      %104 = arith.mulf %101, %101 : vector<8x1xf32>
      %105 = arith.subf %103, %104 : vector<8x1xf32>
      %106 = vector.broadcast %101 : vector<8x1xf32> to vector<8x128xf32>
      %107 = arith.subf %94, %106 : vector<8x128xf32>
      %cst_50 = arith.constant 9.99999974E-6 : f32
      %108 = vector.broadcast %cst_50 : f32 to vector<8x1xf32>
      %109 = arith.addf %105, %108 : vector<8x1xf32>
      %110 = math.rsqrt %109 : vector<8x1xf32>
      %111 = vector.broadcast %110 : vector<8x1xf32> to vector<8x128xf32>
      %112 = arith.mulf %107, %111 : vector<8x128xf32>
      %c0_51 = arith.constant 0 : index
      %c0_52 = arith.constant 0 : index
      %113 = vector.load %arg11[%c0_51, %c0_52] : memref<1x128xf32, #tpu.memory_space<vmem>>, vector<1x128xf32>
      %114 = vector.broadcast %113 : vector<1x128xf32> to vector<8x128xf32>
      %115 = arith.mulf %112, %114 : vector<8x128xf32>
      %c0_53 = arith.constant 0 : index
      %c0_54 = arith.constant 0 : index
      %116 = vector.load %arg12[%c0_53, %c0_54] : memref<1x128xf32, #tpu.memory_space<vmem>>, vector<1x128xf32>
      %117 = vector.broadcast %116 : vector<1x128xf32> to vector<8x128xf32>
      %118 = arith.addf %115, %117 : vector<8x128xf32>
      %119 = tpu.iota {dimensions = array<i32: 1>} : vector<8x8x128xi32>
      %120 = arith.sitofp %119 : vector<8x8x128xi32> to vector<8x8x128xf32>
      %cst_55 = arith.constant 0.571428597 : f32
      %121 = vector.broadcast %cst_55 : f32 to vector<8x8x128xf32>
      %122 = arith.mulf %120, %121 : vector<8x8x128xf32>
      %cst_56 = arith.constant -2.000000e+00 : f32
      %123 = vector.broadcast %cst_56 : f32 to vector<8x8x128xf32>
      %124 = arith.addf %123, %122 : vector<8x8x128xf32>
      %125 = vector.shape_cast %118 : vector<8x128xf32> to vector<8x1x128xf32>
      %126 = vector.broadcast %125 : vector<8x1x128xf32> to vector<8x8x128xf32>
      %127 = arith.subf %126, %124 : vector<8x8x128xf32>
      %cst_57 = arith.constant 1.750000e+00 : f32
      %128 = vector.broadcast %cst_57 : f32 to vector<8x8x128xf32>
      %129 = arith.mulf %127, %128 : vector<8x8x128xf32>
      %130 = arith.mulf %129, %129 : vector<8x8x128xf32>
      %cst_58 = arith.constant 0.000000e+00 : f32
      %131 = vector.broadcast %cst_58 : f32 to vector<8x8x128xf32>
      %132 = arith.subf %131, %130 : vector<8x8x128xf32>
      %133 = math.exp %132 : vector<8x8x128xf32>
      %134 = vector.shape_cast %133 : vector<8x8x128xf32> to vector<8x1024xf32>
      %135 = arith.negf %94 : vector<8x128xf32>
      %136 = math.exp %135 : vector<8x128xf32>
      %cst_59 = arith.constant 1.000000e+00 : f32
      %137 = vector.broadcast %cst_59 : f32 to vector<8x128xf32>
      %138 = arith.addf %137, %136 : vector<8x128xf32>
      %139 = arith.divf %137, %138 : vector<8x128xf32>
      %140 = arith.mulf %94, %139 : vector<8x128xf32>
      %141 = arith.truncf %140 : vector<8x128xf32> to vector<8x128xbf16>
      %c0_60 = arith.constant 0 : index
      %c0_61 = arith.constant 0 : index
      %142 = vector.load %arg13[%c0_60, %c0_61] : memref<128x128xbf16, #tpu.memory_space<vmem>>, vector<128x128xbf16>
      %cst_62 = arith.constant dense<0.000000e+00> : vector<8x128xf32>
      %143 = tpu.matmul %141, %142, %cst_62 {dimension_numbers = #tpu.dot_dimension_numbers<[1], [0], [0], [1], [0, 0, 1, 1], [], []>} : vector<8x128xbf16>, vector<128x128xbf16>, vector<8x128xf32> -> vector<8x128xf32>
      %c0_63 = arith.constant 0 : index
      %c0_64 = arith.constant 0 : index
      %144 = vector.load %arg14[%c0_63, %c0_64] : memref<1x128xf32, #tpu.memory_space<vmem>>, vector<1x128xf32>
      %145 = vector.broadcast %144 : vector<1x128xf32> to vector<8x128xf32>
      %146 = arith.addf %143, %145 : vector<8x128xf32>
      %147 = arith.truncf %134 : vector<8x1024xf32> to vector<8x1024xbf16>
      %c0_65 = arith.constant 0 : index
      %c0_66 = arith.constant 0 : index
      %148 = vector.load %arg15[%c0_65, %c0_66] : memref<1024x128xbf16, #tpu.memory_space<vmem>>, vector<1024x128xbf16>
      %cst_67 = arith.constant dense<0.000000e+00> : vector<8x128xf32>
      %149 = tpu.matmul %147, %148, %cst_67 {dimension_numbers = #tpu.dot_dimension_numbers<[1], [0], [0], [1], [0, 0, 1, 1], [], []>} : vector<8x1024xbf16>, vector<1024x128xbf16>, vector<8x128xf32> -> vector<8x128xf32>
      %150 = arith.addf %146, %149 : vector<8x128xf32>
      %cst_68 = arith.constant dense<0.000000e+00> : vector<8xf32>
      %151 = vector.multi_reduction <add>, %150, %cst_68 [1] : vector<8x128xf32> to vector<8xf32>
      %152 = vector.shape_cast %151 : vector<8xf32> to vector<8x1xf32>
      %153 = arith.mulf %150, %150 : vector<8x128xf32>
      %cst_69 = arith.constant dense<0.000000e+00> : vector<8xf32>
      %154 = vector.multi_reduction <add>, %153, %cst_69 [1] : vector<8x128xf32> to vector<8xf32>
      %155 = vector.shape_cast %154 : vector<8xf32> to vector<8x1xf32>
      %cst_70 = arith.constant 3.125000e-02 : f32
      %156 = vector.broadcast %cst_70 : f32 to vector<8x1xf32>
      %157 = arith.mulf %152, %156 : vector<8x1xf32>
      %cst_71 = arith.constant 3.125000e-02 : f32
      %158 = vector.broadcast %cst_71 : f32 to vector<8x1xf32>
      %159 = arith.mulf %155, %158 : vector<8x1xf32>
      %160 = arith.mulf %157, %157 : vector<8x1xf32>
      %161 = arith.subf %159, %160 : vector<8x1xf32>
      %162 = vector.broadcast %157 : vector<8x1xf32> to vector<8x128xf32>
      %163 = arith.subf %150, %162 : vector<8x128xf32>
      %cst_72 = arith.constant 9.99999974E-6 : f32
      %164 = vector.broadcast %cst_72 : f32 to vector<8x1xf32>
      %165 = arith.addf %161, %164 : vector<8x1xf32>
      %166 = math.rsqrt %165 : vector<8x1xf32>
      %167 = vector.broadcast %166 : vector<8x1xf32> to vector<8x128xf32>
      %168 = arith.mulf %163, %167 : vector<8x128xf32>
      %c0_73 = arith.constant 0 : index
      %c0_74 = arith.constant 0 : index
      %169 = vector.load %arg16[%c0_73, %c0_74] : memref<1x128xf32, #tpu.memory_space<vmem>>, vector<1x128xf32>
      %170 = vector.broadcast %169 : vector<1x128xf32> to vector<8x128xf32>
      %171 = arith.mulf %168, %170 : vector<8x128xf32>
      %c0_75 = arith.constant 0 : index
      %c0_76 = arith.constant 0 : index
      %172 = vector.load %arg17[%c0_75, %c0_76] : memref<1x128xf32, #tpu.memory_space<vmem>>, vector<1x128xf32>
      %173 = vector.broadcast %172 : vector<1x128xf32> to vector<8x128xf32>
      %174 = arith.addf %171, %173 : vector<8x128xf32>
      %175 = tpu.iota {dimensions = array<i32: 1>} : vector<8x8x128xi32>
      %176 = arith.sitofp %175 : vector<8x8x128xi32> to vector<8x8x128xf32>
      %cst_77 = arith.constant 0.571428597 : f32
      %177 = vector.broadcast %cst_77 : f32 to vector<8x8x128xf32>
      %178 = arith.mulf %176, %177 : vector<8x8x128xf32>
      %cst_78 = arith.constant -2.000000e+00 : f32
      %179 = vector.broadcast %cst_78 : f32 to vector<8x8x128xf32>
      %180 = arith.addf %179, %178 : vector<8x8x128xf32>
      %181 = vector.shape_cast %174 : vector<8x128xf32> to vector<8x1x128xf32>
      %182 = vector.broadcast %181 : vector<8x1x128xf32> to vector<8x8x128xf32>
      %183 = arith.subf %182, %180 : vector<8x8x128xf32>
      %cst_79 = arith.constant 1.750000e+00 : f32
      %184 = vector.broadcast %cst_79 : f32 to vector<8x8x128xf32>
      %185 = arith.mulf %183, %184 : vector<8x8x128xf32>
      %186 = arith.mulf %185, %185 : vector<8x8x128xf32>
      %cst_80 = arith.constant 0.000000e+00 : f32
      %187 = vector.broadcast %cst_80 : f32 to vector<8x8x128xf32>
      %188 = arith.subf %187, %186 : vector<8x8x128xf32>
      %189 = math.exp %188 : vector<8x8x128xf32>
      %190 = vector.shape_cast %189 : vector<8x8x128xf32> to vector<8x1024xf32>
      %191 = arith.negf %150 : vector<8x128xf32>
      %192 = math.exp %191 : vector<8x128xf32>
      %cst_81 = arith.constant 1.000000e+00 : f32
      %193 = vector.broadcast %cst_81 : f32 to vector<8x128xf32>
      %194 = arith.addf %193, %192 : vector<8x128xf32>
      %195 = arith.divf %193, %194 : vector<8x128xf32>
      %196 = arith.mulf %150, %195 : vector<8x128xf32>
      %197 = arith.truncf %196 : vector<8x128xf32> to vector<8x128xbf16>
      %c0_82 = arith.constant 0 : index
      %c0_83 = arith.constant 0 : index
      %198 = vector.load %arg18[%c0_82, %c0_83] : memref<128x128xbf16, #tpu.memory_space<vmem>>, vector<128x128xbf16>
      %cst_84 = arith.constant dense<0.000000e+00> : vector<8x128xf32>
      %199 = tpu.matmul %197, %198, %cst_84 {dimension_numbers = #tpu.dot_dimension_numbers<[1], [0], [0], [1], [0, 0, 1, 1], [], []>} : vector<8x128xbf16>, vector<128x128xbf16>, vector<8x128xf32> -> vector<8x128xf32>
      %c0_85 = arith.constant 0 : index
      %c0_86 = arith.constant 0 : index
      %200 = vector.load %arg19[%c0_85, %c0_86] : memref<1x128xf32, #tpu.memory_space<vmem>>, vector<1x128xf32>
      %201 = vector.broadcast %200 : vector<1x128xf32> to vector<8x128xf32>
      %202 = arith.addf %199, %201 : vector<8x128xf32>
      %203 = arith.truncf %190 : vector<8x1024xf32> to vector<8x1024xbf16>
      %c0_87 = arith.constant 0 : index
      %c0_88 = arith.constant 0 : index
      %204 = vector.load %arg20[%c0_87, %c0_88] : memref<1024x128xbf16, #tpu.memory_space<vmem>>, vector<1024x128xbf16>
      %cst_89 = arith.constant dense<0.000000e+00> : vector<8x128xf32>
      %205 = tpu.matmul %203, %204, %cst_89 {dimension_numbers = #tpu.dot_dimension_numbers<[1], [0], [0], [1], [0, 0, 1, 1], [], []>} : vector<8x1024xbf16>, vector<1024x128xbf16>, vector<8x128xf32> -> vector<8x128xf32>
      %206 = arith.addf %202, %205 : vector<8x128xf32>
      %c0_90 = arith.constant 0 : index
      %c0_91 = arith.constant 0 : index
      %207 = vector.load %arg21[%c0_90, %c0_91] : memref<8x128xf32, #tpu.memory_space<vmem>>, vector<8x128xf32>
      tpu.vector_store %arg21[%c0_90, %c0_91], %206 {strides = array<i32>} : memref<8x128xf32, #tpu.memory_space<vmem>>, vector<8x128xf32>,
    } else {
    }
    return
  }
  func.func @transform_0(%arg0: i32) -> (i32, i32, i32) {
    %c0_i32 = arith.constant 0 : i32
    %c0_i32_0 = arith.constant 0 : i32
    %c0_i32_1 = arith.constant 0 : i32
    return %c0_i32, %arg0, %c0_i32_0 : i32, i32, i32
  }
  func.func @transform_1(%arg0: i32) -> (i32, i32) {
    %c0_i32 = arith.constant 0 : i32
    %c0_i32_0 = arith.constant 0 : i32
    %c0_i32_1 = arith.constant 0 : i32
    return %c0_i32, %c0_i32_0 : i32, i32
  }
  func.func @transform_2(%arg0: i32) -> (i32, i32) {
    %c0_i32 = arith.constant 0 : i32
    %c0_i32_0 = arith.constant 0 : i32
    %c0_i32_1 = arith.constant 0 : i32
    return %c0_i32, %c0_i32_0 : i32, i32
  }
  func.func @transform_3(%arg0: i32) -> (i32, i32) {
    %c0_i32 = arith.constant 0 : i32
    %c0_i32_0 = arith.constant 0 : i32
    %c0_i32_1 = arith.constant 0 : i32
    return %c0_i32, %c0_i32_0 : i32, i32
  }
  func.func @transform_4(%arg0: i32) -> (i32, i32) {
    %c0_i32 = arith.constant 0 : i32
    %c0_i32_0 = arith.constant 0 : i32
    %c0_i32_1 = arith.constant 0 : i32
    return %c0_i32, %c0_i32_0 : i32, i32
  }
  func.func @transform_5(%arg0: i32) -> (i32, i32) {
    %c0_i32 = arith.constant 0 : i32
    %c0_i32_0 = arith.constant 0 : i32
    %c0_i32_1 = arith.constant 0 : i32
    return %c0_i32, %c0_i32_0 : i32, i32
  }
  func.func @transform_6(%arg0: i32) -> (i32, i32) {
    %c0_i32 = arith.constant 0 : i32
    %c0_i32_0 = arith.constant 0 : i32
    %c0_i32_1 = arith.constant 0 : i32
    return %c0_i32, %c0_i32_0 : i32, i32
  }
  func.func @transform_7(%arg0: i32) -> (i32, i32) {
    %c0_i32 = arith.constant 0 : i32
    %c0_i32_0 = arith.constant 0 : i32
    %c0_i32_1 = arith.constant 0 : i32
    return %c0_i32, %c0_i32_0 : i32, i32
  }
  func.func @transform_8(%arg0: i32) -> (i32, i32) {
    %c0_i32 = arith.constant 0 : i32
    %c0_i32_0 = arith.constant 0 : i32
    %c0_i32_1 = arith.constant 0 : i32
    return %c0_i32, %c0_i32_0 : i32, i32
  }
  func.func @transform_9(%arg0: i32) -> (i32, i32) {
    %c0_i32 = arith.constant 0 : i32
    %c0_i32_0 = arith.constant 0 : i32
    %c0_i32_1 = arith.constant 0 : i32
    return %c0_i32, %c0_i32_0 : i32, i32
  }
  func.func @transform_10(%arg0: i32) -> (i32, i32) {
    %c0_i32 = arith.constant 0 : i32
    %c0_i32_0 = arith.constant 0 : i32
    %c0_i32_1 = arith.constant 0 : i32
    return %c0_i32, %c0_i32_0 : i32, i32
  }
  func.func @transform_11(%arg0: i32) -> (i32, i32) {
    %c0_i32 = arith.constant 0 : i32
    %c0_i32_0 = arith.constant 0 : i32
    %c0_i32_1 = arith.constant 0 : i32
    return %c0_i32, %c0_i32_0 : i32, i32
  }
  func.func @transform_12(%arg0: i32) -> (i32, i32) {
    %c0_i32 = arith.constant 0 : i32
    %c0_i32_0 = arith.constant 0 : i32
    %c0_i32_1 = arith.constant 0 : i32
    return %c0_i32, %c0_i32_0 : i32, i32
  }
  func.func @transform_13(%arg0: i32) -> (i32, i32) {
    %c0_i32 = arith.constant 0 : i32
    %c0_i32_0 = arith.constant 0 : i32
    %c0_i32_1 = arith.constant 0 : i32
    return %c0_i32, %c0_i32_0 : i32, i32
  }
  func.func @transform_14(%arg0: i32) -> (i32, i32) {
    %c0_i32 = arith.constant 0 : i32
    %c0_i32_0 = arith.constant 0 : i32
    %c0_i32_1 = arith.constant 0 : i32
    return %c0_i32, %c0_i32_0 : i32, i32
  }
  func.func @transform_15(%arg0: i32) -> (i32, i32) {
    %c0_i32 = arith.constant 0 : i32
    %c0_i32_0 = arith.constant 0 : i32
    %c0_i32_1 = arith.constant 0 : i32
    return %c0_i32, %c0_i32_0 : i32, i32
  }
  func.func @transform_16(%arg0: i32) -> (i32, i32) {
    %c0_i32 = arith.constant 0 : i32
    %c0_i32_0 = arith.constant 0 : i32
    %c0_i32_1 = arith.constant 0 : i32
    return %c0_i32, %c0_i32_0 : i32, i32
  }
  func.func @transform_17(%arg0: i32) -> (i32, i32) {
    %c0_i32 = arith.constant 0 : i32
    %c0_i32_0 = arith.constant 0 : i32
    %c0_i32_1 = arith.constant 0 : i32
    return %c0_i32, %c0_i32_0 : i32, i32
  }
  func.func @transform_18(%arg0: i32) -> (i32, i32) {
    %c0_i32 = arith.constant 0 : i32
    %c0_i32_0 = arith.constant 0 : i32
    %c0_i32_1 = arith.constant 0 : i32
    return %c0_i32, %c0_i32_0 : i32, i32
  }
  func.func @transform_19(%arg0: i32) -> (i32, i32) {
    %c0_i32 = arith.constant 0 : i32
    %c0_i32_0 = arith.constant 0 : i32
    %c0_i32_1 = arith.constant 0 : i32
    return %c0_i32, %c0_i32_0 : i32, i32
  }
  func.func @transform_20(%arg0: i32) -> (i32, i32) {
    %c0_i32 = arith.constant 0 : i32
    %c0_i32_0 = arith.constant 0 : i32
    %c0_i32_1 = arith.constant 0 : i32
    return %c0_i32, %c0_i32_0 : i32, i32
  }
}

</mosaic_0001>

<llo_original>
// kernel: forward.1
$region0: #{forward.1}
  #allocation0 [shape = 'u32[]', space=smem, size = 0x4, offset = 0x4, fixed_abs, tag = 'smem constant byte address 0x4 - core index']
  #allocation1 [shape = 'u32[72,128]{1,0:T(1,128)}', space=vmem, size = 0x9000, scoped, tag = 'internal scratch']
  #allocation2 [shape = 'f32[8,128]{1,0:T(8,128)}', space=vmem, size = 0x1000, scoped, tag = 'scratch operand']
  %s0 = inlined_call_operand.vmem [shape: bf16[2,64,36], index: 0, kind: input, shape index: {}]
  %s1 = inlined_call_operand.vmem [shape: bf16[36,128], index: 1, kind: input, shape index: {}]
  %s2 = inlined_call_operand.vmem [shape: f32[1,128], index: 2, kind: input, shape index: {}]
  %s3 = inlined_call_operand.vmem [shape: bf16[128,128], index: 3, kind: input, shape index: {}]
  %s4 = inlined_call_operand.vmem [shape: f32[1,128], index: 4, kind: input, shape index: {}]
  %s5 = inlined_call_operand.vmem [shape: f32[1,128], index: 5, kind: input, shape index: {}]
  %s6 = inlined_call_operand.vmem [shape: f32[1,128], index: 6, kind: input, shape index: {}]
  %s7 = inlined_call_operand.vmem [shape: bf16[128,128], index: 7, kind: input, shape index: {}]
  %s8 = inlined_call_operand.vmem [shape: f32[1,128], index: 8, kind: input, shape index: {}]
  %s9 = inlined_call_operand.vmem [shape: bf16[1024,128], index: 9, kind: input, shape index: {}]
  %s10 = inlined_call_operand.vmem [shape: f32[1,128], index: 10, kind: input, shape index: {}]
  %s11 = inlined_call_operand.vmem [shape: f32[1,128], index: 11, kind: input, shape index: {}]
  %s12 = inlined_call_operand.vmem [shape: bf16[128,128], index: 12, kind: input, shape index: {}]
  %s13 = inlined_call_operand.vmem [shape: f32[1,128], index: 13, kind: input, shape index: {}]
  %s14 = inlined_call_operand.vmem [shape: bf16[1024,128], index: 14, kind: input, shape index: {}]
  %s15 = inlined_call_operand.vmem [shape: f32[1,128], index: 15, kind: input, shape index: {}]
  %s16 = inlined_call_operand.vmem [shape: f32[1,128], index: 16, kind: input, shape index: {}]
  %s17 = inlined_call_operand.vmem [shape: bf16[128,128], index: 17, kind: input, shape index: {}]
  %s18 = inlined_call_operand.vmem [shape: f32[1,128], index: 18, kind: input, shape index: {}]
  %s19 = inlined_call_operand.vmem [shape: bf16[1024,128], index: 19, kind: input, shape index: {}]
  %s20 = inlined_call_operand.vmem [shape: f32[8,128], index: 20, kind: output, shape index: {}]
  %s21 = sld [smem:[#allocation0]]
  $region98: #{forward.1} parent=0
    _
  %s23 = ssub.s32 1, %s21
  %s24 = scalar_select 0, %s23, %s21
  // Predicated region
  $region2: #{forward.1} parent=0 // pred_check
    _
  $region3: #{forward.1} parent=0 // pred_check_branch
    %26 = sbr.rel (0) target = $region5
  $region4: #{forward.1} parent=0 // pred_region
    _
  $region5: #{forward.1} parent=0 // pred_fallthru
    _
  // Predicated region
  $region6: #{forward.1} parent=0 // pred_check
    _
  $region7: #{forward.1} parent=0 // pred_check_branch
    %28 = sbr.rel (0) target = $region9
  $region8: #{forward.1} parent=0 // pred_region
    _
  $region9: #{forward.1} parent=0 // pred_fallthru
    _
  // Predicated region
  $region10: #{forward.1} parent=0 // pred_check
    _
  $region11: #{forward.1} parent=0 // pred_check_branch
    %30 = sbr.rel (0) target = $region13
  $region12: #{forward.1} parent=0 // pred_region
    _
  $region13: #{forward.1} parent=0 // pred_fallthru
    _
  // Predicated region
  $region14: #{forward.1} parent=0 // pred_check
    _
  $region15: #{forward.1} parent=0 // pred_check_branch
    %32 = sbr.rel (0) target = $region17
  $region16: #{forward.1} parent=0 // pred_region
    _
  $region17: #{forward.1} parent=0 // pred_fallthru
    _
  // Predicated region
  $region18: #{forward.1} parent=0 // pred_check
    _
  $region19: #{forward.1} parent=0 // pred_check_branch
    %34 = sbr.rel (0) target = $region21
  $region20: #{forward.1} parent=0 // pred_region
    _
  $region21: #{forward.1} parent=0 // pred_fallthru
    _
  // Predicated region
  $region22: #{forward.1} parent=0 // pred_check
    _
  $region23: #{forward.1} parent=0 // pred_check_branch
    %36 = sbr.rel (0) target = $region25
  $region24: #{forward.1} parent=0 // pred_region
    _
  $region25: #{forward.1} parent=0 // pred_fallthru
    _
  // Predicated region
  $region26: #{forward.1} parent=0 // pred_check
    _
  $region27: #{forward.1} parent=0 // pred_check_branch
    %38 = sbr.rel (0) target = $region29
  $region28: #{forward.1} parent=0 // pred_region
    _
  $region29: #{forward.1} parent=0 // pred_fallthru
    _
  // Predicated region
  $region30: #{forward.1} parent=0 // pred_check
    _
  $region31: #{forward.1} parent=0 // pred_check_branch
    %40 = sbr.rel (0) target = $region33
  $region32: #{forward.1} parent=0 // pred_region
    _
  $region33: #{forward.1} parent=0 // pred_fallthru
    _
  // Predicated region
  $region34: #{forward.1} parent=0 // pred_check
    _
  $region35: #{forward.1} parent=0 // pred_check_branch
    %42 = sbr.rel (0) target = $region37
  $region36: #{forward.1} parent=0 // pred_region
    _
  $region37: #{forward.1} parent=0 // pred_fallthru
    _
  // Predicated region
  $region38: #{forward.1} parent=0 // pred_check
    _
  $region39: #{forward.1} parent=0 // pred_check_branch
    %44 = sbr.rel (0) target = $region41
  $region40: #{forward.1} parent=0 // pred_region
    _
  $region41: #{forward.1} parent=0 // pred_fallthru
    _
  // Predicated region
  $region42: #{forward.1} parent=0 // pred_check
    _
  $region43: #{forward.1} parent=0 // pred_check_branch
    %46 = sbr.rel (0) target = $region45
  $region44: #{forward.1} parent=0 // pred_region
    _
  $region45: #{forward.1} parent=0 // pred_fallthru
    _
  // Predicated region
  $region46: #{forward.1} parent=0 // pred_check
    _
  $region47: #{forward.1} parent=0 // pred_check_branch
    %48 = sbr.rel (0) target = $region49
  $region48: #{forward.1} parent=0 // pred_region
    _
  $region49: #{forward.1} parent=0 // pred_fallthru
    _
  // Predicated region
  $region50: #{forward.1} parent=0 // pred_check
    _
  $region51: #{forward.1} parent=0 // pred_check_branch
    %50 = sbr.rel (0) target = $region53
  $region52: #{forward.1} parent=0 // pred_region
    _
  $region53: #{forward.1} parent=0 // pred_fallthru
    _
  // Predicated region
  $region54: #{forward.1} parent=0 // pred_check
    _
  $region55: #{forward.1} parent=0 // pred_check_branch
    %52 = sbr.rel (0) target = $region57
  $region56: #{forward.1} parent=0 // pred_region
    _
  $region57: #{forward.1} parent=0 // pred_fallthru
    _
  // Predicated region
  $region58: #{forward.1} parent=0 // pred_check
    _
  $region59: #{forward.1} parent=0 // pred_check_branch
    %54 = sbr.rel (0) target = $region61
  $region60: #{forward.1} parent=0 // pred_region
    _
  $region61: #{forward.1} parent=0 // pred_fallthru
    _
  // Predicated region
  $region62: #{forward.1} parent=0 // pred_check
    _
  $region63: #{forward.1} parent=0 // pred_check_branch
    %56 = sbr.rel (0) target = $region65
  $region64: #{forward.1} parent=0 // pred_region
    _
  $region65: #{forward.1} parent=0 // pred_fallthru
    _
  // Predicated region
  $region66: #{forward.1} parent=0 // pred_check
    _
  $region67: #{forward.1} parent=0 // pred_check_branch
    %58 = sbr.rel (0) target = $region69
  $region68: #{forward.1} parent=0 // pred_region
    _
  $region69: #{forward.1} parent=0 // pred_fallthru
    _
  // Predicated region
  $region70: #{forward.1} parent=0 // pred_check
    _
  $region71: #{forward.1} parent=0 // pred_check_branch
    %60 = sbr.rel (0) target = $region73
  $region72: #{forward.1} parent=0 // pred_region
    _
  $region73: #{forward.1} parent=0 // pred_fallthru
    _
  // Predicated region
  $region74: #{forward.1} parent=0 // pred_check
    _
  $region75: #{forward.1} parent=0 // pred_check_branch
    %62 = sbr.rel (0) target = $region77
  $region76: #{forward.1} parent=0 // pred_region
    _
  $region77: #{forward.1} parent=0 // pred_fallthru
    _
  // Predicated region
  $region78: #{forward.1} parent=0 // pred_check
    _
  $region79: #{forward.1} parent=0 // pred_check_branch
    %64 = sbr.rel (0) target = $region81
  $region80: #{forward.1} parent=0 // pred_region
    _
  $region81: #{forward.1} parent=0 // pred_fallthru
    _
  %p66 = scmp.eq.s32.totalorder 0, 0
  // Predicated region
  $region82: #{forward.1} parent=0 // pred_check
    %p67 = pneg %p66
  $region83: #{forward.1} parent=0 // pred_check_branch
    %69 = sbr.rel (%p67) target = $region85
  $region84: #{forward.1} parent=0 // pred_region
    %70 = vst [vmem:[#allocation2] sm:$0xff] 0.0
  $region85: #{forward.1} parent=0 // pred_fallthru
    _
  %v71 = vld [vmem:[%s0] sm:$0xf]
  %v72 = vld [vmem:[%s0 + $0x4] sm:$0xf]
  %v73 = vld [vmem:[%s0 + $0x8] sm:$0xf]
  %v74 = vld [vmem:[%s0 + $0xc] sm:$0xf]
  %v75 = vld [vmem:[%s0 + $0x10] sm:$0xf]
  %v76 = vld [vmem:[%s0 + $0x14] sm:$0xf]
  %v77 = vld [vmem:[%s0 + $0x18] sm:$0xf]
  %v78 = vld [vmem:[%s0 + $0x1c] sm:$0xf]
  %v79 = vld [vmem:[%s0 + $0x20] sm:$0xf]
  %v80 = vld [vmem:[%s0 + $0x24] sm:$0xf]
  %v81 = vld [vmem:[%s0 + $0x28] sm:$0xf]
  %v82 = vld [vmem:[%s0 + $0x2c] sm:$0xf]
  %v83 = vld [vmem:[%s0 + $0x30] sm:$0xf]
  %v84 = vld [vmem:[%s0 + $0x34] sm:$0xf]
  %v85 = vld [vmem:[%s0 + $0x38] sm:$0xf]
  %v86 = vld [vmem:[%s0 + $0x3c] sm:$0xf]
  %v87 = vld [vmem:[%s1] sm:$0xf]
  %v88 = vld [vmem:[%s1 + $0x4] sm:$0xf]
  %v89 = vld [vmem:[%s1 + $0x8] sm:$0xf]
  %v90 = vld [vmem:[%s1 + $0xc] sm:$0xf]
  %v91 = vld [vmem:[%s1 + $0x10] sm:$0x3]
  %v92 = vld [vmem:[%s2] sm:$0x1]
  %v94 = vperm.slane %v92, 0
  %v112 = vunpack.c.l.b16 %v71
  %v113 = vunpack.c.l.b16 %v72
  %v114 = vunpack.c.l.b16 %v73
  %v115 = vunpack.c.l.b16 %v74
  %v116 = vunpack.c.l.b16 %v75
  %v117 = vunpack.c.l.b16 %v76
  %v118 = vunpack.c.l.b16 %v77
  %v119 = vunpack.c.l.b16 %v78
  %v120 = vunpack.c.l.b16 %v79
  %v121 = vunpack.c.l.b16 %v80
  %v122 = vunpack.c.l.b16 %v81
  %v123 = vunpack.c.l.b16 %v82
  %v124 = vunpack.c.l.b16 %v83
  %v125 = vunpack.c.l.b16 %v84
  %v126 = vunpack.c.l.b16 %v85
  %v127 = vunpack.c.l.b16 %v86
  %v128 = vpack.c.b16 %v113, %v112
  %v129 = vpack.c.b16 %v115, %v114
  %v130 = vpack.c.b16 %v117, %v116
  %v131 = vpack.c.b16 %v119, %v118
  %v132 = vpack.c.b16 %v121, %v120
  %v133 = vpack.c.b16 %v123, %v122
  %v134 = vpack.c.b16 %v125, %v124
  %v135 = vpack.c.b16 %v127, %v126
  %v141 = vunpack.c.l.b16 %v87
  %v142 = vunpack.c.l.b16 %v88
  %v143 = vunpack.c.l.b16 %v89
  %v144 = vunpack.c.l.b16 %v90
  %v145 = vunpack.c.l.b16 %v91
  %v146 = vpack.c.b16 %v142, %v141
  %v147 = vpack.c.b16 %v144, %v143
  %v148 = vpack.c.b16 %v145, %v145
  %vm151 = vcmask 293888
  %v153 = vsel %vm151, %v128, 0
  %v156 = vsel %vm151, %v129, 0
  %v159 = vsel %vm151, %v130, 0
  %v162 = vsel %vm151, %v131, 0
  %v165 = vsel %vm151, %v132, 0
  %v168 = vsel %vm151, %v133, 0
  %v171 = vsel %vm151, %v134, 0
  %v174 = vsel %vm151, %v135, 0
  %vm176 = vcmask 1041408
  %v178 = vsel %vm176, %v148, 0
  %180 = vmatpush.bf16.msra.mxu0 0
  %181 = vmatpush.bf16.msra.mxu0 0
  %182 = vmatpush.bf16.msra.mxu0 0
  %183 = vmatpush.bf16.msra.mxu0 0
  %184 = vmatpush.bf16.msra.mxu0 0
  %185 = vmatpush.bf16.msra.mxu0 %v178
  %186 = vmatpush.bf16.msra.mxu0 %v147
  %187 = vmatpush.bf16.msra.mxu0 %v146
  %188 = vmatmul.bf16.gmra.mxu0 %v153
  %v189 = vpop.f32.mrf.mxu0
  %v190 = vadd.f32 %v94, %v189
  %v191 = vpop.f32.mrf.mxu0
  %v192 = vadd.f32 %v94, %v191
  %193 = vmatmul.bf16.gmra.mxu0 %v156
  %v194 = vpop.f32.mrf.mxu0
  %v195 = vadd.f32 %v94, %v194
  %v196 = vpop.f32.mrf.mxu0
  %v197 = vadd.f32 %v94, %v196
  %198 = vmatmul.bf16.gmra.mxu0 %v159
  %v199 = vpop.f32.mrf.mxu0
  %v200 = vadd.f32 %v94, %v199
  %v201 = vpop.f32.mrf.mxu0
  %v202 = vadd.f32 %v94, %v201
  %203 = vmatmul.bf16.gmra.mxu0 %v162
  %v204 = vpop.f32.mrf.mxu0
  %v205 = vadd.f32 %v94, %v204
  %v206 = vpop.f32.mrf.mxu0
  %v207 = vadd.f32 %v94, %v206
  %208 = vmatmul.bf16.gmra.mxu0 %v165
  %v209 = vpop.f32.mrf.mxu0
  %v210 = vadd.f32 %v94, %v209
  %v211 = vpop.f32.mrf.mxu0
  %v212 = vadd.f32 %v94, %v211
  %213 = vmatmul.bf16.gmra.mxu0 %v168
  %v214 = vpop.f32.mrf.mxu0
  %v215 = vadd.f32 %v94, %v214
  %v216 = vpop.f32.mrf.mxu0
  %v217 = vadd.f32 %v94, %v216
  %218 = vmatmul.bf16.gmra.mxu0 %v171
  %v219 = vpop.f32.mrf.mxu0
  %v220 = vadd.f32 %v94, %v219
  %v221 = vpop.f32.mrf.mxu0
  %v222 = vadd.f32 %v94, %v221
  %223 = vmatmul.bf16.gmra.mxu0 %v174
  %v224 = vpop.f32.mrf.mxu0
  %v225 = vadd.f32 %v94, %v224
  %v226 = vpop.f32.mrf.mxu0
  %v227 = vadd.f32 %v94, %v226
  %228 = vdwg.mxu0
  %v229 = vxor.u32 %v190, 2147483648
  %v230 = vxor.u32 %v192, 2147483648
  %v231 = vxor.u32 %v195, 2147483648
  %v232 = vxor.u32 %v197, 2147483648
  %v233 = vxor.u32 %v200, 2147483648
  %v234 = vxor.u32 %v202, 2147483648
  %v235 = vxor.u32 %v205, 2147483648
  %v236 = vxor.u32 %v207, 2147483648
  %v237 = vxor.u32 %v210, 2147483648
  %v238 = vxor.u32 %v212, 2147483648
  %v239 = vxor.u32 %v215, 2147483648
  %v240 = vxor.u32 %v217, 2147483648
  %v241 = vxor.u32 %v220, 2147483648
  %v242 = vxor.u32 %v222, 2147483648
  %v243 = vxor.u32 %v225, 2147483648
  %v244 = vxor.u32 %v227, 2147483648
  %v245 = vmul.f32 %v229, 1.442695
  %v246 = vpow.pop %v245
  %v247 = vmul.f32 %v230, 1.442695
  %v248 = vpow.pop %v247
  %v249 = vmul.f32 %v231, 1.442695
  %v250 = vpow.pop %v249
  %v251 = vmul.f32 %v232, 1.442695
  %v252 = vpow.pop %v251
  %v253 = vmul.f32 %v233, 1.442695
  %v254 = vpow.pop %v253
  %v255 = vmul.f32 %v234, 1.442695
  %v256 = vpow.pop %v255
  %v257 = vmul.f32 %v235, 1.442695
  %v258 = vpow.pop %v257
  %v259 = vmul.f32 %v236, 1.442695
  %v260 = vpow.pop %v259
  %v261 = vmul.f32 %v237, 1.442695
  %v262 = vpow.pop %v261
  %v263 = vmul.f32 %v238, 1.442695
  %v264 = vpow.pop %v263
  %v265 = vmul.f32 %v239, 1.442695
  %v266 = vpow.pop %v265
  %v267 = vmul.f32 %v240, 1.442695
  %v268 = vpow.pop %v267
  %v269 = vmul.f32 %v241, 1.442695
  %v270 = vpow.pop %v269
  %v271 = vmul.f32 %v242, 1.442695
  %v272 = vpow.pop %v271
  %v273 = vmul.f32 %v243, 1.442695
  %v274 = vpow.pop %v273
  %v275 = vmul.f32 %v244, 1.442695
  %v276 = vpow.pop %v275
  %v277 = vadd.f32 %v246, 1.0
  %v278 = vadd.f32 %v248, 1.0
  %v279 = vadd.f32 %v250, 1.0
  %v280 = vadd.f32 %v252, 1.0
  %v281 = vadd.f32 %v254, 1.0
  %v282 = vadd.f32 %v256, 1.0
  %v283 = vadd.f32 %v258, 1.0
  %v284 = vadd.f32 %v260, 1.0
  %v285 = vadd.f32 %v262, 1.0
  %v286 = vadd.f32 %v264, 1.0
  %v287 = vadd.f32 %v266, 1.0
  %v288 = vadd.f32 %v268, 1.0
  %v289 = vadd.f32 %v270, 1.0
  %v290 = vadd.f32 %v272, 1.0
  %v291 = vadd.f32 %v274, 1.0
  %v292 = vadd.f32 %v276, 1.0
  %v293 = vrcp.pop %v277
  %v294 = vmul.f32 %v277, %v293
  %v295 = vsub.f32 1.0, %v294
  %v296 = vmul.f32 %v293, %v295
  %v297 = vadd.f32 %v293, %v296
  %vm298 = vweird.f32 %v277
  %vm299 = vweird.f32 %v293
  %vm300 = vmor %vm298, %vm299
  %v301 = vsel %vm300, %v293, %v297
  %v302 = vand.u32 2147483647, %v277
  %vm303 = vcmp.eq.f32.partialorder %v302, 8.507059e+37
  %v304 = vand.u32 %v277, 2147483648
  %v305 = vor.u32 1.1754944e-38, %v304
  %v306 = vsel %vm303, %v305, %v301
  %v307 = vmul.f32 1.0, %v306
  %v308 = vrcp.pop %v278
  %v309 = vmul.f32 %v278, %v308
  %v310 = vsub.f32 1.0, %v309
  %v311 = vmul.f32 %v308, %v310
  %v312 = vadd.f32 %v308, %v311
  %vm313 = vweird.f32 %v278
  %vm314 = vweird.f32 %v308
  %vm315 = vmor %vm313, %vm314
  %v316 = vsel %vm315, %v308, %v312
  %v317 = vand.u32 2147483647, %v278
  %vm318 = vcmp.eq.f32.partialorder %v317, 8.507059e+37
  %v319 = vand.u32 %v278, 2147483648
  %v320 = vor.u32 1.1754944e-38, %v319
  %v321 = vsel %vm318, %v320, %v316
  %v322 = vmul.f32 1.0, %v321
  %v323 = vrcp.pop %v279
  %v324 = vmul.f32 %v279, %v323
  %v325 = vsub.f32 1.0, %v324
  %v326 = vmul.f32 %v323, %v325
  %v327 = vadd.f32 %v323, %v326
  %vm328 = vweird.f32 %v279
  %vm329 = vweird.f32 %v323
  %vm330 = vmor %vm328, %vm329
  %v331 = vsel %vm330, %v323, %v327
  %v332 = vand.u32 2147483647, %v279
  %vm333 = vcmp.eq.f32.partialorder %v332, 8.507059e+37
  %v334 = vand.u32 %v279, 2147483648
  %v335 = vor.u32 1.1754944e-38, %v334
  %v336 = vsel %vm333, %v335, %v331
  %v337 = vmul.f32 1.0, %v336
  %v338 = vrcp.pop %v280
  %v339 = vmul.f32 %v280, %v338
  %v340 = vsub.f32 1.0, %v339
  %v341 = vmul.f32 %v338, %v340
  %v342 = vadd.f32 %v338, %v341
  %vm343 = vweird.f32 %v280
  %vm344 = vweird.f32 %v338
  %vm345 = vmor %vm343, %vm344
  %v346 = vsel %vm345, %v338, %v342
  %v347 = vand.u32 2147483647, %v280
  %vm348 = vcmp.eq.f32.partialorder %v347, 8.507059e+37
  %v349 = vand.u32 %v280, 2147483648
  %v350 = vor.u32 1.1754944e-38, %v349
  %v351 = vsel %vm348, %v350, %v346
  %v352 = vmul.f32 1.0, %v351
  %v353 = vrcp.pop %v281
  %v354 = vmul.f32 %v281, %v353
  %v355 = vsub.f32 1.0, %v354
  %v356 = vmul.f32 %v353, %v355
  %v357 = vadd.f32 %v353, %v356
  %vm358 = vweird.f32 %v281
  %vm359 = vweird.f32 %v353
  %vm360 = vmor %vm358, %vm359
  %v361 = vsel %vm360, %v353, %v357
  %v362 = vand.u32 2147483647, %v281
  %vm363 = vcmp.eq.f32.partialorder %v362, 8.507059e+37
  %v364 = vand.u32 %v281, 2147483648
  %v365 = vor.u32 1.1754944e-38, %v364
  %v366 = vsel %vm363, %v365, %v361
  %v367 = vmul.f32 1.0, %v366
  %v368 = vrcp.pop %v282
  %v369 = vmul.f32 %v282, %v368
  %v370 = vsub.f32 1.0, %v369
  %v371 = vmul.f32 %v368, %v370
  %v372 = vadd.f32 %v368, %v371
  %vm373 = vweird.f32 %v282
  %vm374 = vweird.f32 %v368
  %vm375 = vmor %vm373, %vm374
  %v376 = vsel %vm375, %v368, %v372
  %v377 = vand.u32 2147483647, %v282
  %vm378 = vcmp.eq.f32.partialorder %v377, 8.507059e+37
  %v379 = vand.u32 %v282, 2147483648
  %v380 = vor.u32 1.1754944e-38, %v379
  %v381 = vsel %vm378, %v380, %v376
  %v382 = vmul.f32 1.0, %v381
  %v383 = vrcp.pop %v283
  %v384 = vmul.f32 %v283, %v383
  %v385 = vsub.f32 1.0, %v384
  %v386 = vmul.f32 %v383, %v385
  %v387 = vadd.f32 %v383, %v386
  %vm388 = vweird.f32 %v283
  %vm389 = vweird.f32 %v383
  %vm390 = vmor %vm388, %vm389
  %v391 = vsel %vm390, %v383, %v387
  %v392 = vand.u32 2147483647, %v283
  %vm393 = vcmp.eq.f32.partialorder %v392, 8.507059e+37
  %v394 = vand.u32 %v283, 2147483648
  %v395 = vor.u32 1.1754944e-38, %v394
  %v396 = vsel %vm393, %v395, %v391
  %v397 = vmul.f32 1.0, %v396
  %v398 = vrcp.pop %v284
  %v399 = vmul.f32 %v284, %v398
  %v400 = vsub.f32 1.0, %v399
  %v401 = vmul.f32 %v398, %v400
  %v402 = vadd.f32 %v398, %v401
  %vm403 = vweird.f32 %v284
  %vm404 = vweird.f32 %v398
  %vm405 = vmor %vm403, %vm404
  %v406 = vsel %vm405, %v398, %v402
  %v407 = vand.u32 2147483647, %v284
  %vm408 = vcmp.eq.f32.partialorder %v407, 8.507059e+37
  %v409 = vand.u32 %v284, 2147483648
  %v410 = vor.u32 1.1754944e-38, %v409
  %v411 = vsel %vm408, %v410, %v406
  %v412 = vmul.f32 1.0, %v411
  %v413 = vrcp.pop %v285
  %v414 = vmul.f32 %v285, %v413
  %v415 = vsub.f32 1.0, %v414
  %v416 = vmul.f32 %v413, %v415
  %v417 = vadd.f32 %v413, %v416
  %vm418 = vweird.f32 %v285
  %vm419 = vweird.f32 %v413
  %vm420 = vmor %vm418, %vm419
  %v421 = vsel %vm420, %v413, %v417
  %v422 = vand.u32 2147483647, %v285
  %vm423 = vcmp.eq.f32.partialorder %v422, 8.507059e+37
  %v424 = vand.u32 %v285, 2147483648
  %v425 = vor.u32 1.1754944e-38, %v424
  %v426 = vsel %vm423, %v425, %v421
  %v427 = vmul.f32 1.0, %v426
  %v428 = vrcp.pop %v286
  %v429 = vmul.f32 %v286, %v428
  %v430 = vsub.f32 1.0, %v429
  %v431 = vmul.f32 %v428, %v430
  %v432 = vadd.f32 %v428, %v431
  %vm433 = vweird.f32 %v286
  %vm434 = vweird.f32 %v428
  %vm435 = vmor %vm433, %vm434
  %v436 = vsel %vm435, %v428, %v432
  %v437 = vand.u32 2147483647, %v286
  %vm438 = vcmp.eq.f32.partialorder %v437, 8.507059e+37
  %v439 = vand.u32 %v286, 2147483648
  %v440 = vor.u32 1.1754944e-38, %v439
  %v441 = vsel %vm438, %v440, %v436
  %v442 = vmul.f32 1.0, %v441
  %v443 = vrcp.pop %v287
  %v444 = vmul.f32 %v287, %v443
  %v445 = vsub.f32 1.0, %v444
  %v446 = vmul.f32 %v443, %v445
  %v447 = vadd.f32 %v443, %v446
  %vm448 = vweird.f32 %v287
  %vm449 = vweird.f32 %v443
  %vm450 = vmor %vm448, %vm449
  %v451 = vsel %vm450, %v443, %v447
  %v452 = vand.u32 2147483647, %v287
  %vm453 = vcmp.eq.f32.partialorder %v452, 8.507059e+37
  %v454 = vand.u32 %v287, 2147483648
  %v455 = vor.u32 1.1754944e-38, %v454
  %v456 = vsel %vm453, %v455, %v451
  %v457 = vmul.f32 1.0, %v456
  %v458 = vrcp.pop %v288
  %v459 = vmul.f32 %v288, %v458
  %v460 = vsub.f32 1.0, %v459
  %v461 = vmul.f32 %v458, %v460
  %v462 = vadd.f32 %v458, %v461
  %vm463 = vweird.f32 %v288
  %vm464 = vweird.f32 %v458
  %vm465 = vmor %vm463, %vm464
  %v466 = vsel %vm465, %v458, %v462
  %v467 = vand.u32 2147483647, %v288
  %vm468 = vcmp.eq.f32.partialorder %v467, 8.507059e+37
  %v469 = vand.u32 %v288, 2147483648
  %v470 = vor.u32 1.1754944e-38, %v469
  %v471 = vsel %vm468, %v470, %v466
  %v472 = vmul.f32 1.0, %v471
  %v473 = vrcp.pop %v289
  %v474 = vmul.f32 %v289, %v473
  %v475 = vsub.f32 1.0, %v474
  %v476 = vmul.f32 %v473, %v475
  %v477 = vadd.f32 %v473, %v476
  %vm478 = vweird.f32 %v289
  %vm479 = vweird.f32 %v473
  %vm480 = vmor %vm478, %vm479
  %v481 = vsel %vm480, %v473, %v477
  %v482 = vand.u32 2147483647, %v289
  %vm483 = vcmp.eq.f32.partialorder %v482, 8.507059e+37
  %v484 = vand.u32 %v289, 2147483648
  %v485 = vor.u32 1.1754944e-38, %v484
  %v486 = vsel %vm483, %v485, %v481
  %v487 = vmul.f32 1.0, %v486
  %v488 = vrcp.pop %v290
  %v489 = vmul.f32 %v290, %v488
  %v490 = vsub.f32 1.0, %v489
  %v491 = vmul.f32 %v488, %v490
  %v492 = vadd.f32 %v488, %v491
  %vm493 = vweird.f32 %v290
  %vm494 = vweird.f32 %v488
  %vm495 = vmor %vm493, %vm494
  %v496 = vsel %vm495, %v488, %v492
  %v497 = vand.u32 2147483647, %v290
  %vm498 = vcmp.eq.f32.partialorder %v497, 8.507059e+37
  %v499 = vand.u32 %v290, 2147483648
  %v500 = vor.u32 1.1754944e-38, %v499
  %v501 = vsel %vm498, %v500, %v496
  %v502 = vmul.f32 1.0, %v501
  %v503 = vrcp.pop %v291
  %v504 = vmul.f32 %v291, %v503
  %v505 = vsub.f32 1.0, %v504
  %v506 = vmul.f32 %v503, %v505
  %v507 = vadd.f32 %v503, %v506
  %vm508 = vweird.f32 %v291
  %vm509 = vweird.f32 %v503
  %vm510 = vmor %vm508, %vm509
  %v511 = vsel %vm510, %v503, %v507
  %v512 = vand.u32 2147483647, %v291
  %vm513 = vcmp.eq.f32.partialorder %v512, 8.507059e+37
  %v514 = vand.u32 %v291, 2147483648
  %v515 = vor.u32 1.1754944e-38, %v514
  %v516 = vsel %vm513, %v515, %v511
  %v517 = vmul.f32 1.0, %v516
  %v518 = vrcp.pop %v292
  %v519 = vmul.f32 %v292, %v518
  %v520 = vsub.f32 1.0, %v519
  %v521 = vmul.f32 %v518, %v520
  %v522 = vadd.f32 %v518, %v521
  %vm523 = vweird.f32 %v292
  %vm524 = vweird.f32 %v518
  %vm525 = vmor %vm523, %vm524
  %v526 = vsel %vm525, %v518, %v522
  %v527 = vand.u32 2147483647, %v292
  %vm528 = vcmp.eq.f32.partialorder %v527, 8.507059e+37
  %v529 = vand.u32 %v292, 2147483648
  %v530 = vor.u32 1.1754944e-38, %v529
  %v531 = vsel %vm528, %v530, %v526
  %v532 = vmul.f32 1.0, %v531
  %v533 = vmul.f32 %v190, %v307
  %v534 = vmul.f32 %v192, %v322
  %v535 = vmul.f32 %v195, %v337
  %v536 = vmul.f32 %v197, %v352
  %v537 = vmul.f32 %v200, %v367
  %v538 = vmul.f32 %v202, %v382
  %v539 = vmul.f32 %v205, %v397
  %v540 = vmul.f32 %v207, %v412
  %v541 = vmul.f32 %v210, %v427
  %v542 = vmul.f32 %v212, %v442
  %v543 = vmul.f32 %v215, %v457
  %v544 = vmul.f32 %v217, %v472
  %v545 = vmul.f32 %v220, %v487
  %v546 = vmul.f32 %v222, %v502
  %v547 = vmul.f32 %v225, %v517
  %v548 = vmul.f32 %v227, %v532
  %v549 = vpack.c.bf16 %v534, %v533
  %v550 = vpack.c.bf16 %v536, %v535
  %v551 = vpack.c.bf16 %v538, %v537
  %v552 = vpack.c.bf16 %v540, %v539
  %v553 = vpack.c.bf16 %v542, %v541
  %v554 = vpack.c.bf16 %v544, %v543
  %v555 = vpack.c.bf16 %v546, %v545
  %v556 = vpack.c.bf16 %v548, %v547
  %v557 = vld [vmem:[%s3] sm:$0xf]
  %v558 = vld [vmem:[%s3 + $0x4] sm:$0xf]
  %v559 = vld [vmem:[%s3 + $0x8] sm:$0xf]
  %v560 = vld [vmem:[%s3 + $0xc] sm:$0xf]
  %v561 = vld [vmem:[%s3 + $0x10] sm:$0xf]
  %v562 = vld [vmem:[%s3 + $0x14] sm:$0xf]
  %v563 = vld [vmem:[%s3 + $0x18] sm:$0xf]
  %v564 = vld [vmem:[%s3 + $0x1c] sm:$0xf]
  %v565 = vld [vmem:[%s3 + $0x20] sm:$0xf]
  %v566 = vld [vmem:[%s3 + $0x24] sm:$0xf]
  %v567 = vld [vmem:[%s3 + $0x28] sm:$0xf]
  %v568 = vld [vmem:[%s3 + $0x2c] sm:$0xf]
  %v569 = vld [vmem:[%s3 + $0x30] sm:$0xf]
  %v570 = vld [vmem:[%s3 + $0x34] sm:$0xf]
  %v571 = vld [vmem:[%s3 + $0x38] sm:$0xf]
  %v572 = vld [vmem:[%s3 + $0x3c] sm:$0xf]
  %v573 = vld [vmem:[%s4] sm:$0x1]
  %v575 = vperm.slane %v573, 0
  %v593 = vunpack.c.l.b16 %v557
  %v594 = vunpack.c.l.b16 %v558
  %v595 = vunpack.c.l.b16 %v559
  %v596 = vunpack.c.l.b16 %v560
  %v597 = vunpack.c.l.b16 %v561
  %v598 = vunpack.c.l.b16 %v562
  %v599 = vunpack.c.l.b16 %v563
  %v600 = vunpack.c.l.b16 %v564
  %v601 = vunpack.c.l.b16 %v565
  %v602 = vunpack.c.l.b16 %v566
  %v603 = vunpack.c.l.b16 %v567
  %v604 = vunpack.c.l.b16 %v568
  %v605 = vunpack.c.l.b16 %v569
  %v606 = vunpack.c.l.b16 %v570
  %v607 = vunpack.c.l.b16 %v571
  %v608 = vunpack.c.l.b16 %v572
  %v609 = vpack.c.b16 %v594, %v593
  %v610 = vpack.c.b16 %v596, %v595
  %v611 = vpack.c.b16 %v598, %v597
  %v612 = vpack.c.b16 %v600, %v599
  %v613 = vpack.c.b16 %v602, %v601
  %v614 = vpack.c.b16 %v604, %v603
  %v615 = vpack.c.b16 %v606, %v605
  %v616 = vpack.c.b16 %v608, %v607
  %625 = vmatpush.bf16.msra.mxu0 %v616
  %626 = vmatpush.bf16.msra.mxu0 %v615
  %627 = vmatpush.bf16.msra.mxu0 %v614
  %628 = vmatpush.bf16.msra.mxu0 %v613
  %629 = vmatpush.bf16.msra.mxu0 %v612
  %630 = vmatpush.bf16.msra.mxu0 %v611
  %631 = vmatpush.bf16.msra.mxu0 %v610
  %632 = vmatpush.bf16.msra.mxu0 %v609
  %633 = vmatmul.bf16.gmra.mxu0 %v549
  %v634 = vpop.f32.mrf.mxu0
  %v635 = vadd.f32 %v575, %v634
  %v636 = vpop.f32.mrf.mxu0
  %v637 = vadd.f32 %v575, %v636
  %638 = vmatmul.bf16.gmra.mxu0 %v550
  %v639 = vpop.f32.mrf.mxu0
  %v640 = vadd.f32 %v575, %v639
  %v641 = vpop.f32.mrf.mxu0
  %v642 = vadd.f32 %v575, %v641
  %643 = vmatmul.bf16.gmra.mxu0 %v551
  %v644 = vpop.f32.mrf.mxu0
  %v645 = vadd.f32 %v575, %v644
  %v646 = vpop.f32.mrf.mxu0
  %v647 = vadd.f32 %v575, %v646
  %648 = vmatmul.bf16.gmra.mxu0 %v552
  %v649 = vpop.f32.mrf.mxu0
  %v650 = vadd.f32 %v575, %v649
  %v651 = vpop.f32.mrf.mxu0
  %v652 = vadd.f32 %v575, %v651
  %653 = vmatmul.bf16.gmra.mxu0 %v553
  %v654 = vpop.f32.mrf.mxu0
  %v655 = vadd.f32 %v575, %v654
  %v656 = vpop.f32.mrf.mxu0
  %v657 = vadd.f32 %v575, %v656
  %658 = vmatmul.bf16.gmra.mxu0 %v554
  %v659 = vpop.f32.mrf.mxu0
  %v660 = vadd.f32 %v575, %v659
  %v661 = vpop.f32.mrf.mxu0
  %v662 = vadd.f32 %v575, %v661
  %663 = vmatmul.bf16.gmra.mxu0 %v555
  %v664 = vpop.f32.mrf.mxu0
  %v665 = vadd.f32 %v575, %v664
  %v666 = vpop.f32.mrf.mxu0
  %v667 = vadd.f32 %v575, %v666
  %668 = vmatmul.bf16.gmra.mxu0 %v556
  %v669 = vpop.f32.mrf.mxu0
  %v670 = vadd.f32 %v575, %v669
  %v671 = vpop.f32.mrf.mxu0
  %v672 = vadd.f32 %v575, %v671
  %673 = vdwg.mxu0
  %v674 = vxor.u32 %v635, 2147483648
  %v675 = vxor.u32 %v637, 2147483648
  %v676 = vxor.u32 %v640, 2147483648
  %v677 = vxor.u32 %v642, 2147483648
  %v678 = vxor.u32 %v645, 2147483648
  %v679 = vxor.u32 %v647, 2147483648
  %v680 = vxor.u32 %v650, 2147483648
  %v681 = vxor.u32 %v652, 2147483648
  %v682 = vxor.u32 %v655, 2147483648
  %v683 = vxor.u32 %v657, 2147483648
  %v684 = vxor.u32 %v660, 2147483648
  %v685 = vxor.u32 %v662, 2147483648
  %v686 = vxor.u32 %v665, 2147483648
  %v687 = vxor.u32 %v667, 2147483648
  %v688 = vxor.u32 %v670, 2147483648
  %v689 = vxor.u32 %v672, 2147483648
  %v690 = vmul.f32 %v674, 1.442695
  %v691 = vpow.pop %v690
  %v692 = vmul.f32 %v675, 1.442695
  %v693 = vpow.pop %v692
  %v694 = vmul.f32 %v676, 1.442695
  %v695 = vpow.pop %v694
  %v696 = vmul.f32 %v677, 1.442695
  %v697 = vpow.pop %v696
  %v698 = vmul.f32 %v678, 1.442695
  %v699 = vpow.pop %v698
  %v700 = vmul.f32 %v679, 1.442695
  %v701 = vpow.pop %v700
  %v702 = vmul.f32 %v680, 1.442695
  %v703 = vpow.pop %v702
  %v704 = vmul.f32 %v681, 1.442695
  %v705 = vpow.pop %v704
  %v706 = vmul.f32 %v682, 1.442695
  %v707 = vpow.pop %v706
  %v708 = vmul.f32 %v683, 1.442695
  %v709 = vpow.pop %v708
  %v710 = vmul.f32 %v684, 1.442695
  %v711 = vpow.pop %v710
  %v712 = vmul.f32 %v685, 1.442695
  %v713 = vpow.pop %v712
  %v714 = vmul.f32 %v686, 1.442695
  %v715 = vpow.pop %v714
  %v716 = vmul.f32 %v687, 1.442695
  %v717 = vpow.pop %v716
  %v718 = vmul.f32 %v688, 1.442695
  %v719 = vpow.pop %v718
  %v720 = vmul.f32 %v689, 1.442695
  %v721 = vpow.pop %v720
  %v722 = vadd.f32 %v691, 1.0
  %v723 = vadd.f32 %v693, 1.0
  %v724 = vadd.f32 %v695, 1.0
  %v725 = vadd.f32 %v697, 1.0
  %v726 = vadd.f32 %v699, 1.0
  %v727 = vadd.f32 %v701, 1.0
  %v728 = vadd.f32 %v703, 1.0
  %v729 = vadd.f32 %v705, 1.0
  %v730 = vadd.f32 %v707, 1.0
  %v731 = vadd.f32 %v709, 1.0
  %v732 = vadd.f32 %v711, 1.0
  %v733 = vadd.f32 %v713, 1.0
  %v734 = vadd.f32 %v715, 1.0
  %v735 = vadd.f32 %v717, 1.0
  %v736 = vadd.f32 %v719, 1.0
  %v737 = vadd.f32 %v721, 1.0
  %v738 = vrcp.pop %v722
  %v739 = vmul.f32 %v722, %v738
  %v740 = vsub.f32 1.0, %v739
  %v741 = vmul.f32 %v738, %v740
  %v742 = vadd.f32 %v738, %v741
  %vm743 = vweird.f32 %v722
  %vm744 = vweird.f32 %v738
  %vm745 = vmor %vm743, %vm744
  %v746 = vsel %vm745, %v738, %v742
  %v747 = vand.u32 2147483647, %v722
  %vm748 = vcmp.eq.f32.partialorder %v747, 8.507059e+37
  %v749 = vand.u32 %v722, 2147483648
  %v750 = vor.u32 1.1754944e-38, %v749
  %v751 = vsel %vm748, %v750, %v746
  %v752 = vmul.f32 1.0, %v751
  %v753 = vrcp.pop %v723
  %v754 = vmul.f32 %v723, %v753
  %v755 = vsub.f32 1.0, %v754
  %v756 = vmul.f32 %v753, %v755
  %v757 = vadd.f32 %v753, %v756
  %vm758 = vweird.f32 %v723
  %vm759 = vweird.f32 %v753
  %vm760 = vmor %vm758, %vm759
  %v761 = vsel %vm760, %v753, %v757
  %v762 = vand.u32 2147483647, %v723
  %vm763 = vcmp.eq.f32.partialorder %v762, 8.507059e+37
  %v764 = vand.u32 %v723, 2147483648
  %v765 = vor.u32 1.1754944e-38, %v764
  %v766 = vsel %vm763, %v765, %v761
  %v767 = vmul.f32 1.0, %v766
  %v768 = vrcp.pop %v724
  %v769 = vmul.f32 %v724, %v768
  %v770 = vsub.f32 1.0, %v769
  %v771 = vmul.f32 %v768, %v770
  %v772 = vadd.f32 %v768, %v771
  %vm773 = vweird.f32 %v724
  %vm774 = vweird.f32 %v768
  %vm775 = vmor %vm773, %vm774
  %v776 = vsel %vm775, %v768, %v772
  %v777 = vand.u32 2147483647, %v724
  %vm778 = vcmp.eq.f32.partialorder %v777, 8.507059e+37
  %v779 = vand.u32 %v724, 2147483648
  %v780 = vor.u32 1.1754944e-38, %v779
  %v781 = vsel %vm778, %v780, %v776
  %v782 = vmul.f32 1.0, %v781
  %v783 = vrcp.pop %v725
  %v784 = vmul.f32 %v725, %v783
  %v785 = vsub.f32 1.0, %v784
  %v786 = vmul.f32 %v783, %v785
  %v787 = vadd.f32 %v783, %v786
  %vm788 = vweird.f32 %v725
  %vm789 = vweird.f32 %v783
  %vm790 = vmor %vm788, %vm789
  %v791 = vsel %vm790, %v783, %v787
  %v792 = vand.u32 2147483647, %v725
  %vm793 = vcmp.eq.f32.partialorder %v792, 8.507059e+37
  %v794 = vand.u32 %v725, 2147483648
  %v795 = vor.u32 1.1754944e-38, %v794
  %v796 = vsel %vm793, %v795, %v791
  %v797 = vmul.f32 1.0, %v796
  %v798 = vrcp.pop %v726
  %v799 = vmul.f32 %v726, %v798
  %v800 = vsub.f32 1.0, %v799
  %v801 = vmul.f32 %v798, %v800
  %v802 = vadd.f32 %v798, %v801
  %vm803 = vweird.f32 %v726
  %vm804 = vweird.f32 %v798
  %vm805 = vmor %vm803, %vm804
  %v806 = vsel %vm805, %v798, %v802
  %v807 = vand.u32 2147483647, %v726
  %vm808 = vcmp.eq.f32.partialorder %v807, 8.507059e+37
  %v809 = vand.u32 %v726, 2147483648
  %v810 = vor.u32 1.1754944e-38, %v809
  %v811 = vsel %vm808, %v810, %v806
  %v812 = vmul.f32 1.0, %v811
  %v813 = vrcp.pop %v727
  %v814 = vmul.f32 %v727, %v813
  %v815 = vsub.f32 1.0, %v814
  %v816 = vmul.f32 %v813, %v815
  %v817 = vadd.f32 %v813, %v816
  %vm818 = vweird.f32 %v727
  %vm819 = vweird.f32 %v813
  %vm820 = vmor %vm818, %vm819
  %v821 = vsel %vm820, %v813, %v817
  %v822 = vand.u32 2147483647, %v727
  %vm823 = vcmp.eq.f32.partialorder %v822, 8.507059e+37
  %v824 = vand.u32 %v727, 2147483648
  %v825 = vor.u32 1.1754944e-38, %v824
  %v826 = vsel %vm823, %v825, %v821
  %v827 = vmul.f32 1.0, %v826
  %v828 = vrcp.pop %v728
  %v829 = vmul.f32 %v728, %v828
  %v830 = vsub.f32 1.0, %v829
  %v831 = vmul.f32 %v828, %v830
  %v832 = vadd.f32 %v828, %v831
  %vm833 = vweird.f32 %v728
  %vm834 = vweird.f32 %v828
  %vm835 = vmor %vm833, %vm834
  %v836 = vsel %vm835, %v828, %v832
  %v837 = vand.u32 2147483647, %v728
  %vm838 = vcmp.eq.f32.partialorder %v837, 8.507059e+37
  %v839 = vand.u32 %v728, 2147483648
  %v840 = vor.u32 1.1754944e-38, %v839
  %v841 = vsel %vm838, %v840, %v836
  %v842 = vmul.f32 1.0, %v841
  %v843 = vrcp.pop %v729
  %v844 = vmul.f32 %v729, %v843
  %v845 = vsub.f32 1.0, %v844
  %v846 = vmul.f32 %v843, %v845
  %v847 = vadd.f32 %v843, %v846
  %vm848 = vweird.f32 %v729
  %vm849 = vweird.f32 %v843
  %vm850 = vmor %vm848, %vm849
  %v851 = vsel %vm850, %v843, %v847
  %v852 = vand.u32 2147483647, %v729
  %vm853 = vcmp.eq.f32.partialorder %v852, 8.507059e+37
  %v854 = vand.u32 %v729, 2147483648
  %v855 = vor.u32 1.1754944e-38, %v854
  %v856 = vsel %vm853, %v855, %v851
  %v857 = vmul.f32 1.0, %v856
  %v858 = vrcp.pop %v730
  %v859 = vmul.f32 %v730, %v858
  %v860 = vsub.f32 1.0, %v859
  %v861 = vmul.f32 %v858, %v860
  %v862 = vadd.f32 %v858, %v861
  %vm863 = vweird.f32 %v730
  %vm864 = vweird.f32 %v858
  %vm865 = vmor %vm863, %vm864
  %v866 = vsel %vm865, %v858, %v862
  %v867 = vand.u32 2147483647, %v730
  %vm868 = vcmp.eq.f32.partialorder %v867, 8.507059e+37
  %v869 = vand.u32 %v730, 2147483648
  %v870 = vor.u32 1.1754944e-38, %v869
  %v871 = vsel %vm868, %v870, %v866
  %v872 = vmul.f32 1.0, %v871
  %v873 = vrcp.pop %v731
  %v874 = vmul.f32 %v731, %v873
  %v875 = vsub.f32 1.0, %v874
  %v876 = vmul.f32 %v873, %v875
  %v877 = vadd.f32 %v873, %v876
  %vm878 = vweird.f32 %v731
  %vm879 = vweird.f32 %v873
  %vm880 = vmor %vm878, %vm879
  %v881 = vsel %vm880, %v873, %v877
  %v882 = vand.u32 2147483647, %v731
  %vm883 = vcmp.eq.f32.partialorder %v882, 8.507059e+37
  %v884 = vand.u32 %v731, 2147483648
  %v885 = vor.u32 1.1754944e-38, %v884
  %v886 = vsel %vm883, %v885, %v881
  %v887 = vmul.f32 1.0, %v886
  %v888 = vrcp.pop %v732
  %v889 = vmul.f32 %v732, %v888
  %v890 = vsub.f32 1.0, %v889
  %v891 = vmul.f32 %v888, %v890
  %v892 = vadd.f32 %v888, %v891
  %vm893 = vweird.f32 %v732
  %vm894 = vweird.f32 %v888
  %vm895 = vmor %vm893, %vm894
  %v896 = vsel %vm895, %v888, %v892
  %v897 = vand.u32 2147483647, %v732
  %vm898 = vcmp.eq.f32.partialorder %v897, 8.507059e+37
  %v899 = vand.u32 %v732, 2147483648
  %v900 = vor.u32 1.1754944e-38, %v899
  %v901 = vsel %vm898, %v900, %v896
  %v902 = vmul.f32 1.0, %v901
  %v903 = vrcp.pop %v733
  %v904 = vmul.f32 %v733, %v903
  %v905 = vsub.f32 1.0, %v904
  %v906 = vmul.f32 %v903, %v905
  %v907 = vadd.f32 %v903, %v906
  %vm908 = vweird.f32 %v733
  %vm909 = vweird.f32 %v903
  %vm910 = vmor %vm908, %vm909
  %v911 = vsel %vm910, %v903, %v907
  %v912 = vand.u32 2147483647, %v733
  %vm913 = vcmp.eq.f32.partialorder %v912, 8.507059e+37
  %v914 = vand.u32 %v733, 2147483648
  %v915 = vor.u32 1.1754944e-38, %v914
  %v916 = vsel %vm913, %v915, %v911
  %v917 = vmul.f32 1.0, %v916
  %v918 = vrcp.pop %v734
  %v919 = vmul.f32 %v734, %v918
  %v920 = vsub.f32 1.0, %v919
  %v921 = vmul.f32 %v918, %v920
  %v922 = vadd.f32 %v918, %v921
  %vm923 = vweird.f32 %v734
  %vm924 = vweird.f32 %v918
  %vm925 = vmor %vm923, %vm924
  %v926 = vsel %vm925, %v918, %v922
  %v927 = vand.u32 2147483647, %v734
  %vm928 = vcmp.eq.f32.partialorder %v927, 8.507059e+37
  %v929 = vand.u32 %v734, 2147483648
  %v930 = vor.u32 1.1754944e-38, %v929
  %v931 = vsel %vm928, %v930, %v926
  %v932 = vmul.f32 1.0, %v931
  %v933 = vrcp.pop %v735
  %v934 = vmul.f32 %v735, %v933
  %v935 = vsub.f32 1.0, %v934
  %v936 = vmul.f32 %v933, %v935
  %v937 = vadd.f32 %v933, %v936
  %vm938 = vweird.f32 %v735
  %vm939 = vweird.f32 %v933
  %vm940 = vmor %vm938, %vm939
  %v941 = vsel %vm940, %v933, %v937
  %v942 = vand.u32 2147483647, %v735
  %vm943 = vcmp.eq.f32.partialorder %v942, 8.507059e+37
  %v944 = vand.u32 %v735, 2147483648
  %v945 = vor.u32 1.1754944e-38, %v944
  %v946 = vsel %vm943, %v945, %v941
  %v947 = vmul.f32 1.0, %v946
  %v948 = vrcp.pop %v736
  %v949 = vmul.f32 %v736, %v948
  %v950 = vsub.f32 1.0, %v949
  %v951 = vmul.f32 %v948, %v950
  %v952 = vadd.f32 %v948, %v951
  %vm953 = vweird.f32 %v736
  %vm954 = vweird.f32 %v948
  %vm955 = vmor %vm953, %vm954
  %v956 = vsel %vm955, %v948, %v952
  %v957 = vand.u32 2147483647, %v736
  %vm958 = vcmp.eq.f32.partialorder %v957, 8.507059e+37
  %v959 = vand.u32 %v736, 2147483648
  %v960 = vor.u32 1.1754944e-38, %v959
  %v961 = vsel %vm958, %v960, %v956
  %v962 = vmul.f32 1.0, %v961
  %v963 = vrcp.pop %v737
  %v964 = vmul.f32 %v737, %v963
  %v965 = vsub.f32 1.0, %v964
  %v966 = vmul.f32 %v963, %v965
  %v967 = vadd.f32 %v963, %v966
  %vm968 = vweird.f32 %v737
  %vm969 = vweird.f32 %v963
  %vm970 = vmor %vm968, %vm969
  %v971 = vsel %vm970, %v963, %v967
  %v972 = vand.u32 2147483647, %v737
  %vm973 = vcmp.eq.f32.partialorder %v972, 8.507059e+37
  %v974 = vand.u32 %v737, 2147483648
  %v975 = vor.u32 1.1754944e-38, %v974
  %v976 = vsel %vm973, %v975, %v971
  %v977 = vmul.f32 1.0, %v976
  %v978 = vmul.f32 %v635, %v752
  %v979 = vmul.f32 %v637, %v767
  %v980 = vmul.f32 %v640, %v782
  %v981 = vmul.f32 %v642, %v797
  %v982 = vmul.f32 %v645, %v812
  %v983 = vmul.f32 %v647, %v827
  %v984 = vmul.f32 %v650, %v842
  %v985 = vmul.f32 %v652, %v857
  %v986 = vmul.f32 %v655, %v872
  %v987 = vmul.f32 %v657, %v887
  %v988 = vmul.f32 %v660, %v902
  %v989 = vmul.f32 %v662, %v917
  %v990 = vmul.f32 %v665, %v932
  %v991 = vmul.f32 %v667, %v947
  %v992 = vmul.f32 %v670, %v962
  %v993 = vmul.f32 %v672, %v977
  %v994 = vld [vmem:[#allocation2] sm:$0x3]
  %v995 = vadd.f32 %v978, %v979
  %v996 = vadd.f32 %v995, %v980
  %v997 = vadd.f32 %v996, %v981
  %v998 = vadd.f32 %v997, %v982
  %v999 = vadd.f32 %v998, %v983
  %v1000 = vadd.f32 %v999, %v984
  %v1001 = vadd.f32 %v1000, %v985
  %v1002 = vrot.slane %v1001, 4
  %v1003 = vadd.f32 %v1001, %v1002
  %v1004 = vrot.slane %v1003, 2
  %v1005 = vadd.f32 %v1003, %v1004
  %v1006 = vrot.slane %v1005, 1
  %v1007 = vadd.f32 %v1005, %v1006
  %v1008 = vadd.f32 %v986, %v987
  %v1009 = vadd.f32 %v1008, %v988
  %v1010 = vadd.f32 %v1009, %v989
  %v1011 = vadd.f32 %v1010, %v990
  %v1012 = vadd.f32 %v1011, %v991
  %v1013 = vadd.f32 %v1012, %v992
  %v1014 = vadd.f32 %v1013, %v993
  %v1015 = vrot.slane %v1014, 4
  %v1016 = vadd.f32 %v1014, %v1015
  %v1017 = vrot.slane %v1016, 2
  %v1018 = vadd.f32 %v1016, %v1017
  %v1019 = vrot.slane %v1018, 1
  %v1020 = vadd.f32 %v1018, %v1019
  %vm1023 = vcmask 1041409
  %v1024 = vsel %vm1023, %v1020, %v1007
  %v1026 = vadd.f32 %v994, %v1024
  %1027 = vst [vmem:[#allocation2] sm:$0x3] %v1026
  // Predicated region
  $region86: #{forward.1} parent=0 // pred_check
    %p1028 = pneg %p66
  $region87: #{forward.1} parent=0 // pred_check_branch
    %1030 = sbr.rel (%p1028) target = $region89
  $region88: #{forward.1} parent=0 // pred_region
    %v1031 = vld [vmem:[#allocation2] sm:$0xff]
    %v1032 = vmul.f32 %v1031, 0.015625
    %1033 = vadd.xlane.f32.xlu0 %v1032
    %v1034 = vpop.xlane.xlu0 %1033
    %v1035 = vmul.f32 %v1032, %v1032
    %1036 = vadd.xlane.f32.xlu0 %v1035
    %v1037 = vpop.xlane.xlu0 %1036
    %v1038 = vmul.f32 %v1034, 0.0078125
    %v1039 = vmul.f32 %v1037, 0.0078125
    %v1040 = vmul.f32 %v1038, %v1038
    %v1041 = vsub.f32 %v1039, %v1040
    %v1042 = vsub.f32 %v1032, %v1038
    %v1043 = vadd.f32 %v1041, 1e-05
    %v1044 = vrsqrt.pop %v1043
    %v1045 = vmul.f32 %v1044, %v1043
    %v1046 = vmul.f32 %v1045, %v1044
    %v1047 = vmul.f32 0.5, %v1046
    %v1048 = vsub.f32 1.5, %v1047
    %v1049 = vmul.f32 %v1044, %v1048
    %vm1050 = vweird.f32 %v1043
    %vm1051 = vweird.f32 %v1044
    %vm1052 = vmor %vm1050, %vm1051
    %v1053 = vsel %vm1052, %v1044, %v1049
    %v1054 = vmul.f32 %v1042, %v1053
    %v1055 = vld [vmem:[%s5] sm:$0x1]
    %v1057 = vperm.slane %v1055, 0
    %v1059 = vmul.f32 %v1054, %v1057
    %v1060 = vld [vmem:[%s6] sm:$0x1]
    %v1062 = vperm.slane %v1060, 0
    %v1064 = vadd.f32 %v1059, %v1062
    %v1065 = vlaneseq
    %v1066 = vshrl.u32 %v1065, 7
    %v1067 = vcvt.s32.f32 %v1066
    %v1068 = vmul.f32 %v1067, 0.5714286
    %v1069 = vadd.f32 %v1068, -2.0
    %v1071 = vrot.slane %v1064, 1
    %v1072 = vrot.slane %v1064, 2
    %v1073 = vrot.slane %v1064, 3
    %v1074 = vrot.slane %v1064, 4
    %v1075 = vrot.slane %v1064, 5
    %v1076 = vrot.slane %v1064, 6
    %v1077 = vrot.slane %v1064, 7
    %v1078 = vperm.slane %v1064, 0
    %v1079 = vperm.slane %v1071, 0
    %v1080 = vperm.slane %v1072, 0
    %v1081 = vperm.slane %v1073, 0
    %v1082 = vperm.slane %v1074, 0
    %v1083 = vperm.slane %v1075, 0
    %v1084 = vperm.slane %v1076, 0
    %v1085 = vperm.slane %v1077, 0
    %v1094 = vsub.f32 %v1078, %v1069
    %v1095 = vsub.f32 %v1079, %v1069
    %v1096 = vsub.f32 %v1080, %v1069
    %v1097 = vsub.f32 %v1081, %v1069
    %v1098 = vsub.f32 %v1082, %v1069
    %v1099 = vsub.f32 %v1083, %v1069
    %v1100 = vsub.f32 %v1084, %v1069
    %v1101 = vsub.f32 %v1085, %v1069
    %v1102 = vmul.f32 %v1094, 1.75
    %v1103 = vmul.f32 %v1095, 1.75
    %v1104 = vmul.f32 %v1096, 1.75
    %v1105 = vmul.f32 %v1097, 1.75
    %v1106 = vmul.f32 %v1098, 1.75
    %v1107 = vmul.f32 %v1099, 1.75
    %v1108 = vmul.f32 %v1100, 1.75
    %v1109 = vmul.f32 %v1101, 1.75
    %v1110 = vmul.f32 %v1102, %v1102
    %v1111 = vmul.f32 %v1103, %v1103
    %v1112 = vmul.f32 %v1104, %v1104
    %v1113 = vmul.f32 %v1105, %v1105
    %v1114 = vmul.f32 %v1106, %v1106
    %v1115 = vmul.f32 %v1107, %v1107
    %v1116 = vmul.f32 %v1108, %v1108
    %v1117 = vmul.f32 %v1109, %v1109
    %v1118 = vsub.f32 0.0, %v1110
    %v1119 = vsub.f32 0.0, %v1111
    %v1120 = vsub.f32 0.0, %v1112
    %v1121 = vsub.f32 0.0, %v1113
    %v1122 = vsub.f32 0.0, %v1114
    %v1123 = vsub.f32 0.0, %v1115
    %v1124 = vsub.f32 0.0, %v1116
    %v1125 = vsub.f32 0.0, %v1117
    %v1126 = vmul.f32 %v1118, 1.442695
    %v1127 = vpow.pop %v1126
    %v1128 = vmul.f32 %v1119, 1.442695
    %v1129 = vpow.pop %v1128
    %v1130 = vmul.f32 %v1120, 1.442695
    %v1131 = vpow.pop %v1130
    %v1132 = vmul.f32 %v1121, 1.442695
    %v1133 = vpow.pop %v1132
    %v1134 = vmul.f32 %v1122, 1.442695
    %v1135 = vpow.pop %v1134
    %v1136 = vmul.f32 %v1123, 1.442695
    %v1137 = vpow.pop %v1136
    %v1138 = vmul.f32 %v1124, 1.442695
    %v1139 = vpow.pop %v1138
    %v1140 = vmul.f32 %v1125, 1.442695
    %v1141 = vpow.pop %v1140
    %v1142 = vrot.slane %v1131, 4
    %vm1143 = vcmask 1047556
    %v1144 = vsel %vm1143, %v1142, %v1127
    %v1145 = vrot.slane %v1127, 4
    %v1146 = vsel %vm1143, %v1131, %v1145
    %v1148 = vunpack.c.l.s4 1983009808
    %v1149 = vunpack.c.0.s8 %v1148
    %v1150 = vperm.slane %v1144, %v1149
    %v1152 = vunpack.c.l.s4 1983009808
    %v1153 = vunpack.c.0.s8 %v1152
    %v1154 = vperm.slane %v1146, %v1153
    %v1155 = vrot.slane %v1133, 4
    %v1156 = vsel %vm1143, %v1155, %v1129
    %v1157 = vrot.slane %v1129, 4
    %v1158 = vsel %vm1143, %v1133, %v1157
    %v1160 = vunpack.c.l.s4 1983009808
    %v1161 = vunpack.c.0.s8 %v1160
    %v1162 = vperm.slane %v1156, %v1161
    %v1164 = vunpack.c.l.s4 1983009808
    %v1165 = vunpack.c.0.s8 %v1164
    %v1166 = vperm.slane %v1158, %v1165
    %v1167 = vrot.slane %v1139, 4
    %v1168 = vsel %vm1143, %v1167, %v1135
    %v1169 = vrot.slane %v1135, 4
    %v1170 = vsel %vm1143, %v1139, %v1169
    %v1172 = vunpack.c.l.s4 1983009808
    %v1173 = vunpack.c.0.s8 %v1172
    %v1174 = vperm.slane %v1168, %v1173
    %v1176 = vunpack.c.l.s4 1983009808
    %v1177 = vunpack.c.0.s8 %v1176
    %v1178 = vperm.slane %v1170, %v1177
    %v1179 = vrot.slane %v1141, 4
    %v1180 = vsel %vm1143, %v1179, %v1137
    %v1181 = vrot.slane %v1137, 4
    %v1182 = vsel %vm1143, %v1141, %v1181
    %v1184 = vunpack.c.l.s4 1983009808
    %v1185 = vunpack.c.0.s8 %v1184
    %v1186 = vperm.slane %v1180, %v1185
    %v1188 = vunpack.c.l.s4 1983009808
    %v1189 = vunpack.c.0.s8 %v1188
    %v1190 = vperm.slane %v1182, %v1189
    %v1191 = vrot.slane %v1162, 4
    %v1192 = vsel %vm1143, %v1191, %v1150
    %v1193 = vrot.slane %v1150, 4
    %v1194 = vsel %vm1143, %v1162, %v1193
    %v1196 = vunpack.c.l.s4 1934713408
    %v1197 = vunpack.c.0.s8 %v1196
    %v1198 = vperm.slane %v1192, %v1197
    %v1200 = vunpack.c.l.s4 1934713408
    %v1201 = vunpack.c.0.s8 %v1200
    %v1202 = vperm.slane %v1194, %v1201
    %v1203 = vrot.slane %v1166, 4
    %v1204 = vsel %vm1143, %v1203, %v1154
    %v1205 = vrot.slane %v1154, 4
    %v1206 = vsel %vm1143, %v1166, %v1205
    %v1208 = vunpack.c.l.s4 1934713408
    %v1209 = vunpack.c.0.s8 %v1208
    %v1210 = vperm.slane %v1204, %v1209
    %v1212 = vunpack.c.l.s4 1934713408
    %v1213 = vunpack.c.0.s8 %v1212
    %v1214 = vperm.slane %v1206, %v1213
    %v1215 = vrot.slane %v1186, 4
    %v1216 = vsel %vm1143, %v1215, %v1174
    %v1217 = vrot.slane %v1174, 4
    %v1218 = vsel %vm1143, %v1186, %v1217
    %v1220 = vunpack.c.l.s4 1934713408
    %v1221 = vunpack.c.0.s8 %v1220
    %v1222 = vperm.slane %v1216, %v1221
    %v1224 = vunpack.c.l.s4 1934713408
    %v1225 = vunpack.c.0.s8 %v1224
    %v1226 = vperm.slane %v1218, %v1225
    %v1227 = vrot.slane %v1190, 4
    %v1228 = vsel %vm1143, %v1227, %v1178
    %v1229 = vrot.slane %v1178, 4
    %v1230 = vsel %vm1143, %v1190, %v1229
    %v1232 = vunpack.c.l.s4 1934713408
    %v1233 = vunpack.c.0.s8 %v1232
    %v1234 = vperm.slane %v1228, %v1233
    %v1236 = vunpack.c.l.s4 1934713408
    %v1237 = vunpack.c.0.s8 %v1236
    %v1238 = vperm.slane %v1230, %v1237
    %v1239 = vrot.slane %v1222, 4
    %v1240 = vsel %vm1143, %v1239, %v1198
    %v1241 = vrot.slane %v1198, 4
    %v1242 = vsel %vm1143, %v1222, %v1241
    %v1243 = vrot.slane %v1226, 4
    %v1244 = vsel %vm1143, %v1243, %v1202
    %v1245 = vrot.slane %v1202, 4
    %v1246 = vsel %vm1143, %v1226, %v1245
    %v1247 = vrot.slane %v1234, 4
    %v1248 = vsel %vm1143, %v1247, %v1210
    %v1249 = vrot.slane %v1210, 4
    %v1250 = vsel %vm1143, %v1234, %v1249
    %v1251 = vrot.slane %v1238, 4
    %v1252 = vsel %vm1143, %v1251, %v1214
    %v1253 = vrot.slane %v1214, 4
    %v1254 = vsel %vm1143, %v1238, %v1253
    %v1255 = vxor.u32 %v1032, 2147483648
    %v1256 = vmul.f32 %v1255, 1.442695
    %v1257 = vpow.pop %v1256
    %v1258 = vadd.f32 %v1257, 1.0
    %v1259 = vrcp.pop %v1258
    %v1260 = vmul.f32 %v1258, %v1259
    %v1261 = vsub.f32 1.0, %v1260
    %v1262 = vmul.f32 %v1259, %v1261
    %v1263 = vadd.f32 %v1259, %v1262
    %vm1264 = vweird.f32 %v1258
    %vm1265 = vweird.f32 %v1259
    %vm1266 = vmor %vm1264, %vm1265
    %v1267 = vsel %vm1266, %v1259, %v1263
    %v1268 = vand.u32 2147483647, %v1258
    %vm1269 = vcmp.eq.f32.partialorder %v1268, 8.507059e+37
    %v1270 = vand.u32 %v1258, 2147483648
    %v1271 = vor.u32 1.1754944e-38, %v1270
    %v1272 = vsel %vm1269, %v1271, %v1267
    %v1273 = vmul.f32 1.0, %v1272
    %v1274 = vmul.f32 %v1032, %v1273
    %v1275 = vpack.c.bf16 %v1274, %v1274
    %v1276 = vld [vmem:[%s7] sm:$0xf]
    %v1277 = vld [vmem:[%s7 + $0x4] sm:$0xf]
    %v1278 = vld [vmem:[%s7 + $0x8] sm:$0xf]
    %v1279 = vld [vmem:[%s7 + $0xc] sm:$0xf]
    %v1280 = vld [vmem:[%s7 + $0x10] sm:$0xf]
    %v1281 = vld [vmem:[%s7 + $0x14] sm:$0xf]
    %v1282 = vld [vmem:[%s7 + $0x18] sm:$0xf]
    %v1283 = vld [vmem:[%s7 + $0x1c] sm:$0xf]
    %v1284 = vld [vmem:[%s7 + $0x20] sm:$0xf]
    %v1285 = vld [vmem:[%s7 + $0x24] sm:$0xf]
    %v1286 = vld [vmem:[%s7 + $0x28] sm:$0xf]
    %v1287 = vld [vmem:[%s7 + $0x2c] sm:$0xf]
    %v1288 = vld [vmem:[%s7 + $0x30] sm:$0xf]
    %v1289 = vld [vmem:[%s7 + $0x34] sm:$0xf]
    %v1290 = vld [vmem:[%s7 + $0x38] sm:$0xf]
    %v1291 = vld [vmem:[%s7 + $0x3c] sm:$0xf]
    %v1292 = vld [vmem:[%s8] sm:$0x1]
    %v1294 = vperm.slane %v1292, 0
    %v1312 = vunpack.c.l.b16 %v1276
    %v1313 = vunpack.c.l.b16 %v1277
    %v1314 = vunpack.c.l.b16 %v1278
    %v1315 = vunpack.c.l.b16 %v1279
    %v1316 = vunpack.c.l.b16 %v1280
    %v1317 = vunpack.c.l.b16 %v1281
    %v1318 = vunpack.c.l.b16 %v1282
    %v1319 = vunpack.c.l.b16 %v1283
    %v1320 = vunpack.c.l.b16 %v1284
    %v1321 = vunpack.c.l.b16 %v1285
    %v1322 = vunpack.c.l.b16 %v1286
    %v1323 = vunpack.c.l.b16 %v1287
    %v1324 = vunpack.c.l.b16 %v1288
    %v1325 = vunpack.c.l.b16 %v1289
    %v1326 = vunpack.c.l.b16 %v1290
    %v1327 = vunpack.c.l.b16 %v1291
    %v1328 = vpack.c.b16 %v1313, %v1312
    %v1329 = vpack.c.b16 %v1315, %v1314
    %v1330 = vpack.c.b16 %v1317, %v1316
    %v1331 = vpack.c.b16 %v1319, %v1318
    %v1332 = vpack.c.b16 %v1321, %v1320
    %v1333 = vpack.c.b16 %v1323, %v1322
    %v1334 = vpack.c.b16 %v1325, %v1324
    %v1335 = vpack.c.b16 %v1327, %v1326
    %1344 = vmatpush.bf16.msra.mxu0 %v1335
    %1345 = vmatpush.bf16.msra.mxu0 %v1334
    %1346 = vmatpush.bf16.msra.mxu0 %v1333
    %1347 = vmatpush.bf16.msra.mxu0 %v1332
    %1348 = vmatpush.bf16.msra.mxu0 %v1331
    %1349 = vmatpush.bf16.msra.mxu0 %v1330
    %1350 = vmatpush.bf16.msra.mxu0 %v1329
    %1351 = vmatpush.bf16.msra.mxu0 %v1328
    %1352 = vmatmul.bf16.gmra.mxu0 %v1275
    %v1353 = vpop.f32.mrf.mxu0
    %v1354 = vadd.f32 %v1294, %v1353
    %v1355 = vpop.f32.mrf.mxu0
    %1356 = vdwg.mxu0
    %v1357 = vpack.c.bf16 %v1240, %v1240
    %v1358 = vpack.c.bf16 %v1242, %v1242
    %v1359 = vpack.c.bf16 %v1244, %v1244
    %v1360 = vpack.c.bf16 %v1246, %v1246
    %v1361 = vpack.c.bf16 %v1248, %v1248
    %v1362 = vpack.c.bf16 %v1250, %v1250
    %v1363 = vpack.c.bf16 %v1252, %v1252
    %v1364 = vpack.c.bf16 %v1254, %v1254
    %v1365 = vld [vmem:[%s9] sm:$0xf]
    %v1366 = vld [vmem:[%s9 + $0x4] sm:$0xf]
    %v1367 = vld [vmem:[%s9 + $0x8] sm:$0xf]
    %v1368 = vld [vmem:[%s9 + $0xc] sm:$0xf]
    %v1369 = vld [vmem:[%s9 + $0x10] sm:$0xf]
    %v1370 = vld [vmem:[%s9 + $0x14] sm:$0xf]
    %v1371 = vld [vmem:[%s9 + $0x18] sm:$0xf]
    %v1372 = vld [vmem:[%s9 + $0x1c] sm:$0xf]
    %v1373 = vld [vmem:[%s9 + $0x20] sm:$0xf]
    %v1374 = vld [vmem:[%s9 + $0x24] sm:$0xf]
    %v1375 = vld [vmem:[%s9 + $0x28] sm:$0xf]
    %v1376 = vld [vmem:[%s9 + $0x2c] sm:$0xf]
    %v1377 = vld [vmem:[%s9 + $0x30] sm:$0xf]
    %v1378 = vld [vmem:[%s9 + $0x34] sm:$0xf]
    %v1379 = vld [vmem:[%s9 + $0x38] sm:$0xf]
    %v1380 = vld [vmem:[%s9 + $0x3c] sm:$0xf]
    %v1381 = vld [vmem:[%s9 + $0x40] sm:$0xf]
    %v1382 = vld [vmem:[%s9 + $0x44] sm:$0xf]
    %v1383 = vld [vmem:[%s9 + $0x48] sm:$0xf]
    %v1384 = vld [vmem:[%s9 + $0x4c] sm:$0xf]
    %v1385 = vld [vmem:[%s9 + $0x50] sm:$0xf]
    %v1386 = vld [vmem:[%s9 + $0x54] sm:$0xf]
    %v1387 = vld [vmem:[%s9 + $0x58] sm:$0xf]
    %v1388 = vld [vmem:[%s9 + $0x5c] sm:$0xf]
    %v1389 = vld [vmem:[%s9 + $0x60] sm:$0xf]
    %v1390 = vld [vmem:[%s9 + $0x64] sm:$0xf]
    %v1391 = vld [vmem:[%s9 + $0x68] sm:$0xf]
    %v1392 = vld [vmem:[%s9 + $0x6c] sm:$0xf]
    %v1393 = vld [vmem:[%s9 + $0x70] sm:$0xf]
    %v1394 = vld [vmem:[%s9 + $0x74] sm:$0xf]
    %v1395 = vld [vmem:[%s9 + $0x78] sm:$0xf]
    %v1396 = vld [vmem:[%s9 + $0x7c] sm:$0xf]
    %v1397 = vld [vmem:[%s9 + $0x80] sm:$0xf]
    %v1398 = vld [vmem:[%s9 + $0x84] sm:$0xf]
    %v1399 = vld [vmem:[%s9 + $0x88] sm:$0xf]
    %v1400 = vld [vmem:[%s9 + $0x8c] sm:$0xf]
    %v1401 = vld [vmem:[%s9 + $0x90] sm:$0xf]
    %v1402 = vld [vmem:[%s9 + $0x94] sm:$0xf]
    %v1403 = vld [vmem:[%s9 + $0x98] sm:$0xf]
    %v1404 = vld [vmem:[%s9 + $0x9c] sm:$0xf]
    %v1405 = vld [vmem:[%s9 + $0xa0] sm:$0xf]
    %v1406 = vld [vmem:[%s9 + $0xa4] sm:$0xf]
    %v1407 = vld [vmem:[%s9 + $0xa8] sm:$0xf]
    %v1408 = vld [vmem:[%s9 + $0xac] sm:$0xf]
    %v1409 = vld [vmem:[%s9 + $0xb0] sm:$0xf]
    %v1410 = vld [vmem:[%s9 + $0xb4] sm:$0xf]
    %v1411 = vld [vmem:[%s9 + $0xb8] sm:$0xf]
    %v1412 = vld [vmem:[%s9 + $0xbc] sm:$0xf]
    %v1413 = vld [vmem:[%s9 + $0xc0] sm:$0xf]
    %v1414 = vld [vmem:[%s9 + $0xc4] sm:$0xf]
    %v1415 = vld [vmem:[%s9 + $0xc8] sm:$0xf]
    %v1416 = vld [vmem:[%s9 + $0xcc] sm:$0xf]
    %v1417 = vld [vmem:[%s9 + $0xd0] sm:$0xf]
    %v1418 = vld [vmem:[%s9 + $0xd4] sm:$0xf]
    %v1419 = vld [vmem:[%s9 + $0xd8] sm:$0xf]
    %v1420 = vld [vmem:[%s9 + $0xdc] sm:$0xf]
    %v1421 = vld [vmem:[%s9 + $0xe0] sm:$0xf]
    %v1422 = vld [vmem:[%s9 + $0xe4] sm:$0xf]
    %v1423 = vld [vmem:[%s9 + $0xe8] sm:$0xf]
    %v1424 = vld [vmem:[%s9 + $0xec] sm:$0xf]
    %v1425 = vld [vmem:[%s9 + $0xf0] sm:$0xf]
    %v1426 = vld [vmem:[%s9 + $0xf4] sm:$0xf]
    %v1427 = vld [vmem:[%s9 + $0xf8] sm:$0xf]
    %v1428 = vld [vmem:[%s9 + $0xfc] sm:$0xf]
    %v1429 = vld [vmem:[%s9 + $0x100] sm:$0xf]
    %v1430 = vld [vmem:[%s9 + $0x104] sm:$0xf]
    %v1431 = vld [vmem:[%s9 + $0x108] sm:$0xf]
    %v1432 = vld [vmem:[%s9 + $0x10c] sm:$0xf]
    %v1433 = vld [vmem:[%s9 + $0x110] sm:$0xf]
    %v1434 = vld [vmem:[%s9 + $0x114] sm:$0xf]
    %v1435 = vld [vmem:[%s9 + $0x118] sm:$0xf]
    %v1436 = vld [vmem:[%s9 + $0x11c] sm:$0xf]
    %v1437 = vld [vmem:[%s9 + $0x120] sm:$0xf]
    %v1438 = vld [vmem:[%s9 + $0x124] sm:$0xf]
    %v1439 = vld [vmem:[%s9 + $0x128] sm:$0xf]
    %v1440 = vld [vmem:[%s9 + $0x12c] sm:$0xf]
    %v1441 = vld [vmem:[%s9 + $0x130] sm:$0xf]
    %v1442 = vld [vmem:[%s9 + $0x134] sm:$0xf]
    %v1443 = vld [vmem:[%s9 + $0x138] sm:$0xf]
    %v1444 = vld [vmem:[%s9 + $0x13c] sm:$0xf]
    %v1445 = vld [vmem:[%s9 + $0x140] sm:$0xf]
    %v1446 = vld [vmem:[%s9 + $0x144] sm:$0xf]
    %v1447 = vld [vmem:[%s9 + $0x148] sm:$0xf]
    %v1448 = vld [vmem:[%s9 + $0x14c] sm:$0xf]
    %v1449 = vld [vmem:[%s9 + $0x150] sm:$0xf]
    %v1450 = vld [vmem:[%s9 + $0x154] sm:$0xf]
    %v1451 = vld [vmem:[%s9 + $0x158] sm:$0xf]
    %v1452 = vld [vmem:[%s9 + $0x15c] sm:$0xf]
    %v1453 = vld [vmem:[%s9 + $0x160] sm:$0xf]
    %v1454 = vld [vmem:[%s9 + $0x164] sm:$0xf]
    %v1455 = vld [vmem:[%s9 + $0x168] sm:$0xf]
    %v1456 = vld [vmem:[%s9 + $0x16c] sm:$0xf]
    %v1457 = vld [vmem:[%s9 + $0x170] sm:$0xf]
    %v1458 = vld [vmem:[%s9 + $0x174] sm:$0xf]
    %v1459 = vld [vmem:[%s9 + $0x178] sm:$0xf]
    %v1460 = vld [vmem:[%s9 + $0x17c] sm:$0xf]
    %v1461 = vld [vmem:[%s9 + $0x180] sm:$0xf]
    %v1462 = vld [vmem:[%s9 + $0x184] sm:$0xf]
    %v1463 = vld [vmem:[%s9 + $0x188] sm:$0xf]
    %v1464 = vld [vmem:[%s9 + $0x18c] sm:$0xf]
    %v1465 = vld [vmem:[%s9 + $0x190] sm:$0xf]
    %v1466 = vld [vmem:[%s9 + $0x194] sm:$0xf]
    %v1467 = vld [vmem:[%s9 + $0x198] sm:$0xf]
    %v1468 = vld [vmem:[%s9 + $0x19c] sm:$0xf]
    %v1469 = vld [vmem:[%s9 + $0x1a0] sm:$0xf]
    %v1470 = vld [vmem:[%s9 + $0x1a4] sm:$0xf]
    %v1471 = vld [vmem:[%s9 + $0x1a8] sm:$0xf]
    %v1472 = vld [vmem:[%s9 + $0x1ac] sm:$0xf]
    %v1473 = vld [vmem:[%s9 + $0x1b0] sm:$0xf]
    %v1474 = vld [vmem:[%s9 + $0x1b4] sm:$0xf]
    %v1475 = vld [vmem:[%s9 + $0x1b8] sm:$0xf]
    %v1476 = vld [vmem:[%s9 + $0x1bc] sm:$0xf]
    %v1477 = vld [vmem:[%s9 + $0x1c0] sm:$0xf]
    %v1478 = vld [vmem:[%s9 + $0x1c4] sm:$0xf]
    %v1479 = vld [vmem:[%s9 + $0x1c8] sm:$0xf]
    %v1480 = vld [vmem:[%s9 + $0x1cc] sm:$0xf]
    %v1481 = vld [vmem:[%s9 + $0x1d0] sm:$0xf]
    %v1482 = vld [vmem:[%s9 + $0x1d4] sm:$0xf]
    %v1483 = vld [vmem:[%s9 + $0x1d8] sm:$0xf]
    %v1484 = vld [vmem:[%s9 + $0x1dc] sm:$0xf]
    %v1485 = vld [vmem:[%s9 + $0x1e0] sm:$0xf]
    %v1486 = vld [vmem:[%s9 + $0x1e4] sm:$0xf]
    %v1487 = vld [vmem:[%s9 + $0x1e8] sm:$0xf]
    %v1488 = vld [vmem:[%s9 + $0x1ec] sm:$0xf]
    %v1489 = vld [vmem:[%s9 + $0x1f0] sm:$0xf]
    %v1490 = vld [vmem:[%s9 + $0x1f4] sm:$0xf]
    %v1491 = vld [vmem:[%s9 + $0x1f8] sm:$0xf]
    %v1492 = vld [vmem:[%s9 + $0x1fc] sm:$0xf]
    %v1621 = vunpack.c.l.b16 %v1365
    %v1622 = vunpack.c.l.b16 %v1366
    %v1623 = vunpack.c.l.b16 %v1367
    %v1624 = vunpack.c.l.b16 %v1368
    %v1625 = vunpack.c.l.b16 %v1369
    %v1626 = vunpack.c.l.b16 %v1370
    %v1627 = vunpack.c.l.b16 %v1371
    %v1628 = vunpack.c.l.b16 %v1372
    %v1629 = vunpack.c.l.b16 %v1373
    %v1630 = vunpack.c.l.b16 %v1374
    %v1631 = vunpack.c.l.b16 %v1375
    %v1632 = vunpack.c.l.b16 %v1376
    %v1633 = vunpack.c.l.b16 %v1377
    %v1634 = vunpack.c.l.b16 %v1378
    %v1635 = vunpack.c.l.b16 %v1379
    %v1636 = vunpack.c.l.b16 %v1380
    %v1637 = vunpack.c.l.b16 %v1381
    %v1638 = vunpack.c.l.b16 %v1382
    %v1639 = vunpack.c.l.b16 %v1383
    %v1640 = vunpack.c.l.b16 %v1384
    %v1641 = vunpack.c.l.b16 %v1385
    %v1642 = vunpack.c.l.b16 %v1386
    %v1643 = vunpack.c.l.b16 %v1387
    %v1644 = vunpack.c.l.b16 %v1388
    %v1645 = vunpack.c.l.b16 %v1389
    %v1646 = vunpack.c.l.b16 %v1390
    %v1647 = vunpack.c.l.b16 %v1391
    %v1648 = vunpack.c.l.b16 %v1392
    %v1649 = vunpack.c.l.b16 %v1393
    %v1650 = vunpack.c.l.b16 %v1394
    %v1651 = vunpack.c.l.b16 %v1395
    %v1652 = vunpack.c.l.b16 %v1396
    %v1653 = vunpack.c.l.b16 %v1397
    %v1654 = vunpack.c.l.b16 %v1398
    %v1655 = vunpack.c.l.b16 %v1399
    %v1656 = vunpack.c.l.b16 %v1400
    %v1657 = vunpack.c.l.b16 %v1401
    %v1658 = vunpack.c.l.b16 %v1402
    %v1659 = vunpack.c.l.b16 %v1403
    %v1660 = vunpack.c.l.b16 %v1404
    %v1661 = vunpack.c.l.b16 %v1405
    %v1662 = vunpack.c.l.b16 %v1406
    %v1663 = vunpack.c.l.b16 %v1407
    %v1664 = vunpack.c.l.b16 %v1408
    %v1665 = vunpack.c.l.b16 %v1409
    %v1666 = vunpack.c.l.b16 %v1410
    %v1667 = vunpack.c.l.b16 %v1411
    %v1668 = vunpack.c.l.b16 %v1412
    %v1669 = vunpack.c.l.b16 %v1413
    %v1670 = vunpack.c.l.b16 %v1414
    %v1671 = vunpack.c.l.b16 %v1415
    %v1672 = vunpack.c.l.b16 %v1416
    %v1673 = vunpack.c.l.b16 %v1417
    %v1674 = vunpack.c.l.b16 %v1418
    %v1675 = vunpack.c.l.b16 %v1419
    %v1676 = vunpack.c.l.b16 %v1420
    %v1677 = vunpack.c.l.b16 %v1421
    %v1678 = vunpack.c.l.b16 %v1422
    %v1679 = vunpack.c.l.b16 %v1423
    %v1680 = vunpack.c.l.b16 %v1424
    %v1681 = vunpack.c.l.b16 %v1425
    %v1682 = vunpack.c.l.b16 %v1426
    %v1683 = vunpack.c.l.b16 %v1427
    %v1684 = vunpack.c.l.b16 %v1428
    %v1685 = vunpack.c.l.b16 %v1429
    %v1686 = vunpack.c.l.b16 %v1430
    %v1687 = vunpack.c.l.b16 %v1431
    %v1688 = vunpack.c.l.b16 %v1432
    %v1689 = vunpack.c.l.b16 %v1433
    %v1690 = vunpack.c.l.b16 %v1434
    %v1691 = vunpack.c.l.b16 %v1435
    %v1692 = vunpack.c.l.b16 %v1436
    %v1693 = vunpack.c.l.b16 %v1437
    %v1694 = vunpack.c.l.b16 %v1438
    %v1695 = vunpack.c.l.b16 %v1439
    %v1696 = vunpack.c.l.b16 %v1440
    %v1697 = vunpack.c.l.b16 %v1441
    %v1698 = vunpack.c.l.b16 %v1442
    %v1699 = vunpack.c.l.b16 %v1443
    %v1700 = vunpack.c.l.b16 %v1444
    %v1701 = vunpack.c.l.b16 %v1445
    %v1702 = vunpack.c.l.b16 %v1446
    %v1703 = vunpack.c.l.b16 %v1447
    %v1704 = vunpack.c.l.b16 %v1448
    %v1705 = vunpack.c.l.b16 %v1449
    %v1706 = vunpack.c.l.b16 %v1450
    %v1707 = vunpack.c.l.b16 %v1451
    %v1708 = vunpack.c.l.b16 %v1452
    %v1709 = vunpack.c.l.b16 %v1453
    %v1710 = vunpack.c.l.b16 %v1454
    %v1711 = vunpack.c.l.b16 %v1455
    %v1712 = vunpack.c.l.b16 %v1456
    %v1713 = vunpack.c.l.b16 %v1457
    %v1714 = vunpack.c.l.b16 %v1458
    %v1715 = vunpack.c.l.b16 %v1459
    %v1716 = vunpack.c.l.b16 %v1460
    %v1717 = vunpack.c.l.b16 %v1461
    %v1718 = vunpack.c.l.b16 %v1462
    %v1719 = vunpack.c.l.b16 %v1463
    %v1720 = vunpack.c.l.b16 %v1464
    %v1721 = vunpack.c.l.b16 %v1465
    %v1722 = vunpack.c.l.b16 %v1466
    %v1723 = vunpack.c.l.b16 %v1467
    %v1724 = vunpack.c.l.b16 %v1468
    %v1725 = vunpack.c.l.b16 %v1469
    %v1726 = vunpack.c.l.b16 %v1470
    %v1727 = vunpack.c.l.b16 %v1471
    %v1728 = vunpack.c.l.b16 %v1472
    %v1729 = vunpack.c.l.b16 %v1473
    %v1730 = vunpack.c.l.b16 %v1474
    %v1731 = vunpack.c.l.b16 %v1475
    %v1732 = vunpack.c.l.b16 %v1476
    %v1733 = vunpack.c.l.b16 %v1477
    %v1734 = vunpack.c.l.b16 %v1478
    %v1735 = vunpack.c.l.b16 %v1479
    %v1736 = vunpack.c.l.b16 %v1480
    %v1737 = vunpack.c.l.b16 %v1481
    %v1738 = vunpack.c.l.b16 %v1482
    %v1739 = vunpack.c.l.b16 %v1483
    %v1740 = vunpack.c.l.b16 %v1484
    %v1741 = vunpack.c.l.b16 %v1485
    %v1742 = vunpack.c.l.b16 %v1486
    %v1743 = vunpack.c.l.b16 %v1487
    %v1744 = vunpack.c.l.b16 %v1488
    %v1745 = vunpack.c.l.b16 %v1489
    %v1746 = vunpack.c.l.b16 %v1490
    %v1747 = vunpack.c.l.b16 %v1491
    %v1748 = vunpack.c.l.b16 %v1492
    %v1749 = vpack.c.b16 %v1622, %v1621
    %v1750 = vpack.c.b16 %v1624, %v1623
    %v1751 = vpack.c.b16 %v1626, %v1625
    %v1752 = vpack.c.b16 %v1628, %v1627
    %v1753 = vpack.c.b16 %v1630, %v1629
    %v1754 = vpack.c.b16 %v1632, %v1631
    %v1755 = vpack.c.b16 %v1634, %v1633
    %v1756 = vpack.c.b16 %v1636, %v1635
    %v1757 = vpack.c.b16 %v1638, %v1637
    %v1758 = vpack.c.b16 %v1640, %v1639
    %v1759 = vpack.c.b16 %v1642, %v1641
    %v1760 = vpack.c.b16 %v1644, %v1643
    %v1761 = vpack.c.b16 %v1646, %v1645
    %v1762 = vpack.c.b16 %v1648, %v1647
    %v1763 = vpack.c.b16 %v1650, %v1649
    %v1764 = vpack.c.b16 %v1652, %v1651
    %v1765 = vpack.c.b16 %v1654, %v1653
    %v1766 = vpack.c.b16 %v1656, %v1655
    %v1767 = vpack.c.b16 %v1658, %v1657
    %v1768 = vpack.c.b16 %v1660, %v1659
    %v1769 = vpack.c.b16 %v1662, %v1661
    %v1770 = vpack.c.b16 %v1664, %v1663
    %v1771 = vpack.c.b16 %v1666, %v1665
    %v1772 = vpack.c.b16 %v1668, %v1667
    %v1773 = vpack.c.b16 %v1670, %v1669
    %v1774 = vpack.c.b16 %v1672, %v1671
    %v1775 = vpack.c.b16 %v1674, %v1673
    %v1776 = vpack.c.b16 %v1676, %v1675
    %v1777 = vpack.c.b16 %v1678, %v1677
    %v1778 = vpack.c.b16 %v1680, %v1679
    %v1779 = vpack.c.b16 %v1682, %v1681
    %v1780 = vpack.c.b16 %v1684, %v1683
    %v1781 = vpack.c.b16 %v1686, %v1685
    %v1782 = vpack.c.b16 %v1688, %v1687
    %v1783 = vpack.c.b16 %v1690, %v1689
    %v1784 = vpack.c.b16 %v1692, %v1691
    %v1785 = vpack.c.b16 %v1694, %v1693
    %v1786 = vpack.c.b16 %v1696, %v1695
    %v1787 = vpack.c.b16 %v1698, %v1697
    %v1788 = vpack.c.b16 %v1700, %v1699
    %v1789 = vpack.c.b16 %v1702, %v1701
    %v1790 = vpack.c.b16 %v1704, %v1703
    %v1791 = vpack.c.b16 %v1706, %v1705
    %v1792 = vpack.c.b16 %v1708, %v1707
    %v1793 = vpack.c.b16 %v1710, %v1709
    %v1794 = vpack.c.b16 %v1712, %v1711
    %v1795 = vpack.c.b16 %v1714, %v1713
    %v1796 = vpack.c.b16 %v1716, %v1715
    %v1797 = vpack.c.b16 %v1718, %v1717
    %v1798 = vpack.c.b16 %v1720, %v1719
    %v1799 = vpack.c.b16 %v1722, %v1721
    %v1800 = vpack.c.b16 %v1724, %v1723
    %v1801 = vpack.c.b16 %v1726, %v1725
    %v1802 = vpack.c.b16 %v1728, %v1727
    %v1803 = vpack.c.b16 %v1730, %v1729
    %v1804 = vpack.c.b16 %v1732, %v1731
    %v1805 = vpack.c.b16 %v1734, %v1733
    %v1806 = vpack.c.b16 %v1736, %v1735
    %v1807 = vpack.c.b16 %v1738, %v1737
    %v1808 = vpack.c.b16 %v1740, %v1739
    %v1809 = vpack.c.b16 %v1742, %v1741
    %v1810 = vpack.c.b16 %v1744, %v1743
    %v1811 = vpack.c.b16 %v1746, %v1745
    %v1812 = vpack.c.b16 %v1748, %v1747
    %1877 = vmatpush.bf16.msra.mxu0 %v1756
    %1878 = vmatpush.bf16.msra.mxu0 %v1755
    %1879 = vmatpush.bf16.msra.mxu0 %v1754
    %1880 = vmatpush.bf16.msra.mxu0 %v1753
    %1881 = vmatpush.bf16.msra.mxu0 %v1752
    %1882 = vmatpush.bf16.msra.mxu0 %v1751
    %1883 = vmatpush.bf16.msra.mxu0 %v1750
    %1884 = vmatpush.bf16.msra.mxu0 %v1749
    %1885 = vmatmul.bf16.gmra.mxu0 %v1357
    %v1886 = vpop.f32.mrf.mxu0
    %v1887 = vadd.f32 0.0, %v1886
    %v1888 = vpop.f32.mrf.mxu0
    %1889 = vdwg.mxu0
    %1890 = vmatpush.bf16.msra.mxu0 %v1764
    %1891 = vmatpush.bf16.msra.mxu0 %v1763
    %1892 = vmatpush.bf16.msra.mxu0 %v1762
    %1893 = vmatpush.bf16.msra.mxu0 %v1761
    %1894 = vmatpush.bf16.msra.mxu0 %v1760
    %1895 = vmatpush.bf16.msra.mxu0 %v1759
    %1896 = vmatpush.bf16.msra.mxu0 %v1758
    %1897 = vmatpush.bf16.msra.mxu0 %v1757
    %1898 = vmatmul.bf16.gmra.mxu0 %v1358
    %v1899 = vpop.f32.mrf.mxu0
    %v1900 = vadd.f32 %v1887, %v1899
    %v1901 = vpop.f32.mrf.mxu0
    %1902 = vdwg.mxu0
    %1903 = vmatpush.bf16.msra.mxu0 %v1772
    %1904 = vmatpush.bf16.msra.mxu0 %v1771
    %1905 = vmatpush.bf16.msra.mxu0 %v1770
    %1906 = vmatpush.bf16.msra.mxu0 %v1769
    %1907 = vmatpush.bf16.msra.mxu0 %v1768
    %1908 = vmatpush.bf16.msra.mxu0 %v1767
    %1909 = vmatpush.bf16.msra.mxu0 %v1766
    %1910 = vmatpush.bf16.msra.mxu0 %v1765
    %1911 = vmatmul.bf16.gmra.mxu0 %v1359
    %v1912 = vpop.f32.mrf.mxu0
    %v1913 = vadd.f32 %v1900, %v1912
    %v1914 = vpop.f32.mrf.mxu0
    %1915 = vdwg.mxu0
    %1916 = vmatpush.bf16.msra.mxu0 %v1780
    %1917 = vmatpush.bf16.msra.mxu0 %v1779
    %1918 = vmatpush.bf16.msra.mxu0 %v1778
    %1919 = vmatpush.bf16.msra.mxu0 %v1777
    %1920 = vmatpush.bf16.msra.mxu0 %v1776
    %1921 = vmatpush.bf16.msra.mxu0 %v1775
    %1922 = vmatpush.bf16.msra.mxu0 %v1774
    %1923 = vmatpush.bf16.msra.mxu0 %v1773
    %1924 = vmatmul.bf16.gmra.mxu0 %v1360
    %v1925 = vpop.f32.mrf.mxu0
    %v1926 = vadd.f32 %v1913, %v1925
    %v1927 = vpop.f32.mrf.mxu0
    %1928 = vdwg.mxu0
    %1929 = vmatpush.bf16.msra.mxu0 %v1788
    %1930 = vmatpush.bf16.msra.mxu0 %v1787
    %1931 = vmatpush.bf16.msra.mxu0 %v1786
    %1932 = vmatpush.bf16.msra.mxu0 %v1785
    %1933 = vmatpush.bf16.msra.mxu0 %v1784
    %1934 = vmatpush.bf16.msra.mxu0 %v1783
    %1935 = vmatpush.bf16.msra.mxu0 %v1782
    %1936 = vmatpush.bf16.msra.mxu0 %v1781
    %1937 = vmatmul.bf16.gmra.mxu0 %v1361
    %v1938 = vpop.f32.mrf.mxu0
    %v1939 = vadd.f32 %v1926, %v1938
    %v1940 = vpop.f32.mrf.mxu0
    %1941 = vdwg.mxu0
    %1942 = vmatpush.bf16.msra.mxu0 %v1796
    %1943 = vmatpush.bf16.msra.mxu0 %v1795
    %1944 = vmatpush.bf16.msra.mxu0 %v1794
    %1945 = vmatpush.bf16.msra.mxu0 %v1793
    %1946 = vmatpush.bf16.msra.mxu0 %v1792
    %1947 = vmatpush.bf16.msra.mxu0 %v1791
    %1948 = vmatpush.bf16.msra.mxu0 %v1790
    %1949 = vmatpush.bf16.msra.mxu0 %v1789
    %1950 = vmatmul.bf16.gmra.mxu0 %v1362
    %v1951 = vpop.f32.mrf.mxu0
    %v1952 = vadd.f32 %v1939, %v1951
    %v1953 = vpop.f32.mrf.mxu0
    %1954 = vdwg.mxu0
    %1955 = vmatpush.bf16.msra.mxu0 %v1804
    %1956 = vmatpush.bf16.msra.mxu0 %v1803
    %1957 = vmatpush.bf16.msra.mxu0 %v1802
    %1958 = vmatpush.bf16.msra.mxu0 %v1801
    %1959 = vmatpush.bf16.msra.mxu0 %v1800
    %1960 = vmatpush.bf16.msra.mxu0 %v1799
    %1961 = vmatpush.bf16.msra.mxu0 %v1798
    %1962 = vmatpush.bf16.msra.mxu0 %v1797
    %1963 = vmatmul.bf16.gmra.mxu0 %v1363
    %v1964 = vpop.f32.mrf.mxu0
    %v1965 = vadd.f32 %v1952, %v1964
    %v1966 = vpop.f32.mrf.mxu0
    %1967 = vdwg.mxu0
    %1968 = vmatpush.bf16.msra.mxu0 %v1812
    %1969 = vmatpush.bf16.msra.mxu0 %v1811
    %1970 = vmatpush.bf16.msra.mxu0 %v1810
    %1971 = vmatpush.bf16.msra.mxu0 %v1809
    %1972 = vmatpush.bf16.msra.mxu0 %v1808
    %1973 = vmatpush.bf16.msra.mxu0 %v1807
    %1974 = vmatpush.bf16.msra.mxu0 %v1806
    %1975 = vmatpush.bf16.msra.mxu0 %v1805
    %1976 = vmatmul.bf16.gmra.mxu0 %v1364
    %v1977 = vpop.f32.mrf.mxu0
    %v1978 = vadd.f32 %v1965, %v1977
    %v1979 = vpop.f32.mrf.mxu0
    %1980 = vdwg.mxu0
    %v1981 = vadd.f32 %v1354, %v1978
    %1982 = vadd.xlane.f32.xlu0 %v1981
    %v1983 = vpop.xlane.xlu0 %1982
    %v1984 = vmul.f32 %v1981, %v1981
    %1985 = vadd.xlane.f32.xlu0 %v1984
    %v1986 = vpop.xlane.xlu0 %1985
    %v1987 = vmul.f32 %v1983, 0.015625
    %v1988 = vmul.f32 %v1986, 0.015625
    %v1989 = vmul.f32 %v1987, %v1987
    %v1990 = vsub.f32 %v1988, %v1989
    %v1991 = vsub.f32 %v1981, %v1987
    %v1992 = vadd.f32 %v1990, 1e-05
    %v1993 = vrsqrt.pop %v1992
    %v1994 = vmul.f32 %v1993, %v1992
    %v1995 = vmul.f32 %v1994, %v1993
    %v1996 = vmul.f32 0.5, %v1995
    %v1997 = vsub.f32 1.5, %v1996
    %v1998 = vmul.f32 %v1993, %v1997
    %vm1999 = vweird.f32 %v1992
    %vm2000 = vweird.f32 %v1993
    %vm2001 = vmor %vm1999, %vm2000
    %v2002 = vsel %vm2001, %v1993, %v1998
    %v2003 = vmul.f32 %v1991, %v2002
    %v2004 = vld [vmem:[%s10] sm:$0x1]
    %v2006 = vperm.slane %v2004, 0
    %v2008 = vmul.f32 %v2003, %v2006
    %v2009 = vld [vmem:[%s11] sm:$0x1]
    %v2011 = vperm.slane %v2009, 0
    %v2013 = vadd.f32 %v2008, %v2011
    %v2015 = vrot.slane %v2013, 1
    %v2016 = vrot.slane %v2013, 2
    %v2017 = vrot.slane %v2013, 3
    %v2018 = vrot.slane %v2013, 4
    %v2019 = vrot.slane %v2013, 5
    %v2020 = vrot.slane %v2013, 6
    %v2021 = vrot.slane %v2013, 7
    %v2022 = vperm.slane %v2013, 0
    %v2023 = vperm.slane %v2015, 0
    %v2024 = vperm.slane %v2016, 0
    %v2025 = vperm.slane %v2017, 0
    %v2026 = vperm.slane %v2018, 0
    %v2027 = vperm.slane %v2019, 0
    %v2028 = vperm.slane %v2020, 0
    %v2029 = vperm.slane %v2021, 0
    %v2038 = vsub.f32 %v2022, %v1069
    %v2039 = vsub.f32 %v2023, %v1069
    %v2040 = vsub.f32 %v2024, %v1069
    %v2041 = vsub.f32 %v2025, %v1069
    %v2042 = vsub.f32 %v2026, %v1069
    %v2043 = vsub.f32 %v2027, %v1069
    %v2044 = vsub.f32 %v2028, %v1069
    %v2045 = vsub.f32 %v2029, %v1069
    %v2046 = vmul.f32 %v2038, 1.75
    %v2047 = vmul.f32 %v2039, 1.75
    %v2048 = vmul.f32 %v2040, 1.75
    %v2049 = vmul.f32 %v2041, 1.75
    %v2050 = vmul.f32 %v2042, 1.75
    %v2051 = vmul.f32 %v2043, 1.75
    %v2052 = vmul.f32 %v2044, 1.75
    %v2053 = vmul.f32 %v2045, 1.75
    %v2054 = vmul.f32 %v2046, %v2046
    %v2055 = vmul.f32 %v2047, %v2047
    %v2056 = vmul.f32 %v2048, %v2048
    %v2057 = vmul.f32 %v2049, %v2049
    %v2058 = vmul.f32 %v2050, %v2050
    %v2059 = vmul.f32 %v2051, %v2051
    %v2060 = vmul.f32 %v2052, %v2052
    %v2061 = vmul.f32 %v2053, %v2053
    %v2062 = vsub.f32 0.0, %v2054
    %v2063 = vsub.f32 0.0, %v2055
    %v2064 = vsub.f32 0.0, %v2056
    %v2065 = vsub.f32 0.0, %v2057
    %v2066 = vsub.f32 0.0, %v2058
    %v2067 = vsub.f32 0.0, %v2059
    %v2068 = vsub.f32 0.0, %v2060
    %v2069 = vsub.f32 0.0, %v2061
    %v2070 = vmul.f32 %v2062, 1.442695
    %v2071 = vpow.pop %v2070
    %v2072 = vmul.f32 %v2063, 1.442695
    %v2073 = vpow.pop %v2072
    %v2074 = vmul.f32 %v2064, 1.442695
    %v2075 = vpow.pop %v2074
    %v2076 = vmul.f32 %v2065, 1.442695
    %v2077 = vpow.pop %v2076
    %v2078 = vmul.f32 %v2066, 1.442695
    %v2079 = vpow.pop %v2078
    %v2080 = vmul.f32 %v2067, 1.442695
    %v2081 = vpow.pop %v2080
    %v2082 = vmul.f32 %v2068, 1.442695
    %v2083 = vpow.pop %v2082
    %v2084 = vmul.f32 %v2069, 1.442695
    %v2085 = vpow.pop %v2084
    %v2086 = vrot.slane %v2075, 4
    %v2087 = vsel %vm1143, %v2086, %v2071
    %v2088 = vrot.slane %v2071, 4
    %v2089 = vsel %vm1143, %v2075, %v2088
    %v2091 = vunpack.c.l.s4 1983009808
    %v2092 = vunpack.c.0.s8 %v2091
    %v2093 = vperm.slane %v2087, %v2092
    %v2095 = vunpack.c.l.s4 1983009808
    %v2096 = vunpack.c.0.s8 %v2095
    %v2097 = vperm.slane %v2089, %v2096
    %v2098 = vrot.slane %v2077, 4
    %v2099 = vsel %vm1143, %v2098, %v2073
    %v2100 = vrot.slane %v2073, 4
    %v2101 = vsel %vm1143, %v2077, %v2100
    %v2103 = vunpack.c.l.s4 1983009808
    %v2104 = vunpack.c.0.s8 %v2103
    %v2105 = vperm.slane %v2099, %v2104
    %v2107 = vunpack.c.l.s4 1983009808
    %v2108 = vunpack.c.0.s8 %v2107
    %v2109 = vperm.slane %v2101, %v2108
    %v2110 = vrot.slane %v2083, 4
    %v2111 = vsel %vm1143, %v2110, %v2079
    %v2112 = vrot.slane %v2079, 4
    %v2113 = vsel %vm1143, %v2083, %v2112
    %v2115 = vunpack.c.l.s4 1983009808
    %v2116 = vunpack.c.0.s8 %v2115
    %v2117 = vperm.slane %v2111, %v2116
    %v2119 = vunpack.c.l.s4 1983009808
    %v2120 = vunpack.c.0.s8 %v2119
    %v2121 = vperm.slane %v2113, %v2120
    %v2122 = vrot.slane %v2085, 4
    %v2123 = vsel %vm1143, %v2122, %v2081
    %v2124 = vrot.slane %v2081, 4
    %v2125 = vsel %vm1143, %v2085, %v2124
    %v2127 = vunpack.c.l.s4 1983009808
    %v2128 = vunpack.c.0.s8 %v2127
    %v2129 = vperm.slane %v2123, %v2128
    %v2131 = vunpack.c.l.s4 1983009808
    %v2132 = vunpack.c.0.s8 %v2131
    %v2133 = vperm.slane %v2125, %v2132
    %v2134 = vrot.slane %v2105, 4
    %v2135 = vsel %vm1143, %v2134, %v2093
    %v2136 = vrot.slane %v2093, 4
    %v2137 = vsel %vm1143, %v2105, %v2136
    %v2139 = vunpack.c.l.s4 1934713408
    %v2140 = vunpack.c.0.s8 %v2139
    %v2141 = vperm.slane %v2135, %v2140
    %v2143 = vunpack.c.l.s4 1934713408
    %v2144 = vunpack.c.0.s8 %v2143
    %v2145 = vperm.slane %v2137, %v2144
    %v2146 = vrot.slane %v2109, 4
    %v2147 = vsel %vm1143, %v2146, %v2097
    %v2148 = vrot.slane %v2097, 4
    %v2149 = vsel %vm1143, %v2109, %v2148
    %v2151 = vunpack.c.l.s4 1934713408
    %v2152 = vunpack.c.0.s8 %v2151
    %v2153 = vperm.slane %v2147, %v2152
    %v2155 = vunpack.c.l.s4 1934713408
    %v2156 = vunpack.c.0.s8 %v2155
    %v2157 = vperm.slane %v2149, %v2156
    %v2158 = vrot.slane %v2129, 4
    %v2159 = vsel %vm1143, %v2158, %v2117
    %v2160 = vrot.slane %v2117, 4
    %v2161 = vsel %vm1143, %v2129, %v2160
    %v2163 = vunpack.c.l.s4 1934713408
    %v2164 = vunpack.c.0.s8 %v2163
    %v2165 = vperm.slane %v2159, %v2164
    %v2167 = vunpack.c.l.s4 1934713408
    %v2168 = vunpack.c.0.s8 %v2167
    %v2169 = vperm.slane %v2161, %v2168
    %v2170 = vrot.slane %v2133, 4
    %v2171 = vsel %vm1143, %v2170, %v2121
    %v2172 = vrot.slane %v2121, 4
    %v2173 = vsel %vm1143, %v2133, %v2172
    %v2175 = vunpack.c.l.s4 1934713408
    %v2176 = vunpack.c.0.s8 %v2175
    %v2177 = vperm.slane %v2171, %v2176
    %v2179 = vunpack.c.l.s4 1934713408
    %v2180 = vunpack.c.0.s8 %v2179
    %v2181 = vperm.slane %v2173, %v2180
    %v2182 = vrot.slane %v2165, 4
    %v2183 = vsel %vm1143, %v2182, %v2141
    %v2184 = vrot.slane %v2141, 4
    %v2185 = vsel %vm1143, %v2165, %v2184
    %v2186 = vrot.slane %v2169, 4
    %v2187 = vsel %vm1143, %v2186, %v2145
    %v2188 = vrot.slane %v2145, 4
    %v2189 = vsel %vm1143, %v2169, %v2188
    %v2190 = vrot.slane %v2177, 4
    %v2191 = vsel %vm1143, %v2190, %v2153
    %v2192 = vrot.slane %v2153, 4
    %v2193 = vsel %vm1143, %v2177, %v2192
    %v2194 = vrot.slane %v2181, 4
    %v2195 = vsel %vm1143, %v2194, %v2157
    %v2196 = vrot.slane %v2157, 4
    %v2197 = vsel %vm1143, %v2181, %v2196
    %v2198 = vxor.u32 %v1981, 2147483648
    %v2199 = vmul.f32 %v2198, 1.442695
    %v2200 = vpow.pop %v2199
    %v2201 = vadd.f32 %v2200, 1.0
    %v2202 = vrcp.pop %v2201
    %v2203 = vmul.f32 %v2201, %v2202
    %v2204 = vsub.f32 1.0, %v2203
    %v2205 = vmul.f32 %v2202, %v2204
    %v2206 = vadd.f32 %v2202, %v2205
    %vm2207 = vweird.f32 %v2201
    %vm2208 = vweird.f32 %v2202
    %vm2209 = vmor %vm2207, %vm2208
    %v2210 = vsel %vm2209, %v2202, %v2206
    %v2211 = vand.u32 2147483647, %v2201
    %vm2212 = vcmp.eq.f32.partialorder %v2211, 8.507059e+37
    %v2213 = vand.u32 %v2201, 2147483648
    %v2214 = vor.u32 1.1754944e-38, %v2213
    %v2215 = vsel %vm2212, %v2214, %v2210
    %v2216 = vmul.f32 1.0, %v2215
    %v2217 = vmul.f32 %v1981, %v2216
    %v2218 = vpack.c.bf16 %v2217, %v2217
    %v2219 = vld [vmem:[%s12] sm:$0xf]
    %v2220 = vld [vmem:[%s12 + $0x4] sm:$0xf]
    %v2221 = vld [vmem:[%s12 + $0x8] sm:$0xf]
    %v2222 = vld [vmem:[%s12 + $0xc] sm:$0xf]
    %v2223 = vld [vmem:[%s12 + $0x10] sm:$0xf]
    %v2224 = vld [vmem:[%s12 + $0x14] sm:$0xf]
    %v2225 = vld [vmem:[%s12 + $0x18] sm:$0xf]
    %v2226 = vld [vmem:[%s12 + $0x1c] sm:$0xf]
    %v2227 = vld [vmem:[%s12 + $0x20] sm:$0xf]
    %v2228 = vld [vmem:[%s12 + $0x24] sm:$0xf]
    %v2229 = vld [vmem:[%s12 + $0x28] sm:$0xf]
    %v2230 = vld [vmem:[%s12 + $0x2c] sm:$0xf]
    %v2231 = vld [vmem:[%s12 + $0x30] sm:$0xf]
    %v2232 = vld [vmem:[%s12 + $0x34] sm:$0xf]
    %v2233 = vld [vmem:[%s12 + $0x38] sm:$0xf]
    %v2234 = vld [vmem:[%s12 + $0x3c] sm:$0xf]
    %v2235 = vld [vmem:[%s13] sm:$0x1]
    %v2237 = vperm.slane %v2235, 0
    %v2255 = vunpack.c.l.b16 %v2219
    %v2256 = vunpack.c.l.b16 %v2220
    %v2257 = vunpack.c.l.b16 %v2221
    %v2258 = vunpack.c.l.b16 %v2222
    %v2259 = vunpack.c.l.b16 %v2223
    %v2260 = vunpack.c.l.b16 %v2224
    %v2261 = vunpack.c.l.b16 %v2225
    %v2262 = vunpack.c.l.b16 %v2226
    %v2263 = vunpack.c.l.b16 %v2227
    %v2264 = vunpack.c.l.b16 %v2228
    %v2265 = vunpack.c.l.b16 %v2229
    %v2266 = vunpack.c.l.b16 %v2230
    %v2267 = vunpack.c.l.b16 %v2231
    %v2268 = vunpack.c.l.b16 %v2232
    %v2269 = vunpack.c.l.b16 %v2233
    %v2270 = vunpack.c.l.b16 %v2234
    %v2271 = vpack.c.b16 %v2256, %v2255
    %v2272 = vpack.c.b16 %v2258, %v2257
    %v2273 = vpack.c.b16 %v2260, %v2259
    %v2274 = vpack.c.b16 %v2262, %v2261
    %v2275 = vpack.c.b16 %v2264, %v2263
    %v2276 = vpack.c.b16 %v2266, %v2265
    %v2277 = vpack.c.b16 %v2268, %v2267
    %v2278 = vpack.c.b16 %v2270, %v2269
    %2287 = vmatpush.bf16.msra.mxu0 %v2278
    %2288 = vmatpush.bf16.msra.mxu0 %v2277
    %2289 = vmatpush.bf16.msra.mxu0 %v2276
    %2290 = vmatpush.bf16.msra.mxu0 %v2275
    %2291 = vmatpush.bf16.msra.mxu0 %v2274
    %2292 = vmatpush.bf16.msra.mxu0 %v2273
    %2293 = vmatpush.bf16.msra.mxu0 %v2272
    %2294 = vmatpush.bf16.msra.mxu0 %v2271
    %2295 = vmatmul.bf16.gmra.mxu0 %v2218
    %v2296 = vpop.f32.mrf.mxu0
    %v2297 = vadd.f32 %v2237, %v2296
    %v2298 = vpop.f32.mrf.mxu0
    %2299 = vdwg.mxu0
    %v2300 = vpack.c.bf16 %v2183, %v2183
    %v2301 = vpack.c.bf16 %v2185, %v2185
    %v2302 = vpack.c.bf16 %v2187, %v2187
    %v2303 = vpack.c.bf16 %v2189, %v2189
    %v2304 = vpack.c.bf16 %v2191, %v2191
    %v2305 = vpack.c.bf16 %v2193, %v2193
    %v2306 = vpack.c.bf16 %v2195, %v2195
    %v2307 = vpack.c.bf16 %v2197, %v2197
    %v2308 = vld [vmem:[%s14] sm:$0xf]
    %v2309 = vld [vmem:[%s14 + $0x4] sm:$0xf]
    %v2310 = vld [vmem:[%s14 + $0x8] sm:$0xf]
    %v2311 = vld [vmem:[%s14 + $0xc] sm:$0xf]
    %v2312 = vld [vmem:[%s14 + $0x10] sm:$0xf]
    %v2313 = vld [vmem:[%s14 + $0x14] sm:$0xf]
    %v2314 = vld [vmem:[%s14 + $0x18] sm:$0xf]
    %v2315 = vld [vmem:[%s14 + $0x1c] sm:$0xf]
    %v2316 = vld [vmem:[%s14 + $0x20] sm:$0xf]
    %v2317 = vld [vmem:[%s14 + $0x24] sm:$0xf]
    %v2318 = vld [vmem:[%s14 + $0x28] sm:$0xf]
    %v2319 = vld [vmem:[%s14 + $0x2c] sm:$0xf]
    %v2320 = vld [vmem:[%s14 + $0x30] sm:$0xf]
    %v2321 = vld [vmem:[%s14 + $0x34] sm:$0xf]
    %v2322 = vld [vmem:[%s14 + $0x38] sm:$0xf]
    %v2323 = vld [vmem:[%s14 + $0x3c] sm:$0xf]
    %v2324 = vld [vmem:[%s14 + $0x40] sm:$0xf]
    %v2325 = vld [vmem:[%s14 + $0x44] sm:$0xf]
    %v2326 = vld [vmem:[%s14 + $0x48] sm:$0xf]
    %v2327 = vld [vmem:[%s14 + $0x4c] sm:$0xf]
    %v2328 = vld [vmem:[%s14 + $0x50] sm:$0xf]
    %v2329 = vld [vmem:[%s14 + $0x54] sm:$0xf]
    %v2330 = vld [vmem:[%s14 + $0x58] sm:$0xf]
    %v2331 = vld [vmem:[%s14 + $0x5c] sm:$0xf]
    %v2332 = vld [vmem:[%s14 + $0x60] sm:$0xf]
    %v2333 = vld [vmem:[%s14 + $0x64] sm:$0xf]
    %v2334 = vld [vmem:[%s14 + $0x68] sm:$0xf]
    %v2335 = vld [vmem:[%s14 + $0x6c] sm:$0xf]
    %v2336 = vld [vmem:[%s14 + $0x70] sm:$0xf]
    %v2337 = vld [vmem:[%s14 + $0x74] sm:$0xf]
    %v2338 = vld [vmem:[%s14 + $0x78] sm:$0xf]
    %v2339 = vld [vmem:[%s14 + $0x7c] sm:$0xf]
    %v2340 = vld [vmem:[%s14 + $0x80] sm:$0xf]
    %v2341 = vld [vmem:[%s14 + $0x84] sm:$0xf]
    %v2342 = vld [vmem:[%s14 + $0x88] sm:$0xf]
    %v2343 = vld [vmem:[%s14 + $0x8c] sm:$0xf]
    %v2344 = vld [vmem:[%s14 + $0x90] sm:$0xf]
    %v2345 = vld [vmem:[%s14 + $0x94] sm:$0xf]
    %v2346 = vld [vmem:[%s14 + $0x98] sm:$0xf]
    %v2347 = vld [vmem:[%s14 + $0x9c] sm:$0xf]
    %v2348 = vld [vmem:[%s14 + $0xa0] sm:$0xf]
    %v2349 = vld [vmem:[%s14 + $0xa4] sm:$0xf]
    %v2350 = vld [vmem:[%s14 + $0xa8] sm:$0xf]
    %v2351 = vld [vmem:[%s14 + $0xac] sm:$0xf]
    %v2352 = vld [vmem:[%s14 + $0xb0] sm:$0xf]
    %v2353 = vld [vmem:[%s14 + $0xb4] sm:$0xf]
    %v2354 = vld [vmem:[%s14 + $0xb8] sm:$0xf]
    %v2355 = vld [vmem:[%s14 + $0xbc] sm:$0xf]
    %v2356 = vld [vmem:[%s14 + $0xc0] sm:$0xf]
    %v2357 = vld [vmem:[%s14 + $0xc4] sm:$0xf]
    %v2358 = vld [vmem:[%s14 + $0xc8] sm:$0xf]
    %v2359 = vld [vmem:[%s14 + $0xcc] sm:$0xf]
    %v2360 = vld [vmem:[%s14 + $0xd0] sm:$0xf]
    %v2361 = vld [vmem:[%s14 + $0xd4] sm:$0xf]
    %v2362 = vld [vmem:[%s14 + $0xd8] sm:$0xf]
    %v2363 = vld [vmem:[%s14 + $0xdc] sm:$0xf]
    %v2364 = vld [vmem:[%s14 + $0xe0] sm:$0xf]
    %v2365 = vld [vmem:[%s14 + $0xe4] sm:$0xf]
    %v2366 = vld [vmem:[%s14 + $0xe8] sm:$0xf]
    %v2367 = vld [vmem:[%s14 + $0xec] sm:$0xf]
    %v2368 = vld [vmem:[%s14 + $0xf0] sm:$0xf]
    %v2369 = vld [vmem:[%s14 + $0xf4] sm:$0xf]
    %v2370 = vld [vmem:[%s14 + $0xf8] sm:$0xf]
    %v2371 = vld [vmem:[%s14 + $0xfc] sm:$0xf]
    %v2372 = vld [vmem:[%s14 + $0x100] sm:$0xf]
    %v2373 = vld [vmem:[%s14 + $0x104] sm:$0xf]
    %v2374 = vld [vmem:[%s14 + $0x108] sm:$0xf]
    %v2375 = vld [vmem:[%s14 + $0x10c] sm:$0xf]
    %v2376 = vld [vmem:[%s14 + $0x110] sm:$0xf]
    %v2377 = vld [vmem:[%s14 + $0x114] sm:$0xf]
    %v2378 = vld [vmem:[%s14 + $0x118] sm:$0xf]
    %v2379 = vld [vmem:[%s14 + $0x11c] sm:$0xf]
    %v2380 = vld [vmem:[%s14 + $0x120] sm:$0xf]
    %v2381 = vld [vmem:[%s14 + $0x124] sm:$0xf]
    %v2382 = vld [vmem:[%s14 + $0x128] sm:$0xf]
    %v2383 = vld [vmem:[%s14 + $0x12c] sm:$0xf]
    %v2384 = vld [vmem:[%s14 + $0x130] sm:$0xf]
    %v2385 = vld [vmem:[%s14 + $0x134] sm:$0xf]
    %v2386 = vld [vmem:[%s14 + $0x138] sm:$0xf]
    %v2387 = vld [vmem:[%s14 + $0x13c] sm:$0xf]
    %v2388 = vld [vmem:[%s14 + $0x140] sm:$0xf]
    %v2389 = vld [vmem:[%s14 + $0x144] sm:$0xf]
    %v2390 = vld [vmem:[%s14 + $0x148] sm:$0xf]
    %v2391 = vld [vmem:[%s14 + $0x14c] sm:$0xf]
    %v2392 = vld [vmem:[%s14 + $0x150] sm:$0xf]
    %v2393 = vld [vmem:[%s14 + $0x154] sm:$0xf]
    %v2394 = vld [vmem:[%s14 + $0x158] sm:$0xf]
    %v2395 = vld [vmem:[%s14 + $0x15c] sm:$0xf]
    %v2396 = vld [vmem:[%s14 + $0x160] sm:$0xf]
    %v2397 = vld [vmem:[%s14 + $0x164] sm:$0xf]
    %v2398 = vld [vmem:[%s14 + $0x168] sm:$0xf]
    %v2399 = vld [vmem:[%s14 + $0x16c] sm:$0xf]
    %v2400 = vld [vmem:[%s14 + $0x170] sm:$0xf]
    %v2401 = vld [vmem:[%s14 + $0x174] sm:$0xf]
    %v2402 = vld [vmem:[%s14 + $0x178] sm:$0xf]
    %v2403 = vld [vmem:[%s14 + $0x17c] sm:$0xf]
    %v2404 = vld [vmem:[%s14 + $0x180] sm:$0xf]
    %v2405 = vld [vmem:[%s14 + $0x184] sm:$0xf]
    %v2406 = vld [vmem:[%s14 + $0x188] sm:$0xf]
    %v2407 = vld [vmem:[%s14 + $0x18c] sm:$0xf]
    %v2408 = vld [vmem:[%s14 + $0x190] sm:$0xf]
    %v2409 = vld [vmem:[%s14 + $0x194] sm:$0xf]
    %v2410 = vld [vmem:[%s14 + $0x198] sm:$0xf]
    %v2411 = vld [vmem:[%s14 + $0x19c] sm:$0xf]
    %v2412 = vld [vmem:[%s14 + $0x1a0] sm:$0xf]
    %v2413 = vld [vmem:[%s14 + $0x1a4] sm:$0xf]
    %v2414 = vld [vmem:[%s14 + $0x1a8] sm:$0xf]
    %v2415 = vld [vmem:[%s14 + $0x1ac] sm:$0xf]
    %v2416 = vld [vmem:[%s14 + $0x1b0] sm:$0xf]
    %v2417 = vld [vmem:[%s14 + $0x1b4] sm:$0xf]
    %v2418 = vld [vmem:[%s14 + $0x1b8] sm:$0xf]
    %v2419 = vld [vmem:[%s14 + $0x1bc] sm:$0xf]
    %v2420 = vld [vmem:[%s14 + $0x1c0] sm:$0xf]
    %v2421 = vld [vmem:[%s14 + $0x1c4] sm:$0xf]
    %v2422 = vld [vmem:[%s14 + $0x1c8] sm:$0xf]
    %v2423 = vld [vmem:[%s14 + $0x1cc] sm:$0xf]
    %v2424 = vld [vmem:[%s14 + $0x1d0] sm:$0xf]
    %v2425 = vld [vmem:[%s14 + $0x1d4] sm:$0xf]
    %v2426 = vld [vmem:[%s14 + $0x1d8] sm:$0xf]
    %v2427 = vld [vmem:[%s14 + $0x1dc] sm:$0xf]
    %v2428 = vld [vmem:[%s14 + $0x1e0] sm:$0xf]
    %v2429 = vld [vmem:[%s14 + $0x1e4] sm:$0xf]
    %v2430 = vld [vmem:[%s14 + $0x1e8] sm:$0xf]
    %v2431 = vld [vmem:[%s14 + $0x1ec] sm:$0xf]
    %v2432 = vld [vmem:[%s14 + $0x1f0] sm:$0xf]
    %v2433 = vld [vmem:[%s14 + $0x1f4] sm:$0xf]
    %v2434 = vld [vmem:[%s14 + $0x1f8] sm:$0xf]
    %v2435 = vld [vmem:[%s14 + $0x1fc] sm:$0xf]
    %v2564 = vunpack.c.l.b16 %v2308
    %v2565 = vunpack.c.l.b16 %v2309
    %v2566 = vunpack.c.l.b16 %v2310
    %v2567 = vunpack.c.l.b16 %v2311
    %v2568 = vunpack.c.l.b16 %v2312
    %v2569 = vunpack.c.l.b16 %v2313
    %v2570 = vunpack.c.l.b16 %v2314
    %v2571 = vunpack.c.l.b16 %v2315
    %v2572 = vunpack.c.l.b16 %v2316
    %v2573 = vunpack.c.l.b16 %v2317
    %v2574 = vunpack.c.l.b16 %v2318
    %v2575 = vunpack.c.l.b16 %v2319
    %v2576 = vunpack.c.l.b16 %v2320
    %v2577 = vunpack.c.l.b16 %v2321
    %v2578 = vunpack.c.l.b16 %v2322
    %v2579 = vunpack.c.l.b16 %v2323
    %v2580 = vunpack.c.l.b16 %v2324
    %v2581 = vunpack.c.l.b16 %v2325
    %v2582 = vunpack.c.l.b16 %v2326
    %v2583 = vunpack.c.l.b16 %v2327
    %v2584 = vunpack.c.l.b16 %v2328
    %v2585 = vunpack.c.l.b16 %v2329
    %v2586 = vunpack.c.l.b16 %v2330
    %v2587 = vunpack.c.l.b16 %v2331
    %v2588 = vunpack.c.l.b16 %v2332
    %v2589 = vunpack.c.l.b16 %v2333
    %v2590 = vunpack.c.l.b16 %v2334
    %v2591 = vunpack.c.l.b16 %v2335
    %v2592 = vunpack.c.l.b16 %v2336
    %v2593 = vunpack.c.l.b16 %v2337
    %v2594 = vunpack.c.l.b16 %v2338
    %v2595 = vunpack.c.l.b16 %v2339
    %v2596 = vunpack.c.l.b16 %v2340
    %v2597 = vunpack.c.l.b16 %v2341
    %v2598 = vunpack.c.l.b16 %v2342
    %v2599 = vunpack.c.l.b16 %v2343
    %v2600 = vunpack.c.l.b16 %v2344
    %v2601 = vunpack.c.l.b16 %v2345
    %v2602 = vunpack.c.l.b16 %v2346
    %v2603 = vunpack.c.l.b16 %v2347
    %v2604 = vunpack.c.l.b16 %v2348
    %v2605 = vunpack.c.l.b16 %v2349
    %v2606 = vunpack.c.l.b16 %v2350
    %v2607 = vunpack.c.l.b16 %v2351
    %v2608 = vunpack.c.l.b16 %v2352
    %v2609 = vunpack.c.l.b16 %v2353
    %v2610 = vunpack.c.l.b16 %v2354
    %v2611 = vunpack.c.l.b16 %v2355
    %v2612 = vunpack.c.l.b16 %v2356
    %v2613 = vunpack.c.l.b16 %v2357
    %v2614 = vunpack.c.l.b16 %v2358
    %v2615 = vunpack.c.l.b16 %v2359
    %v2616 = vunpack.c.l.b16 %v2360
    %v2617 = vunpack.c.l.b16 %v2361
    %v2618 = vunpack.c.l.b16 %v2362
    %v2619 = vunpack.c.l.b16 %v2363
    %v2620 = vunpack.c.l.b16 %v2364
    %v2621 = vunpack.c.l.b16 %v2365
    %v2622 = vunpack.c.l.b16 %v2366
    %v2623 = vunpack.c.l.b16 %v2367
    %v2624 = vunpack.c.l.b16 %v2368
    %v2625 = vunpack.c.l.b16 %v2369
    %v2626 = vunpack.c.l.b16 %v2370
    %v2627 = vunpack.c.l.b16 %v2371
    %v2628 = vunpack.c.l.b16 %v2372
    %v2629 = vunpack.c.l.b16 %v2373
    %v2630 = vunpack.c.l.b16 %v2374
    %v2631 = vunpack.c.l.b16 %v2375
    %v2632 = vunpack.c.l.b16 %v2376
    %v2633 = vunpack.c.l.b16 %v2377
    %v2634 = vunpack.c.l.b16 %v2378
    %v2635 = vunpack.c.l.b16 %v2379
    %v2636 = vunpack.c.l.b16 %v2380
    %v2637 = vunpack.c.l.b16 %v2381
    %v2638 = vunpack.c.l.b16 %v2382
    %v2639 = vunpack.c.l.b16 %v2383
    %v2640 = vunpack.c.l.b16 %v2384
    %v2641 = vunpack.c.l.b16 %v2385
    %v2642 = vunpack.c.l.b16 %v2386
    %v2643 = vunpack.c.l.b16 %v2387
    %v2644 = vunpack.c.l.b16 %v2388
    %v2645 = vunpack.c.l.b16 %v2389
    %v2646 = vunpack.c.l.b16 %v2390
    %v2647 = vunpack.c.l.b16 %v2391
    %v2648 = vunpack.c.l.b16 %v2392
    %v2649 = vunpack.c.l.b16 %v2393
    %v2650 = vunpack.c.l.b16 %v2394
    %v2651 = vunpack.c.l.b16 %v2395
    %v2652 = vunpack.c.l.b16 %v2396
    %v2653 = vunpack.c.l.b16 %v2397
    %v2654 = vunpack.c.l.b16 %v2398
    %v2655 = vunpack.c.l.b16 %v2399
    %v2656 = vunpack.c.l.b16 %v2400
    %v2657 = vunpack.c.l.b16 %v2401
    %v2658 = vunpack.c.l.b16 %v2402
    %v2659 = vunpack.c.l.b16 %v2403
    %v2660 = vunpack.c.l.b16 %v2404
    %v2661 = vunpack.c.l.b16 %v2405
    %v2662 = vunpack.c.l.b16 %v2406
    %v2663 = vunpack.c.l.b16 %v2407
    %v2664 = vunpack.c.l.b16 %v2408
    %v2665 = vunpack.c.l.b16 %v2409
    %v2666 = vunpack.c.l.b16 %v2410
    %v2667 = vunpack.c.l.b16 %v2411
    %v2668 = vunpack.c.l.b16 %v2412
    %v2669 = vunpack.c.l.b16 %v2413
    %v2670 = vunpack.c.l.b16 %v2414
    %v2671 = vunpack.c.l.b16 %v2415
    %v2672 = vunpack.c.l.b16 %v2416
    %v2673 = vunpack.c.l.b16 %v2417
    %v2674 = vunpack.c.l.b16 %v2418
    %v2675 = vunpack.c.l.b16 %v2419
    %v2676 = vunpack.c.l.b16 %v2420
    %v2677 = vunpack.c.l.b16 %v2421
    %v2678 = vunpack.c.l.b16 %v2422
    %v2679 = vunpack.c.l.b16 %v2423
    %v2680 = vunpack.c.l.b16 %v2424
    %v2681 = vunpack.c.l.b16 %v2425
    %v2682 = vunpack.c.l.b16 %v2426
    %v2683 = vunpack.c.l.b16 %v2427
    %v2684 = vunpack.c.l.b16 %v2428
    %v2685 = vunpack.c.l.b16 %v2429
    %v2686 = vunpack.c.l.b16 %v2430
    %v2687 = vunpack.c.l.b16 %v2431
    %v2688 = vunpack.c.l.b16 %v2432
    %v2689 = vunpack.c.l.b16 %v2433
    %v2690 = vunpack.c.l.b16 %v2434
    %v2691 = vunpack.c.l.b16 %v2435
    %v2692 = vpack.c.b16 %v2565, %v2564
    %v2693 = vpack.c.b16 %v2567, %v2566
    %v2694 = vpack.c.b16 %v2569, %v2568
    %v2695 = vpack.c.b16 %v2571, %v2570
    %v2696 = vpack.c.b16 %v2573, %v2572
    %v2697 = vpack.c.b16 %v2575, %v2574
    %v2698 = vpack.c.b16 %v2577, %v2576
    %v2699 = vpack.c.b16 %v2579, %v2578
    %v2700 = vpack.c.b16 %v2581, %v2580
    %v2701 = vpack.c.b16 %v2583, %v2582
    %v2702 = vpack.c.b16 %v2585, %v2584
    %v2703 = vpack.c.b16 %v2587, %v2586
    %v2704 = vpack.c.b16 %v2589, %v2588
    %v2705 = vpack.c.b16 %v2591, %v2590
    %v2706 = vpack.c.b16 %v2593, %v2592
    %v2707 = vpack.c.b16 %v2595, %v2594
    %v2708 = vpack.c.b16 %v2597, %v2596
    %v2709 = vpack.c.b16 %v2599, %v2598
    %v2710 = vpack.c.b16 %v2601, %v2600
    %v2711 = vpack.c.b16 %v2603, %v2602
    %v2712 = vpack.c.b16 %v2605, %v2604
    %v2713 = vpack.c.b16 %v2607, %v2606
    %v2714 = vpack.c.b16 %v2609, %v2608
    %v2715 = vpack.c.b16 %v2611, %v2610
    %v2716 = vpack.c.b16 %v2613, %v2612
    %v2717 = vpack.c.b16 %v2615, %v2614
    %v2718 = vpack.c.b16 %v2617, %v2616
    %v2719 = vpack.c.b16 %v2619, %v2618
    %v2720 = vpack.c.b16 %v2621, %v2620
    %v2721 = vpack.c.b16 %v2623, %v2622
    %v2722 = vpack.c.b16 %v2625, %v2624
    %v2723 = vpack.c.b16 %v2627, %v2626
    %v2724 = vpack.c.b16 %v2629, %v2628
    %v2725 = vpack.c.b16 %v2631, %v2630
    %v2726 = vpack.c.b16 %v2633, %v2632
    %v2727 = vpack.c.b16 %v2635, %v2634
    %v2728 = vpack.c.b16 %v2637, %v2636
    %v2729 = vpack.c.b16 %v2639, %v2638
    %v2730 = vpack.c.b16 %v2641, %v2640
    %v2731 = vpack.c.b16 %v2643, %v2642
    %v2732 = vpack.c.b16 %v2645, %v2644
    %v2733 = vpack.c.b16 %v2647, %v2646
    %v2734 = vpack.c.b16 %v2649, %v2648
    %v2735 = vpack.c.b16 %v2651, %v2650
    %v2736 = vpack.c.b16 %v2653, %v2652
    %v2737 = vpack.c.b16 %v2655, %v2654
    %v2738 = vpack.c.b16 %v2657, %v2656
    %v2739 = vpack.c.b16 %v2659, %v2658
    %v2740 = vpack.c.b16 %v2661, %v2660
    %v2741 = vpack.c.b16 %v2663, %v2662
    %v2742 = vpack.c.b16 %v2665, %v2664
    %v2743 = vpack.c.b16 %v2667, %v2666
    %v2744 = vpack.c.b16 %v2669, %v2668
    %v2745 = vpack.c.b16 %v2671, %v2670
    %v2746 = vpack.c.b16 %v2673, %v2672
    %v2747 = vpack.c.b16 %v2675, %v2674
    %v2748 = vpack.c.b16 %v2677, %v2676
    %v2749 = vpack.c.b16 %v2679, %v2678
    %v2750 = vpack.c.b16 %v2681, %v2680
    %v2751 = vpack.c.b16 %v2683, %v2682
    %v2752 = vpack.c.b16 %v2685, %v2684
    %v2753 = vpack.c.b16 %v2687, %v2686
    %v2754 = vpack.c.b16 %v2689, %v2688
    %v2755 = vpack.c.b16 %v2691, %v2690
    %2820 = vmatpush.bf16.msra.mxu0 %v2699
    %2821 = vmatpush.bf16.msra.mxu0 %v2698
    %2822 = vmatpush.bf16.msra.mxu0 %v2697
    %2823 = vmatpush.bf16.msra.mxu0 %v2696
    %2824 = vmatpush.bf16.msra.mxu0 %v2695
    %2825 = vmatpush.bf16.msra.mxu0 %v2694
    %2826 = vmatpush.bf16.msra.mxu0 %v2693
    %2827 = vmatpush.bf16.msra.mxu0 %v2692
    %2828 = vmatmul.bf16.gmra.mxu0 %v2300
    %v2829 = vpop.f32.mrf.mxu0
    %v2830 = vadd.f32 0.0, %v2829
    %v2831 = vpop.f32.mrf.mxu0
    %2832 = vdwg.mxu0
    %2833 = vmatpush.bf16.msra.mxu0 %v2707
    %2834 = vmatpush.bf16.msra.mxu0 %v2706
    %2835 = vmatpush.bf16.msra.mxu0 %v2705
    %2836 = vmatpush.bf16.msra.mxu0 %v2704
    %2837 = vmatpush.bf16.msra.mxu0 %v2703
    %2838 = vmatpush.bf16.msra.mxu0 %v2702
    %2839 = vmatpush.bf16.msra.mxu0 %v2701
    %2840 = vmatpush.bf16.msra.mxu0 %v2700
    %2841 = vmatmul.bf16.gmra.mxu0 %v2301
    %v2842 = vpop.f32.mrf.mxu0
    %v2843 = vadd.f32 %v2830, %v2842
    %v2844 = vpop.f32.mrf.mxu0
    %2845 = vdwg.mxu0
    %2846 = vmatpush.bf16.msra.mxu0 %v2715
    %2847 = vmatpush.bf16.msra.mxu0 %v2714
    %2848 = vmatpush.bf16.msra.mxu0 %v2713
    %2849 = vmatpush.bf16.msra.mxu0 %v2712
    %2850 = vmatpush.bf16.msra.mxu0 %v2711
    %2851 = vmatpush.bf16.msra.mxu0 %v2710
    %2852 = vmatpush.bf16.msra.mxu0 %v2709
    %2853 = vmatpush.bf16.msra.mxu0 %v2708
    %2854 = vmatmul.bf16.gmra.mxu0 %v2302
    %v2855 = vpop.f32.mrf.mxu0
    %v2856 = vadd.f32 %v2843, %v2855
    %v2857 = vpop.f32.mrf.mxu0
    %2858 = vdwg.mxu0
    %2859 = vmatpush.bf16.msra.mxu0 %v2723
    %2860 = vmatpush.bf16.msra.mxu0 %v2722
    %2861 = vmatpush.bf16.msra.mxu0 %v2721
    %2862 = vmatpush.bf16.msra.mxu0 %v2720
    %2863 = vmatpush.bf16.msra.mxu0 %v2719
    %2864 = vmatpush.bf16.msra.mxu0 %v2718
    %2865 = vmatpush.bf16.msra.mxu0 %v2717
    %2866 = vmatpush.bf16.msra.mxu0 %v2716
    %2867 = vmatmul.bf16.gmra.mxu0 %v2303
    %v2868 = vpop.f32.mrf.mxu0
    %v2869 = vadd.f32 %v2856, %v2868
    %v2870 = vpop.f32.mrf.mxu0
    %2871 = vdwg.mxu0
    %2872 = vmatpush.bf16.msra.mxu0 %v2731
    %2873 = vmatpush.bf16.msra.mxu0 %v2730
    %2874 = vmatpush.bf16.msra.mxu0 %v2729
    %2875 = vmatpush.bf16.msra.mxu0 %v2728
    %2876 = vmatpush.bf16.msra.mxu0 %v2727
    %2877 = vmatpush.bf16.msra.mxu0 %v2726
    %2878 = vmatpush.bf16.msra.mxu0 %v2725
    %2879 = vmatpush.bf16.msra.mxu0 %v2724
    %2880 = vmatmul.bf16.gmra.mxu0 %v2304
    %v2881 = vpop.f32.mrf.mxu0
    %v2882 = vadd.f32 %v2869, %v2881
    %v2883 = vpop.f32.mrf.mxu0
    %2884 = vdwg.mxu0
    %2885 = vmatpush.bf16.msra.mxu0 %v2739
    %2886 = vmatpush.bf16.msra.mxu0 %v2738
    %2887 = vmatpush.bf16.msra.mxu0 %v2737
    %2888 = vmatpush.bf16.msra.mxu0 %v2736
    %2889 = vmatpush.bf16.msra.mxu0 %v2735
    %2890 = vmatpush.bf16.msra.mxu0 %v2734
    %2891 = vmatpush.bf16.msra.mxu0 %v2733
    %2892 = vmatpush.bf16.msra.mxu0 %v2732
    %2893 = vmatmul.bf16.gmra.mxu0 %v2305
    %v2894 = vpop.f32.mrf.mxu0
    %v2895 = vadd.f32 %v2882, %v2894
    %v2896 = vpop.f32.mrf.mxu0
    %2897 = vdwg.mxu0
    %2898 = vmatpush.bf16.msra.mxu0 %v2747
    %2899 = vmatpush.bf16.msra.mxu0 %v2746
    %2900 = vmatpush.bf16.msra.mxu0 %v2745
    %2901 = vmatpush.bf16.msra.mxu0 %v2744
    %2902 = vmatpush.bf16.msra.mxu0 %v2743
    %2903 = vmatpush.bf16.msra.mxu0 %v2742
    %2904 = vmatpush.bf16.msra.mxu0 %v2741
    %2905 = vmatpush.bf16.msra.mxu0 %v2740
    %2906 = vmatmul.bf16.gmra.mxu0 %v2306
    %v2907 = vpop.f32.mrf.mxu0
    %v2908 = vadd.f32 %v2895, %v2907
    %v2909 = vpop.f32.mrf.mxu0
    %2910 = vdwg.mxu0
    %2911 = vmatpush.bf16.msra.mxu0 %v2755
    %2912 = vmatpush.bf16.msra.mxu0 %v2754
    %2913 = vmatpush.bf16.msra.mxu0 %v2753
    %2914 = vmatpush.bf16.msra.mxu0 %v2752
    %2915 = vmatpush.bf16.msra.mxu0 %v2751
    %2916 = vmatpush.bf16.msra.mxu0 %v2750
    %2917 = vmatpush.bf16.msra.mxu0 %v2749
    %2918 = vmatpush.bf16.msra.mxu0 %v2748
    %2919 = vmatmul.bf16.gmra.mxu0 %v2307
    %v2920 = vpop.f32.mrf.mxu0
    %v2921 = vadd.f32 %v2908, %v2920
    %v2922 = vpop.f32.mrf.mxu0
    %2923 = vdwg.mxu0
    %v2924 = vadd.f32 %v2297, %v2921
    %2925 = vadd.xlane.f32.xlu0 %v2924
    %v2926 = vpop.xlane.xlu0 %2925
    %v2927 = vmul.f32 %v2924, %v2924
    %2928 = vadd.xlane.f32.xlu0 %v2927
    %v2929 = vpop.xlane.xlu0 %2928
    %v2930 = vmul.f32 %v2926, 0.03125
    %v2931 = vmul.f32 %v2929, 0.03125
    %v2932 = vmul.f32 %v2930, %v2930
    %v2933 = vsub.f32 %v2931, %v2932
    %v2934 = vsub.f32 %v2924, %v2930
    %v2935 = vadd.f32 %v2933, 1e-05
    %v2936 = vrsqrt.pop %v2935
    %v2937 = vmul.f32 %v2936, %v2935
    %v2938 = vmul.f32 %v2937, %v2936
    %v2939 = vmul.f32 0.5, %v2938
    %v2940 = vsub.f32 1.5, %v2939
    %v2941 = vmul.f32 %v2936, %v2940
    %vm2942 = vweird.f32 %v2935
    %vm2943 = vweird.f32 %v2936
    %vm2944 = vmor %vm2942, %vm2943
    %v2945 = vsel %vm2944, %v2936, %v2941
    %v2946 = vmul.f32 %v2934, %v2945
    %v2947 = vld [vmem:[%s15] sm:$0x1]
    %v2949 = vperm.slane %v2947, 0
    %v2951 = vmul.f32 %v2946, %v2949
    %v2952 = vld [vmem:[%s16] sm:$0x1]
    %v2954 = vperm.slane %v2952, 0
    %v2956 = vadd.f32 %v2951, %v2954
    %v2958 = vrot.slane %v2956, 1
    %v2959 = vrot.slane %v2956, 2
    %v2960 = vrot.slane %v2956, 3
    %v2961 = vrot.slane %v2956, 4
    %v2962 = vrot.slane %v2956, 5
    %v2963 = vrot.slane %v2956, 6
    %v2964 = vrot.slane %v2956, 7
    %v2965 = vperm.slane %v2956, 0
    %v2966 = vperm.slane %v2958, 0
    %v2967 = vperm.slane %v2959, 0
    %v2968 = vperm.slane %v2960, 0
    %v2969 = vperm.slane %v2961, 0
    %v2970 = vperm.slane %v2962, 0
    %v2971 = vperm.slane %v2963, 0
    %v2972 = vperm.slane %v2964, 0
    %v2981 = vsub.f32 %v2965, %v1069
    %v2982 = vsub.f32 %v2966, %v1069
    %v2983 = vsub.f32 %v2967, %v1069
    %v2984 = vsub.f32 %v2968, %v1069
    %v2985 = vsub.f32 %v2969, %v1069
    %v2986 = vsub.f32 %v2970, %v1069
    %v2987 = vsub.f32 %v2971, %v1069
    %v2988 = vsub.f32 %v2972, %v1069
    %v2989 = vmul.f32 %v2981, 1.75
    %v2990 = vmul.f32 %v2982, 1.75
    %v2991 = vmul.f32 %v2983, 1.75
    %v2992 = vmul.f32 %v2984, 1.75
    %v2993 = vmul.f32 %v2985, 1.75
    %v2994 = vmul.f32 %v2986, 1.75
    %v2995 = vmul.f32 %v2987, 1.75
    %v2996 = vmul.f32 %v2988, 1.75
    %v2997 = vmul.f32 %v2989, %v2989
    %v2998 = vmul.f32 %v2990, %v2990
    %v2999 = vmul.f32 %v2991, %v2991
    %v3000 = vmul.f32 %v2992, %v2992
    %v3001 = vmul.f32 %v2993, %v2993
    %v3002 = vmul.f32 %v2994, %v2994
    %v3003 = vmul.f32 %v2995, %v2995
    %v3004 = vmul.f32 %v2996, %v2996
    %v3005 = vsub.f32 0.0, %v2997
    %v3006 = vsub.f32 0.0, %v2998
    %v3007 = vsub.f32 0.0, %v2999
    %v3008 = vsub.f32 0.0, %v3000
    %v3009 = vsub.f32 0.0, %v3001
    %v3010 = vsub.f32 0.0, %v3002
    %v3011 = vsub.f32 0.0, %v3003
    %v3012 = vsub.f32 0.0, %v3004
    %v3013 = vmul.f32 %v3005, 1.442695
    %v3014 = vpow.pop %v3013
    %v3015 = vmul.f32 %v3006, 1.442695
    %v3016 = vpow.pop %v3015
    %v3017 = vmul.f32 %v3007, 1.442695
    %v3018 = vpow.pop %v3017
    %v3019 = vmul.f32 %v3008, 1.442695
    %v3020 = vpow.pop %v3019
    %v3021 = vmul.f32 %v3009, 1.442695
    %v3022 = vpow.pop %v3021
    %v3023 = vmul.f32 %v3010, 1.442695
    %v3024 = vpow.pop %v3023
    %v3025 = vmul.f32 %v3011, 1.442695
    %v3026 = vpow.pop %v3025
    %v3027 = vmul.f32 %v3012, 1.442695
    %v3028 = vpow.pop %v3027
    %v3029 = vrot.slane %v3018, 4
    %v3030 = vsel %vm1143, %v3029, %v3014
    %v3031 = vrot.slane %v3014, 4
    %v3032 = vsel %vm1143, %v3018, %v3031
    %v3034 = vunpack.c.l.s4 1983009808
    %v3035 = vunpack.c.0.s8 %v3034
    %v3036 = vperm.slane %v3030, %v3035
    %v3038 = vunpack.c.l.s4 1983009808
    %v3039 = vunpack.c.0.s8 %v3038
    %v3040 = vperm.slane %v3032, %v3039
    %v3041 = vrot.slane %v3020, 4
    %v3042 = vsel %vm1143, %v3041, %v3016
    %v3043 = vrot.slane %v3016, 4
    %v3044 = vsel %vm1143, %v3020, %v3043
    %v3046 = vunpack.c.l.s4 1983009808
    %v3047 = vunpack.c.0.s8 %v3046
    %v3048 = vperm.slane %v3042, %v3047
    %v3050 = vunpack.c.l.s4 1983009808
    %v3051 = vunpack.c.0.s8 %v3050
    %v3052 = vperm.slane %v3044, %v3051
    %v3053 = vrot.slane %v3026, 4
    %v3054 = vsel %vm1143, %v3053, %v3022
    %v3055 = vrot.slane %v3022, 4
    %v3056 = vsel %vm1143, %v3026, %v3055
    %v3058 = vunpack.c.l.s4 1983009808
    %v3059 = vunpack.c.0.s8 %v3058
    %v3060 = vperm.slane %v3054, %v3059
    %v3062 = vunpack.c.l.s4 1983009808
    %v3063 = vunpack.c.0.s8 %v3062
    %v3064 = vperm.slane %v3056, %v3063
    %v3065 = vrot.slane %v3028, 4
    %v3066 = vsel %vm1143, %v3065, %v3024
    %v3067 = vrot.slane %v3024, 4
    %v3068 = vsel %vm1143, %v3028, %v3067
    %v3070 = vunpack.c.l.s4 1983009808
    %v3071 = vunpack.c.0.s8 %v3070
    %v3072 = vperm.slane %v3066, %v3071
    %v3074 = vunpack.c.l.s4 1983009808
    %v3075 = vunpack.c.0.s8 %v3074
    %v3076 = vperm.slane %v3068, %v3075
    %v3077 = vrot.slane %v3048, 4
    %v3078 = vsel %vm1143, %v3077, %v3036
    %v3079 = vrot.slane %v3036, 4
    %v3080 = vsel %vm1143, %v3048, %v3079
    %v3082 = vunpack.c.l.s4 1934713408
    %v3083 = vunpack.c.0.s8 %v3082
    %v3084 = vperm.slane %v3078, %v3083
    %v3086 = vunpack.c.l.s4 1934713408
    %v3087 = vunpack.c.0.s8 %v3086
    %v3088 = vperm.slane %v3080, %v3087
    %v3089 = vrot.slane %v3052, 4
    %v3090 = vsel %vm1143, %v3089, %v3040
    %v3091 = vrot.slane %v3040, 4
    %v3092 = vsel %vm1143, %v3052, %v3091
    %v3094 = vunpack.c.l.s4 1934713408
    %v3095 = vunpack.c.0.s8 %v3094
    %v3096 = vperm.slane %v3090, %v3095
    %v3098 = vunpack.c.l.s4 1934713408
    %v3099 = vunpack.c.0.s8 %v3098
    %v3100 = vperm.slane %v3092, %v3099
    %v3101 = vrot.slane %v3072, 4
    %v3102 = vsel %vm1143, %v3101, %v3060
    %v3103 = vrot.slane %v3060, 4
    %v3104 = vsel %vm1143, %v3072, %v3103
    %v3106 = vunpack.c.l.s4 1934713408
    %v3107 = vunpack.c.0.s8 %v3106
    %v3108 = vperm.slane %v3102, %v3107
    %v3110 = vunpack.c.l.s4 1934713408
    %v3111 = vunpack.c.0.s8 %v3110
    %v3112 = vperm.slane %v3104, %v3111
    %v3113 = vrot.slane %v3076, 4
    %v3114 = vsel %vm1143, %v3113, %v3064
    %v3115 = vrot.slane %v3064, 4
    %v3116 = vsel %vm1143, %v3076, %v3115
    %v3118 = vunpack.c.l.s4 1934713408
    %v3119 = vunpack.c.0.s8 %v3118
    %v3120 = vperm.slane %v3114, %v3119
    %v3122 = vunpack.c.l.s4 1934713408
    %v3123 = vunpack.c.0.s8 %v3122
    %v3124 = vperm.slane %v3116, %v3123
    %v3125 = vrot.slane %v3108, 4
    %v3126 = vsel %vm1143, %v3125, %v3084
    %v3127 = vrot.slane %v3084, 4
    %v3128 = vsel %vm1143, %v3108, %v3127
    %v3129 = vrot.slane %v3112, 4
    %v3130 = vsel %vm1143, %v3129, %v3088
    %v3131 = vrot.slane %v3088, 4
    %v3132 = vsel %vm1143, %v3112, %v3131
    %v3133 = vrot.slane %v3120, 4
    %v3134 = vsel %vm1143, %v3133, %v3096
    %v3135 = vrot.slane %v3096, 4
    %v3136 = vsel %vm1143, %v3120, %v3135
    %v3137 = vrot.slane %v3124, 4
    %v3138 = vsel %vm1143, %v3137, %v3100
    %v3139 = vrot.slane %v3100, 4
    %v3140 = vsel %vm1143, %v3124, %v3139
    %v3141 = vxor.u32 %v2924, 2147483648
    %v3142 = vmul.f32 %v3141, 1.442695
    %v3143 = vpow.pop %v3142
    %v3144 = vadd.f32 %v3143, 1.0
    %v3145 = vrcp.pop %v3144
    %v3146 = vmul.f32 %v3144, %v3145
    %v3147 = vsub.f32 1.0, %v3146
    %v3148 = vmul.f32 %v3145, %v3147
    %v3149 = vadd.f32 %v3145, %v3148
    %vm3150 = vweird.f32 %v3144
    %vm3151 = vweird.f32 %v3145
    %vm3152 = vmor %vm3150, %vm3151
    %v3153 = vsel %vm3152, %v3145, %v3149
    %v3154 = vand.u32 2147483647, %v3144
    %vm3155 = vcmp.eq.f32.partialorder %v3154, 8.507059e+37
    %v3156 = vand.u32 %v3144, 2147483648
    %v3157 = vor.u32 1.1754944e-38, %v3156
    %v3158 = vsel %vm3155, %v3157, %v3153
    %v3159 = vmul.f32 1.0, %v3158
    %v3160 = vmul.f32 %v2924, %v3159
    %v3161 = vpack.c.bf16 %v3160, %v3160
    %v3162 = vld [vmem:[%s17] sm:$0xf]
    %v3163 = vld [vmem:[%s17 + $0x4] sm:$0xf]
    %v3164 = vld [vmem:[%s17 + $0x8] sm:$0xf]
    %v3165 = vld [vmem:[%s17 + $0xc] sm:$0xf]
    %v3166 = vld [vmem:[%s17 + $0x10] sm:$0xf]
    %v3167 = vld [vmem:[%s17 + $0x14] sm:$0xf]
    %v3168 = vld [vmem:[%s17 + $0x18] sm:$0xf]
    %v3169 = vld [vmem:[%s17 + $0x1c] sm:$0xf]
    %v3170 = vld [vmem:[%s17 + $0x20] sm:$0xf]
    %v3171 = vld [vmem:[%s17 + $0x24] sm:$0xf]
    %v3172 = vld [vmem:[%s17 + $0x28] sm:$0xf]
    %v3173 = vld [vmem:[%s17 + $0x2c] sm:$0xf]
    %v3174 = vld [vmem:[%s17 + $0x30] sm:$0xf]
    %v3175 = vld [vmem:[%s17 + $0x34] sm:$0xf]
    %v3176 = vld [vmem:[%s17 + $0x38] sm:$0xf]
    %v3177 = vld [vmem:[%s17 + $0x3c] sm:$0xf]
    %v3178 = vld [vmem:[%s18] sm:$0x1]
    %v3180 = vperm.slane %v3178, 0
    %v3198 = vunpack.c.l.b16 %v3162
    %v3199 = vunpack.c.l.b16 %v3163
    %v3200 = vunpack.c.l.b16 %v3164
    %v3201 = vunpack.c.l.b16 %v3165
    %v3202 = vunpack.c.l.b16 %v3166
    %v3203 = vunpack.c.l.b16 %v3167
    %v3204 = vunpack.c.l.b16 %v3168
    %v3205 = vunpack.c.l.b16 %v3169
    %v3206 = vunpack.c.l.b16 %v3170
    %v3207 = vunpack.c.l.b16 %v3171
    %v3208 = vunpack.c.l.b16 %v3172
    %v3209 = vunpack.c.l.b16 %v3173
    %v3210 = vunpack.c.l.b16 %v3174
    %v3211 = vunpack.c.l.b16 %v3175
    %v3212 = vunpack.c.l.b16 %v3176
    %v3213 = vunpack.c.l.b16 %v3177
    %v3214 = vpack.c.b16 %v3199, %v3198
    %v3215 = vpack.c.b16 %v3201, %v3200
    %v3216 = vpack.c.b16 %v3203, %v3202
    %v3217 = vpack.c.b16 %v3205, %v3204
    %v3218 = vpack.c.b16 %v3207, %v3206
    %v3219 = vpack.c.b16 %v3209, %v3208
    %v3220 = vpack.c.b16 %v3211, %v3210
    %v3221 = vpack.c.b16 %v3213, %v3212
    %3230 = vmatpush.bf16.msra.mxu0 %v3221
    %3231 = vmatpush.bf16.msra.mxu0 %v3220
    %3232 = vmatpush.bf16.msra.mxu0 %v3219
    %3233 = vmatpush.bf16.msra.mxu0 %v3218
    %3234 = vmatpush.bf16.msra.mxu0 %v3217
    %3235 = vmatpush.bf16.msra.mxu0 %v3216
    %3236 = vmatpush.bf16.msra.mxu0 %v3215
    %3237 = vmatpush.bf16.msra.mxu0 %v3214
    %3238 = vmatmul.bf16.gmra.mxu0 %v3161
    %v3239 = vpop.f32.mrf.mxu0
    %v3240 = vadd.f32 %v3180, %v3239
    %v3241 = vpop.f32.mrf.mxu0
    %3242 = vdwg.mxu0
    %v3243 = vpack.c.bf16 %v3126, %v3126
    %v3244 = vpack.c.bf16 %v3128, %v3128
    %v3245 = vpack.c.bf16 %v3130, %v3130
    %v3246 = vpack.c.bf16 %v3132, %v3132
    %v3247 = vpack.c.bf16 %v3134, %v3134
    %v3248 = vpack.c.bf16 %v3136, %v3136
    %v3249 = vpack.c.bf16 %v3138, %v3138
    %v3250 = vpack.c.bf16 %v3140, %v3140
    %v3251 = vld [vmem:[%s19] sm:$0xf]
    %v3252 = vld [vmem:[%s19 + $0x4] sm:$0xf]
    %v3253 = vld [vmem:[%s19 + $0x8] sm:$0xf]
    %v3254 = vld [vmem:[%s19 + $0xc] sm:$0xf]
    %v3255 = vld [vmem:[%s19 + $0x10] sm:$0xf]
    %v3256 = vld [vmem:[%s19 + $0x14] sm:$0xf]
    %v3257 = vld [vmem:[%s19 + $0x18] sm:$0xf]
    %v3258 = vld [vmem:[%s19 + $0x1c] sm:$0xf]
    %v3259 = vld [vmem:[%s19 + $0x20] sm:$0xf]
    %v3260 = vld [vmem:[%s19 + $0x24] sm:$0xf]
    %v3261 = vld [vmem:[%s19 + $0x28] sm:$0xf]
    %v3262 = vld [vmem:[%s19 + $0x2c] sm:$0xf]
    %v3263 = vld [vmem:[%s19 + $0x30] sm:$0xf]
    %v3264 = vld [vmem:[%s19 + $0x34] sm:$0xf]
    %v3265 = vld [vmem:[%s19 + $0x38] sm:$0xf]
    %v3266 = vld [vmem:[%s19 + $0x3c] sm:$0xf]
    %v3267 = vld [vmem:[%s19 + $0x40] sm:$0xf]
    %v3268 = vld [vmem:[%s19 + $0x44] sm:$0xf]
    %v3269 = vld [vmem:[%s19 + $0x48] sm:$0xf]
    %v3270 = vld [vmem:[%s19 + $0x4c] sm:$0xf]
    %v3271 = vld [vmem:[%s19 + $0x50] sm:$0xf]
    %v3272 = vld [vmem:[%s19 + $0x54] sm:$0xf]
    %v3273 = vld [vmem:[%s19 + $0x58] sm:$0xf]
    %v3274 = vld [vmem:[%s19 + $0x5c] sm:$0xf]
    %v3275 = vld [vmem:[%s19 + $0x60] sm:$0xf]
    %v3276 = vld [vmem:[%s19 + $0x64] sm:$0xf]
    %v3277 = vld [vmem:[%s19 + $0x68] sm:$0xf]
    %v3278 = vld [vmem:[%s19 + $0x6c] sm:$0xf]
    %v3279 = vld [vmem:[%s19 + $0x70] sm:$0xf]
    %v3280 = vld [vmem:[%s19 + $0x74] sm:$0xf]
    %v3281 = vld [vmem:[%s19 + $0x78] sm:$0xf]
    %v3282 = vld [vmem:[%s19 + $0x7c] sm:$0xf]
    %v3283 = vld [vmem:[%s19 + $0x80] sm:$0xf]
    %v3284 = vld [vmem:[%s19 + $0x84] sm:$0xf]
    %v3285 = vld [vmem:[%s19 + $0x88] sm:$0xf]
    %v3286 = vld [vmem:[%s19 + $0x8c] sm:$0xf]
    %v3287 = vld [vmem:[%s19 + $0x90] sm:$0xf]
    %v3288 = vld [vmem:[%s19 + $0x94] sm:$0xf]
    %v3289 = vld [vmem:[%s19 + $0x98] sm:$0xf]
    %v3290 = vld [vmem:[%s19 + $0x9c] sm:$0xf]
    %v3291 = vld [vmem:[%s19 + $0xa0] sm:$0xf]
    %v3292 = vld [vmem:[%s19 + $0xa4] sm:$0xf]
    %v3293 = vld [vmem:[%s19 + $0xa8] sm:$0xf]
    %v3294 = vld [vmem:[%s19 + $0xac] sm:$0xf]
    %v3295 = vld [vmem:[%s19 + $0xb0] sm:$0xf]
    %v3296 = vld [vmem:[%s19 + $0xb4] sm:$0xf]
    %v3297 = vld [vmem:[%s19 + $0xb8] sm:$0xf]
    %v3298 = vld [vmem:[%s19 + $0xbc] sm:$0xf]
    %v3299 = vld [vmem:[%s19 + $0xc0] sm:$0xf]
    %v3300 = vld [vmem:[%s19 + $0xc4] sm:$0xf]
    %v3301 = vld [vmem:[%s19 + $0xc8] sm:$0xf]
    %v3302 = vld [vmem:[%s19 + $0xcc] sm:$0xf]
    %v3303 = vld [vmem:[%s19 + $0xd0] sm:$0xf]
    %v3304 = vld [vmem:[%s19 + $0xd4] sm:$0xf]
    %v3305 = vld [vmem:[%s19 + $0xd8] sm:$0xf]
    %v3306 = vld [vmem:[%s19 + $0xdc] sm:$0xf]
    %v3307 = vld [vmem:[%s19 + $0xe0] sm:$0xf]
    %v3308 = vld [vmem:[%s19 + $0xe4] sm:$0xf]
    %v3309 = vld [vmem:[%s19 + $0xe8] sm:$0xf]
    %v3310 = vld [vmem:[%s19 + $0xec] sm:$0xf]
    %v3311 = vld [vmem:[%s19 + $0xf0] sm:$0xf]
    %v3312 = vld [vmem:[%s19 + $0xf4] sm:$0xf]
    %v3313 = vld [vmem:[%s19 + $0xf8] sm:$0xf]
    %v3314 = vld [vmem:[%s19 + $0xfc] sm:$0xf]
    %v3315 = vld [vmem:[%s19 + $0x100] sm:$0xf]
    %v3316 = vld [vmem:[%s19 + $0x104] sm:$0xf]
    %v3317 = vld [vmem:[%s19 + $0x108] sm:$0xf]
    %v3318 = vld [vmem:[%s19 + $0x10c] sm:$0xf]
    %v3319 = vld [vmem:[%s19 + $0x110] sm:$0xf]
    %v3320 = vld [vmem:[%s19 + $0x114] sm:$0xf]
    %v3321 = vld [vmem:[%s19 + $0x118] sm:$0xf]
    %v3322 = vld [vmem:[%s19 + $0x11c] sm:$0xf]
    %v3323 = vld [vmem:[%s19 + $0x120] sm:$0xf]
    %v3324 = vld [vmem:[%s19 + $0x124] sm:$0xf]
    %v3325 = vld [vmem:[%s19 + $0x128] sm:$0xf]
    %v3326 = vld [vmem:[%s19 + $0x12c] sm:$0xf]
    %v3327 = vld [vmem:[%s19 + $0x130] sm:$0xf]
    %v3328 = vld [vmem:[%s19 + $0x134] sm:$0xf]
    %v3329 = vld [vmem:[%s19 + $0x138] sm:$0xf]
    %v3330 = vld [vmem:[%s19 + $0x13c] sm:$0xf]
    %v3331 = vld [vmem:[%s19 + $0x140] sm:$0xf]
    %v3332 = vld [vmem:[%s19 + $0x144] sm:$0xf]
    %v3333 = vld [vmem:[%s19 + $0x148] sm:$0xf]
    %v3334 = vld [vmem:[%s19 + $0x14c] sm:$0xf]
    %v3335 = vld [vmem:[%s19 + $0x150] sm:$0xf]
    %v3336 = vld [vmem:[%s19 + $0x154] sm:$0xf]
    %v3337 = vld [vmem:[%s19 + $0x158] sm:$0xf]
    %v3338 = vld [vmem:[%s19 + $0x15c] sm:$0xf]
    %v3339 = vld [vmem:[%s19 + $0x160] sm:$0xf]
    %v3340 = vld [vmem:[%s19 + $0x164] sm:$0xf]
    %v3341 = vld [vmem:[%s19 + $0x168] sm:$0xf]
    %v3342 = vld [vmem:[%s19 + $0x16c] sm:$0xf]
    %v3343 = vld [vmem:[%s19 + $0x170] sm:$0xf]
    %v3344 = vld [vmem:[%s19 + $0x174] sm:$0xf]
    %v3345 = vld [vmem:[%s19 + $0x178] sm:$0xf]
    %v3346 = vld [vmem:[%s19 + $0x17c] sm:$0xf]
    %v3347 = vld [vmem:[%s19 + $0x180] sm:$0xf]
    %v3348 = vld [vmem:[%s19 + $0x184] sm:$0xf]
    %v3349 = vld [vmem:[%s19 + $0x188] sm:$0xf]
    %v3350 = vld [vmem:[%s19 + $0x18c] sm:$0xf]
    %v3351 = vld [vmem:[%s19 + $0x190] sm:$0xf]
    %v3352 = vld [vmem:[%s19 + $0x194] sm:$0xf]
    %v3353 = vld [vmem:[%s19 + $0x198] sm:$0xf]
    %v3354 = vld [vmem:[%s19 + $0x19c] sm:$0xf]
    %v3355 = vld [vmem:[%s19 + $0x1a0] sm:$0xf]
    %v3356 = vld [vmem:[%s19 + $0x1a4] sm:$0xf]
    %v3357 = vld [vmem:[%s19 + $0x1a8] sm:$0xf]
    %v3358 = vld [vmem:[%s19 + $0x1ac] sm:$0xf]
    %v3359 = vld [vmem:[%s19 + $0x1b0] sm:$0xf]
    %v3360 = vld [vmem:[%s19 + $0x1b4] sm:$0xf]
    %v3361 = vld [vmem:[%s19 + $0x1b8] sm:$0xf]
    %v3362 = vld [vmem:[%s19 + $0x1bc] sm:$0xf]
    %v3363 = vld [vmem:[%s19 + $0x1c0] sm:$0xf]
    %v3364 = vld [vmem:[%s19 + $0x1c4] sm:$0xf]
    %v3365 = vld [vmem:[%s19 + $0x1c8] sm:$0xf]
    %v3366 = vld [vmem:[%s19 + $0x1cc] sm:$0xf]
    %v3367 = vld [vmem:[%s19 + $0x1d0] sm:$0xf]
    %v3368 = vld [vmem:[%s19 + $0x1d4] sm:$0xf]
    %v3369 = vld [vmem:[%s19 + $0x1d8] sm:$0xf]
    %v3370 = vld [vmem:[%s19 + $0x1dc] sm:$0xf]
    %v3371 = vld [vmem:[%s19 + $0x1e0] sm:$0xf]
    %v3372 = vld [vmem:[%s19 + $0x1e4] sm:$0xf]
    %v3373 = vld [vmem:[%s19 + $0x1e8] sm:$0xf]
    %v3374 = vld [vmem:[%s19 + $0x1ec] sm:$0xf]
    %v3375 = vld [vmem:[%s19 + $0x1f0] sm:$0xf]
    %v3376 = vld [vmem:[%s19 + $0x1f4] sm:$0xf]
    %v3377 = vld [vmem:[%s19 + $0x1f8] sm:$0xf]
    %v3378 = vld [vmem:[%s19 + $0x1fc] sm:$0xf]
    %v3507 = vunpack.c.l.b16 %v3251
    %v3508 = vunpack.c.l.b16 %v3252
    %v3509 = vunpack.c.l.b16 %v3253
    %v3510 = vunpack.c.l.b16 %v3254
    %v3511 = vunpack.c.l.b16 %v3255
    %v3512 = vunpack.c.l.b16 %v3256
    %v3513 = vunpack.c.l.b16 %v3257
    %v3514 = vunpack.c.l.b16 %v3258
    %v3515 = vunpack.c.l.b16 %v3259
    %v3516 = vunpack.c.l.b16 %v3260
    %v3517 = vunpack.c.l.b16 %v3261
    %v3518 = vunpack.c.l.b16 %v3262
    %v3519 = vunpack.c.l.b16 %v3263
    %v3520 = vunpack.c.l.b16 %v3264
    %v3521 = vunpack.c.l.b16 %v3265
    %v3522 = vunpack.c.l.b16 %v3266
    %v3523 = vunpack.c.l.b16 %v3267
    %v3524 = vunpack.c.l.b16 %v3268
    %v3525 = vunpack.c.l.b16 %v3269
    %v3526 = vunpack.c.l.b16 %v3270
    %v3527 = vunpack.c.l.b16 %v3271
    %v3528 = vunpack.c.l.b16 %v3272
    %v3529 = vunpack.c.l.b16 %v3273
    %v3530 = vunpack.c.l.b16 %v3274
    %v3531 = vunpack.c.l.b16 %v3275
    %v3532 = vunpack.c.l.b16 %v3276
    %v3533 = vunpack.c.l.b16 %v3277
    %v3534 = vunpack.c.l.b16 %v3278
    %v3535 = vunpack.c.l.b16 %v3279
    %v3536 = vunpack.c.l.b16 %v3280
    %v3537 = vunpack.c.l.b16 %v3281
    %v3538 = vunpack.c.l.b16 %v3282
    %v3539 = vunpack.c.l.b16 %v3283
    %v3540 = vunpack.c.l.b16 %v3284
    %v3541 = vunpack.c.l.b16 %v3285
    %v3542 = vunpack.c.l.b16 %v3286
    %v3543 = vunpack.c.l.b16 %v3287
    %v3544 = vunpack.c.l.b16 %v3288
    %v3545 = vunpack.c.l.b16 %v3289
    %v3546 = vunpack.c.l.b16 %v3290
    %v3547 = vunpack.c.l.b16 %v3291
    %v3548 = vunpack.c.l.b16 %v3292
    %v3549 = vunpack.c.l.b16 %v3293
    %v3550 = vunpack.c.l.b16 %v3294
    %v3551 = vunpack.c.l.b16 %v3295
    %v3552 = vunpack.c.l.b16 %v3296
    %v3553 = vunpack.c.l.b16 %v3297
    %v3554 = vunpack.c.l.b16 %v3298
    %v3555 = vunpack.c.l.b16 %v3299
    %v3556 = vunpack.c.l.b16 %v3300
    %v3557 = vunpack.c.l.b16 %v3301
    %v3558 = vunpack.c.l.b16 %v3302
    %v3559 = vunpack.c.l.b16 %v3303
    %v3560 = vunpack.c.l.b16 %v3304
    %v3561 = vunpack.c.l.b16 %v3305
    %v3562 = vunpack.c.l.b16 %v3306
    %v3563 = vunpack.c.l.b16 %v3307
    %v3564 = vunpack.c.l.b16 %v3308
    %v3565 = vunpack.c.l.b16 %v3309
    %v3566 = vunpack.c.l.b16 %v3310
    %v3567 = vunpack.c.l.b16 %v3311
    %v3568 = vunpack.c.l.b16 %v3312
    %v3569 = vunpack.c.l.b16 %v3313
    %v3570 = vunpack.c.l.b16 %v3314
    %v3571 = vunpack.c.l.b16 %v3315
    %v3572 = vunpack.c.l.b16 %v3316
    %v3573 = vunpack.c.l.b16 %v3317
    %v3574 = vunpack.c.l.b16 %v3318
    %v3575 = vunpack.c.l.b16 %v3319
    %v3576 = vunpack.c.l.b16 %v3320
    %v3577 = vunpack.c.l.b16 %v3321
    %v3578 = vunpack.c.l.b16 %v3322
    %v3579 = vunpack.c.l.b16 %v3323
    %v3580 = vunpack.c.l.b16 %v3324
    %v3581 = vunpack.c.l.b16 %v3325
    %v3582 = vunpack.c.l.b16 %v3326
    %v3583 = vunpack.c.l.b16 %v3327
    %v3584 = vunpack.c.l.b16 %v3328
    %v3585 = vunpack.c.l.b16 %v3329
    %v3586 = vunpack.c.l.b16 %v3330
    %v3587 = vunpack.c.l.b16 %v3331
    %v3588 = vunpack.c.l.b16 %v3332
    %v3589 = vunpack.c.l.b16 %v3333
    %v3590 = vunpack.c.l.b16 %v3334
    %v3591 = vunpack.c.l.b16 %v3335
    %v3592 = vunpack.c.l.b16 %v3336
    %v3593 = vunpack.c.l.b16 %v3337
    %v3594 = vunpack.c.l.b16 %v3338
    %v3595 = vunpack.c.l.b16 %v3339
    %v3596 = vunpack.c.l.b16 %v3340
    %v3597 = vunpack.c.l.b16 %v3341
    %v3598 = vunpack.c.l.b16 %v3342
    %v3599 = vunpack.c.l.b16 %v3343
    %v3600 = vunpack.c.l.b16 %v3344
    %v3601 = vunpack.c.l.b16 %v3345
    %v3602 = vunpack.c.l.b16 %v3346
    %v3603 = vunpack.c.l.b16 %v3347
    %v3604 = vunpack.c.l.b16 %v3348
    %v3605 = vunpack.c.l.b16 %v3349
    %v3606 = vunpack.c.l.b16 %v3350
    %v3607 = vunpack.c.l.b16 %v3351
    %v3608 = vunpack.c.l.b16 %v3352
    %v3609 = vunpack.c.l.b16 %v3353
    %v3610 = vunpack.c.l.b16 %v3354
    %v3611 = vunpack.c.l.b16 %v3355
    %v3612 = vunpack.c.l.b16 %v3356
    %v3613 = vunpack.c.l.b16 %v3357
    %v3614 = vunpack.c.l.b16 %v3358
    %v3615 = vunpack.c.l.b16 %v3359
    %v3616 = vunpack.c.l.b16 %v3360
    %v3617 = vunpack.c.l.b16 %v3361
    %v3618 = vunpack.c.l.b16 %v3362
    %v3619 = vunpack.c.l.b16 %v3363
    %v3620 = vunpack.c.l.b16 %v3364
    %v3621 = vunpack.c.l.b16 %v3365
    %v3622 = vunpack.c.l.b16 %v3366
    %v3623 = vunpack.c.l.b16 %v3367
    %v3624 = vunpack.c.l.b16 %v3368
    %v3625 = vunpack.c.l.b16 %v3369
    %v3626 = vunpack.c.l.b16 %v3370
    %v3627 = vunpack.c.l.b16 %v3371
    %v3628 = vunpack.c.l.b16 %v3372
    %v3629 = vunpack.c.l.b16 %v3373
    %v3630 = vunpack.c.l.b16 %v3374
    %v3631 = vunpack.c.l.b16 %v3375
    %v3632 = vunpack.c.l.b16 %v3376
    %v3633 = vunpack.c.l.b16 %v3377
    %v3634 = vunpack.c.l.b16 %v3378
    %v3635 = vpack.c.b16 %v3508, %v3507
    %v3636 = vpack.c.b16 %v3510, %v3509
    %v3637 = vpack.c.b16 %v3512, %v3511
    %v3638 = vpack.c.b16 %v3514, %v3513
    %v3639 = vpack.c.b16 %v3516, %v3515
    %v3640 = vpack.c.b16 %v3518, %v3517
    %v3641 = vpack.c.b16 %v3520, %v3519
    %v3642 = vpack.c.b16 %v3522, %v3521
    %v3643 = vpack.c.b16 %v3524, %v3523
    %v3644 = vpack.c.b16 %v3526, %v3525
    %v3645 = vpack.c.b16 %v3528, %v3527
    %v3646 = vpack.c.b16 %v3530, %v3529
    %v3647 = vpack.c.b16 %v3532, %v3531
    %v3648 = vpack.c.b16 %v3534, %v3533
    %v3649 = vpack.c.b16 %v3536, %v3535
    %v3650 = vpack.c.b16 %v3538, %v3537
    %v3651 = vpack.c.b16 %v3540, %v3539
    %v3652 = vpack.c.b16 %v3542, %v3541
    %v3653 = vpack.c.b16 %v3544, %v3543
    %v3654 = vpack.c.b16 %v3546, %v3545
    %v3655 = vpack.c.b16 %v3548, %v3547
    %v3656 = vpack.c.b16 %v3550, %v3549
    %v3657 = vpack.c.b16 %v3552, %v3551
    %v3658 = vpack.c.b16 %v3554, %v3553
    %v3659 = vpack.c.b16 %v3556, %v3555
    %v3660 = vpack.c.b16 %v3558, %v3557
    %v3661 = vpack.c.b16 %v3560, %v3559
    %v3662 = vpack.c.b16 %v3562, %v3561
    %v3663 = vpack.c.b16 %v3564, %v3563
    %v3664 = vpack.c.b16 %v3566, %v3565
    %v3665 = vpack.c.b16 %v3568, %v3567
    %v3666 = vpack.c.b16 %v3570, %v3569
    %v3667 = vpack.c.b16 %v3572, %v3571
    %v3668 = vpack.c.b16 %v3574, %v3573
    %v3669 = vpack.c.b16 %v3576, %v3575
    %v3670 = vpack.c.b16 %v3578, %v3577
    %v3671 = vpack.c.b16 %v3580, %v3579
    %v3672 = vpack.c.b16 %v3582, %v3581
    %v3673 = vpack.c.b16 %v3584, %v3583
    %v3674 = vpack.c.b16 %v3586, %v3585
    %v3675 = vpack.c.b16 %v3588, %v3587
    %v3676 = vpack.c.b16 %v3590, %v3589
    %v3677 = vpack.c.b16 %v3592, %v3591
    %v3678 = vpack.c.b16 %v3594, %v3593
    %v3679 = vpack.c.b16 %v3596, %v3595
    %v3680 = vpack.c.b16 %v3598, %v3597
    %v3681 = vpack.c.b16 %v3600, %v3599
    %v3682 = vpack.c.b16 %v3602, %v3601
    %v3683 = vpack.c.b16 %v3604, %v3603
    %v3684 = vpack.c.b16 %v3606, %v3605
    %v3685 = vpack.c.b16 %v3608, %v3607
    %v3686 = vpack.c.b16 %v3610, %v3609
    %v3687 = vpack.c.b16 %v3612, %v3611
    %v3688 = vpack.c.b16 %v3614, %v3613
    %v3689 = vpack.c.b16 %v3616, %v3615
    %v3690 = vpack.c.b16 %v3618, %v3617
    %v3691 = vpack.c.b16 %v3620, %v3619
    %v3692 = vpack.c.b16 %v3622, %v3621
    %v3693 = vpack.c.b16 %v3624, %v3623
    %v3694 = vpack.c.b16 %v3626, %v3625
    %v3695 = vpack.c.b16 %v3628, %v3627
    %v3696 = vpack.c.b16 %v3630, %v3629
    %v3697 = vpack.c.b16 %v3632, %v3631
    %v3698 = vpack.c.b16 %v3634, %v3633
    %3763 = vmatpush.bf16.msra.mxu0 %v3642
    %3764 = vmatpush.bf16.msra.mxu0 %v3641
    %3765 = vmatpush.bf16.msra.mxu0 %v3640
    %3766 = vmatpush.bf16.msra.mxu0 %v3639
    %3767 = vmatpush.bf16.msra.mxu0 %v3638
    %3768 = vmatpush.bf16.msra.mxu0 %v3637
    %3769 = vmatpush.bf16.msra.mxu0 %v3636
    %3770 = vmatpush.bf16.msra.mxu0 %v3635
    %3771 = vmatmul.bf16.gmra.mxu0 %v3243
    %v3772 = vpop.f32.mrf.mxu0
    %v3773 = vadd.f32 0.0, %v3772
    %v3774 = vpop.f32.mrf.mxu0
    %3775 = vdwg.mxu0
    %3776 = vmatpush.bf16.msra.mxu0 %v3650
    %3777 = vmatpush.bf16.msra.mxu0 %v3649
    %3778 = vmatpush.bf16.msra.mxu0 %v3648
    %3779 = vmatpush.bf16.msra.mxu0 %v3647
    %3780 = vmatpush.bf16.msra.mxu0 %v3646
    %3781 = vmatpush.bf16.msra.mxu0 %v3645
    %3782 = vmatpush.bf16.msra.mxu0 %v3644
    %3783 = vmatpush.bf16.msra.mxu0 %v3643
    %3784 = vmatmul.bf16.gmra.mxu0 %v3244
    %v3785 = vpop.f32.mrf.mxu0
    %v3786 = vadd.f32 %v3773, %v3785
    %v3787 = vpop.f32.mrf.mxu0
    %3788 = vdwg.mxu0
    %3789 = vmatpush.bf16.msra.mxu0 %v3658
    %3790 = vmatpush.bf16.msra.mxu0 %v3657
    %3791 = vmatpush.bf16.msra.mxu0 %v3656
    %3792 = vmatpush.bf16.msra.mxu0 %v3655
    %3793 = vmatpush.bf16.msra.mxu0 %v3654
    %3794 = vmatpush.bf16.msra.mxu0 %v3653
    %3795 = vmatpush.bf16.msra.mxu0 %v3652
    %3796 = vmatpush.bf16.msra.mxu0 %v3651
    %3797 = vmatmul.bf16.gmra.mxu0 %v3245
    %v3798 = vpop.f32.mrf.mxu0
    %v3799 = vadd.f32 %v3786, %v3798
    %v3800 = vpop.f32.mrf.mxu0
    %3801 = vdwg.mxu0
    %3802 = vmatpush.bf16.msra.mxu0 %v3666
    %3803 = vmatpush.bf16.msra.mxu0 %v3665
    %3804 = vmatpush.bf16.msra.mxu0 %v3664
    %3805 = vmatpush.bf16.msra.mxu0 %v3663
    %3806 = vmatpush.bf16.msra.mxu0 %v3662
    %3807 = vmatpush.bf16.msra.mxu0 %v3661
    %3808 = vmatpush.bf16.msra.mxu0 %v3660
    %3809 = vmatpush.bf16.msra.mxu0 %v3659
    %3810 = vmatmul.bf16.gmra.mxu0 %v3246
    %v3811 = vpop.f32.mrf.mxu0
    %v3812 = vadd.f32 %v3799, %v3811
    %v3813 = vpop.f32.mrf.mxu0
    %3814 = vdwg.mxu0
    %3815 = vmatpush.bf16.msra.mxu0 %v3674
    %3816 = vmatpush.bf16.msra.mxu0 %v3673
    %3817 = vmatpush.bf16.msra.mxu0 %v3672
    %3818 = vmatpush.bf16.msra.mxu0 %v3671
    %3819 = vmatpush.bf16.msra.mxu0 %v3670
    %3820 = vmatpush.bf16.msra.mxu0 %v3669
    %3821 = vmatpush.bf16.msra.mxu0 %v3668
    %3822 = vmatpush.bf16.msra.mxu0 %v3667
    %3823 = vmatmul.bf16.gmra.mxu0 %v3247
    %v3824 = vpop.f32.mrf.mxu0
    %v3825 = vadd.f32 %v3812, %v3824
    %v3826 = vpop.f32.mrf.mxu0
    %3827 = vdwg.mxu0
    %3828 = vmatpush.bf16.msra.mxu0 %v3682
    %3829 = vmatpush.bf16.msra.mxu0 %v3681
    %3830 = vmatpush.bf16.msra.mxu0 %v3680
    %3831 = vmatpush.bf16.msra.mxu0 %v3679
    %3832 = vmatpush.bf16.msra.mxu0 %v3678
    %3833 = vmatpush.bf16.msra.mxu0 %v3677
    %3834 = vmatpush.bf16.msra.mxu0 %v3676
    %3835 = vmatpush.bf16.msra.mxu0 %v3675
    %3836 = vmatmul.bf16.gmra.mxu0 %v3248
    %v3837 = vpop.f32.mrf.mxu0
    %v3838 = vadd.f32 %v3825, %v3837
    %v3839 = vpop.f32.mrf.mxu0
    %3840 = vdwg.mxu0
    %3841 = vmatpush.bf16.msra.mxu0 %v3690
    %3842 = vmatpush.bf16.msra.mxu0 %v3689
    %3843 = vmatpush.bf16.msra.mxu0 %v3688
    %3844 = vmatpush.bf16.msra.mxu0 %v3687
    %3845 = vmatpush.bf16.msra.mxu0 %v3686
    %3846 = vmatpush.bf16.msra.mxu0 %v3685
    %3847 = vmatpush.bf16.msra.mxu0 %v3684
    %3848 = vmatpush.bf16.msra.mxu0 %v3683
    %3849 = vmatmul.bf16.gmra.mxu0 %v3249
    %v3850 = vpop.f32.mrf.mxu0
    %v3851 = vadd.f32 %v3838, %v3850
    %v3852 = vpop.f32.mrf.mxu0
    %3853 = vdwg.mxu0
    %3854 = vmatpush.bf16.msra.mxu0 %v3698
    %3855 = vmatpush.bf16.msra.mxu0 %v3697
    %3856 = vmatpush.bf16.msra.mxu0 %v3696
    %3857 = vmatpush.bf16.msra.mxu0 %v3695
    %3858 = vmatpush.bf16.msra.mxu0 %v3694
    %3859 = vmatpush.bf16.msra.mxu0 %v3693
    %3860 = vmatpush.bf16.msra.mxu0 %v3692
    %3861 = vmatpush.bf16.msra.mxu0 %v3691
    %3862 = vmatmul.bf16.gmra.mxu0 %v3250
    %v3863 = vpop.f32.mrf.mxu0
    %v3864 = vadd.f32 %v3851, %v3863
    %v3865 = vpop.f32.mrf.mxu0
    %3866 = vdwg.mxu0
    %v3867 = vadd.f32 %v3240, %v3864
    %3868 = vst [vmem:[%s20] sm:$0xff] %v3867
  $region89: #{forward.1} parent=0 // pred_fallthru
    _
  // Predicated region
  $region90: #{forward.1} parent=0 // pred_check
    _
  $region91: #{forward.1} parent=0 // pred_check_branch
    %3870 = sbr.rel (0) target = $region93
  $region92: #{forward.1} parent=0 // pred_region
    _
  $region93: #{forward.1} parent=0 // pred_fallthru
    _
  // Predicated region
  $region94: #{forward.1} parent=0 // pred_check
    _
  $region95: #{forward.1} parent=0 // pred_check_branch
    %3872 = sbr.rel (0) target = $region97
  $region96: #{forward.1} parent=0 // pred_region
    _
  $region97: #{forward.1} parent=0 // pred_fallthru
    _

</llo_original>
